<compile_context>
chip_gen: v5e
topology: v5e:2x2
jax: 0.10.0
libtpu: 0.0.40
codegen_flags: <defaults>
</compile_context>

<pallas_src>
import functools
import math

import jax
import jax.numpy as jnp
from jax.experimental import pallas as pl
from jax.experimental.pallas import tpu as pltpu


# ---------------------------------------------------------------------------
# Small helpers
# ---------------------------------------------------------------------------
def _round_up(x, m):
    return (x + m - 1) // m * m


@functools.lru_cache(maxsize=None)
def _chip_settings():
    """Generation-aware (vmem_limit, token_tile, f_tile, gelu_dtype, group_w)."""
    kind = ""
    try:
        kind = jax.devices()[0].device_kind.lower()
    except Exception:
        pass
    vmem_bytes = None
    try:
        vmem_bytes = int(pltpu.get_tpu_info().vmem_capacity_bytes)
    except Exception:
        vmem_bytes = None
    if vmem_bytes is None:
        # v5e / v5p / v6e have 128 MiB VMEM; be conservative otherwise (v7x: 64).
        vmem_bytes = 128 * 2**20 if ("v5" in kind or "v6" in kind) else 64 * 2**20
    big = vmem_bytes >= 100 * 2**20
    vmem_limit = (96 if big else 48) * 2**20
    token_tile = 256 if big else 128
    f_tile = 1024 if big else 512
    is_v5e = ("v5 lite" in kind) or ("v5e" in kind) or ("v5litepod" in kind)
    gelu_dtype = jnp.float32 if is_v5e else jnp.bfloat16   # v5e: no bf16 VPU/EUP
    group_width = 128 if is_v5e else 256                   # MXU depth target
    return vmem_limit, token_tile, f_tile, gelu_dtype, group_width


def _cparams(num_parallel, num_arbitrary=0):
    sem = ("parallel",) * num_parallel + ("arbitrary",) * num_arbitrary
    return pltpu.CompilerParams(dimension_semantics=sem,
                                vmem_limit_bytes=_chip_settings()[0])


_BUFFERED_OK = None


def _buffered_supported():
    """Probe once whether pipeline_mode=pl.Buffered(1) compiles & runs here."""
    global _BUFFERED_OK
    if _BUFFERED_OK is not None:
        return _BUFFERED_OK
    ok = hasattr(pl, "Buffered")
    if ok:
        try:
            def _probe(x_ref, w_ref, o_ref):
                o_ref[...] = x_ref[...] + w_ref[...]
            r = pl.pallas_call(
                _probe,
                out_shape=jax.ShapeDtypeStruct((16, 128), jnp.float32),
                grid=(2,),
                in_specs=[pl.BlockSpec((8, 128), lambda i: (i, 0)),
                          pl.BlockSpec((8, 128), lambda i: (0, 0),
                                       pipeline_mode=pl.Buffered(1))],
                out_specs=pl.BlockSpec((8, 128), lambda i: (i, 0)),
            )(jnp.zeros((16, 128), jnp.float32), jnp.zeros((8, 128), jnp.float32))
            jax.block_until_ready(r)
        except Exception:
            ok = False
    _BUFFERED_OK = ok
    return ok


def _const_spec(shape, index_map):
    """BlockSpec for a grid-invariant operand; single-buffered when supported."""
    if _buffered_supported():
        return pl.BlockSpec(shape, index_map, pipeline_mode=pl.Buffered(1))
    return pl.BlockSpec(shape, index_map)


def _pick_head_group(num_heads, head_dim, target):
    """Heads-per-group g | num_heads with g*hd <= target, preferring 128-multiples."""
    best, best_aligned = 1, None
    for g in range(1, num_heads + 1):
        if num_heads % g:
            continue
        if g * head_dim > max(target, head_dim):
            continue
        best = g
        if (g * head_dim) % 128 == 0:
            best_aligned = g
    return best_aligned if best_aligned is not None else best


# ---------------------------------------------------------------------------
# In-kernel math helpers
# ---------------------------------------------------------------------------
def _layer_norm(x, w, b, eps):
    mean = jnp.mean(x, axis=-1, keepdims=True)
    var = jnp.mean(jnp.square(x - mean), axis=-1, keepdims=True)
    return (x - mean) * jax.lax.rsqrt(var + eps) * w + b


def _gelu_tanh(x):
    # PyTorch / SigLip "gelu_pytorch_tanh"
    c = math.sqrt(2.0 / math.pi)
    return 0.5 * x * (1.0 + jnp.tanh(c * (x + 0.044715 * x * x * x)))


# ---------------------------------------------------------------------------
# Kernels
# ---------------------------------------------------------------------------
def _embed_kernel(p_ref, w_ref, b_ref, pos_ref, out_ref):
    # Patch conv (kernel==stride, 'valid') == per-patch matmul, bf16 MXU operands.
    out_ref[0] = (jnp.dot(p_ref[0], w_ref[...], preferred_element_type=jnp.float32)
                  + b_ref[...] + pos_ref[...])


def _ln_qkv_kernel(num_groups, ghd, eps,
                   x_ref, lnw_ref, lnb_ref, w_ref, b_ref,
                   q_ref, k_ref, v_ref):
    h = _layer_norm(x_ref[0], lnw_ref[...], lnb_ref[...], eps).astype(jnp.bfloat16)
    # One fused (tn, D) x (D, 3D) matmul; Q section pre-scaled on the host.
    qkv = (jnp.dot(h, w_ref[...], preferred_element_type=jnp.float32)
           + b_ref[...]).astype(jnp.bfloat16)
    d = num_groups * ghd
    for hg in range(num_groups):                    # lane-dense head-group stores
        lo = hg * ghd
        q_ref[0, hg] = qkv[:, lo:lo + ghd]
        k_ref[0, hg] = qkv[:, d + lo:d + lo + ghd]
        v_ref[0, hg] = qkv[:, 2 * d + lo:2 * d + lo + ghd]


def _attn_kernel(heads_per_group, head_dim, n_valid,
                 x_ref, q_ref, k_ref, v_ref, wo_ref, bo_ref,
                 out_ref, acc_ref, ctx_ref):
    hg = pl.program_id(2)

    @pl.when(hg == 0)
    def _():
        acc_ref[...] = x_ref[0] + bo_ref[...]       # residual + out-proj bias

    q = q_ref[0, 0]                                 # (tq, G*hd) bf16, pre-scaled
    k = k_ref[0, 0]                                 # (Np, G*hd) bf16
    v = v_ref[0, 0]                                 # (Np, G*hd) bf16
    n_pad = k.shape[0]
    if n_valid < n_pad:                             # static: mask padded key cols
        key_valid = (jax.lax.broadcasted_iota(jnp.int32, (q.shape[0], n_pad), 1)
                     < n_valid)
    for g in range(heads_per_group):
        sl = slice(g * head_dim, (g + 1) * head_dim)
        s = jax.lax.dot_general(q[:, sl], k[:, sl], (((1,), (1,)), ((), ())),
                                preferred_element_type=jnp.float32)   # (tq, Np)
        if n_valid < n_pad:
            s = jnp.where(key_valid, s, -1e30)
        s = s - jnp.max(s, axis=-1, keepdims=True)
        p = jnp.exp(s)
        p = p / jnp.sum(p, axis=-1, keepdims=True)  # exact reciprocal (review)
        ctx_ref[:, sl] = jnp.dot(p.astype(jnp.bfloat16), v[:, sl],
                                 preferred_element_type=jnp.float32
                                 ).astype(jnp.bfloat16)
    # Fold the output projection per head GROUP: contraction depth G*hd (>=128).
    acc_ref[...] += jnp.dot(ctx_ref[...], wo_ref[0],
                            preferred_element_type=jnp.float32)       # (tq, D)

    @pl.when(hg == pl.num_programs(2) - 1)
    def _():
        out_ref[0] = acc_ref[...]


def _mlp_kernel(eps, gelu_dtype,
                x_ref, lnw_ref, lnb_ref, w1_ref, b1_ref, w2_ref, b2_ref,
                out_ref, acc_ref, h_ref):
    fidx = pl.program_id(2)

    @pl.when(fidx == 0)
    def _():
        x = x_ref[0]                                                   # (tn, D)
        h_ref[...] = _layer_norm(x, lnw_ref[...], lnb_ref[...],
                                 eps).astype(jnp.bfloat16)
        acc_ref[...] = x + b2_ref[...]                                 # resid + b2

    m = (jnp.dot(h_ref[...], w1_ref[...], preferred_element_type=jnp.float32)
         + b1_ref[...]).astype(gelu_dtype)          # gelu in bf16 on v6e/v7x
    m = _gelu_tanh(m).astype(jnp.bfloat16)
    acc_ref[...] += jnp.dot(m, w2_ref[...], preferred_element_type=jnp.float32)

    @pl.when(fidx == pl.num_programs(2) - 1)
    def _():
        out_ref[0] = acc_ref[...]


def _post_ln_kernel(eps, x_ref, w_ref, b_ref, out_ref):
    out_ref[0] = _layer_norm(x_ref[0], w_ref[...], b_ref[...], eps)


# ---------------------------------------------------------------------------
# Wrappers (pallas_call plumbing)
# ---------------------------------------------------------------------------
def patch_embeddings(pixel_values, conv_w, conv_b, pos_emb, patch_size, n_pad, tn):
    B, C, H, W = pixel_values.shape
    P = patch_size
    Hp, Wp = H // P, W // P
    N = Hp * Wp
    K = C * P * P
    D = conv_w.shape[0]
    # Cast to bf16 BEFORE the patch-extraction transpose (halves glue traffic).
    px = pixel_values.astype(jnp.bfloat16)
    patches = px.reshape(B, C, Hp, P, Wp, P).transpose(0, 2, 4, 1, 3, 5)
    patches = patches.reshape(B, N, K)
    w2d = conv_w.reshape(D, K).T.astype(jnp.bfloat16)                  # (K, D)
    Kp = _round_up(K, 128)
    patches = jnp.pad(patches, ((0, 0), (0, n_pad - N), (0, Kp - K)))
    w2d = jnp.pad(w2d, ((0, Kp - K), (0, 0)))
    pos = pos_emb.astype(jnp.float32)
    pos = jnp.pad(pos, ((0, n_pad - N), (0, 0)))
    b2d = conv_b.reshape(1, D).astype(jnp.float32)

    return pl.pallas_call(
        _embed_kernel,
        out_shape=jax.ShapeDtypeStruct((B, n_pad, D), jnp.float32),
        grid=(B, n_pad // tn),
        in_specs=[pl.BlockSpec((1, tn, Kp), lambda b, i: (b, i, 0)),
                  _const_spec((Kp, D), lambda b, i: (0, 0)),
                  _const_spec((1, D), lambda b, i: (0, 0)),
                  pl.BlockSpec((tn, D), lambda b, i: (i, 0))],
        out_specs=pl.BlockSpec((1, tn, D), lambda b, i: (b, i, 0)),
        compiler_params=_cparams(2),
    )(patches, w2d, b2d, pos)


def ln_qkv(x, lp, num_heads, num_groups, eps, tn):
    B, n_pad, D = x.shape
    hd = D // num_heads
    ghd = D // num_groups
    scale = 1.0 / math.sqrt(hd)
    # Fold attention scale into Q weight/bias; fuse Q/K/V into one (D, 3D) matmul.
    w_qkv = jnp.concatenate([lp["wq"] * scale, lp["wk"], lp["wv"]],
                            axis=1).astype(jnp.bfloat16)
    b_qkv = jnp.concatenate([lp["bq"] * scale, lp["bk"], lp["bv"]],
                            axis=1).astype(jnp.float32)

    qkv_spec = pl.BlockSpec((1, num_groups, tn, ghd), lambda b, i: (b, 0, i, 0))
    kernel = functools.partial(_ln_qkv_kernel, num_groups, ghd, eps)
    return pl.pallas_call(
        kernel,
        out_shape=tuple(jax.ShapeDtypeStruct((B, num_groups, n_pad, ghd),
                                             jnp.bfloat16) for _ in range(3)),
        grid=(B, n_pad // tn),
        in_specs=[pl.BlockSpec((1, tn, D), lambda b, i: (b, i, 0)),
                  _const_spec((1, D), lambda b, i: (0, 0)),
                  _const_spec((1, D), lambda b, i: (0, 0)),
                  _const_spec((D, 3 * D), lambda b, i: (0, 0)),
                  _const_spec((1, 3 * D), lambda b, i: (0, 0))],
        out_specs=(qkv_spec, qkv_spec, qkv_spec),
        compiler_params=_cparams(2),
    )(x, lp["ln1_w"], lp["ln1_b"], w_qkv, b_qkv)


def attention_core(x, q, k, v, wo, bo, num_groups, head_dim, n_valid, tq):
    B, n_pad, D = x.shape
    ghd = D // num_groups
    heads_per_group = ghd // head_dim
    wo_r = wo.reshape(num_groups, ghd, D).astype(jnp.bfloat16)
    kernel = functools.partial(_attn_kernel, heads_per_group, head_dim, n_valid)
    # Note: input 0 (x) is both read (at hg==0) and aliased to the output; each
    # output block is written once and the aliased read for that block happens
    # strictly before the write (head-group axis is innermost).
    return pl.pallas_call(
        kernel,
        out_shape=jax.ShapeDtypeStruct((B, n_pad, D), jnp.float32),
        grid=(B, n_pad // tq, num_groups),
        in_specs=[pl.BlockSpec((1, tq, D), lambda b, i, h: (b, i, 0)),
                  pl.BlockSpec((1, 1, tq, ghd), lambda b, i, h: (b, h, i, 0)),
                  pl.BlockSpec((1, 1, n_pad, ghd), lambda b, i, h: (b, h, 0, 0)),
                  pl.BlockSpec((1, 1, n_pad, ghd), lambda b, i, h: (b, h, 0, 0)),
                  pl.BlockSpec((1, ghd, D), lambda b, i, h: (h, 0, 0)),
                  _const_spec((1, D), lambda b, i, h: (0, 0))],
        out_specs=pl.BlockSpec((1, tq, D), lambda b, i, h: (b, i, 0)),
        scratch_shapes=[pltpu.VMEM((tq, D), jnp.float32),
                        pltpu.VMEM((tq, ghd), jnp.bfloat16)],
        input_output_aliases={0: 0},
        compiler_params=_cparams(2, 1),
    )(x, q, k, v, wo_r, bo)


def mlp_block(x, lp, eps, tn, tf, gelu_dtype):
    B, n_pad, D = x.shape
    F = lp["w1"].shape[1]
    f_pad = _round_up(F, tf)
    w1 = lp["w1"].astype(jnp.bfloat16)
    b1 = lp["b1"].astype(jnp.float32)
    w2 = lp["w2"].astype(jnp.bfloat16)
    if f_pad != F:   # zero-pad F: gelu(0)=0 and zero w2 rows => exact
        w1 = jnp.pad(w1, ((0, 0), (0, f_pad - F)))
        b1 = jnp.pad(b1, ((0, 0), (0, f_pad - F)))
        w2 = jnp.pad(w2, ((0, f_pad - F), (0, 0)))
    kernel = functools.partial(_mlp_kernel, eps, gelu_dtype)
    return pl.pallas_call(
        kernel,
        out_shape=jax.ShapeDtypeStruct((B, n_pad, D), jnp.float32),
        grid=(B, n_pad // tn, f_pad // tf),
        in_specs=[pl.BlockSpec((1, tn, D), lambda b, i, f: (b, i, 0)),
                  _const_spec((1, D), lambda b, i, f: (0, 0)),
                  _const_spec((1, D), lambda b, i, f: (0, 0)),
                  pl.BlockSpec((D, tf), lambda b, i, f: (0, f)),
                  pl.BlockSpec((1, tf), lambda b, i, f: (0, f)),
                  pl.BlockSpec((tf, D), lambda b, i, f: (f, 0)),
                  _const_spec((1, D), lambda b, i, f: (0, 0))],
        out_specs=pl.BlockSpec((1, tn, D), lambda b, i, f: (b, i, 0)),
        scratch_shapes=[pltpu.VMEM((tn, D), jnp.float32),
                        pltpu.VMEM((tn, D), jnp.bfloat16)],
        input_output_aliases={0: 0},
        compiler_params=_cparams(2, 1),
    )(x, lp["ln2_w"], lp["ln2_b"], w1, b1, w2, lp["b2"])


def post_layernorm(x, w, b, eps, tn):
    B, n_pad, D = x.shape
    return pl.pallas_call(
        functools.partial(_post_ln_kernel, eps),
        out_shape=jax.ShapeDtypeStruct((B, n_pad, D), jnp.float32),
        grid=(B, n_pad // tn),
        in_specs=[pl.BlockSpec((1, tn, D), lambda b, i: (b, i, 0)),
                  _const_spec((1, D), lambda b, i: (0, 0)),
                  _const_spec((1, D), lambda b, i: (0, 0))],
        out_specs=pl.BlockSpec((1, tn, D), lambda b, i: (b, i, 0)),
        input_output_aliases={0: 0},
        compiler_params=_cparams(2),
    )(x, w, b)


def encoder_layer(x, lp, num_heads, num_groups, eps, n_valid, tn, tf, gelu_dtype):
    D = x.shape[-1]
    hd = D // num_heads
    q, k, v = ln_qkv(x, lp, num_heads, num_groups, eps, tn)
    x = attention_core(x, q, k, v, lp["wo"], lp["bo"], num_groups, hd, n_valid, tn)
    x = mlp_block(x, lp, eps, tn, tf, gelu_dtype)
    return x


def siglip_vision_transformer(pixel_values, params, cfg,
                              token_tile=None, f_tile=None, group_width=None):
    _, tt_def, ft_def, gelu_dtype, gw_def = _chip_settings()
    token_tile = token_tile or tt_def
    f_tile = f_tile or ft_def
    group_width = group_width or gw_def

    P = cfg["patch_size"]
    D = cfg["hidden_size"]
    H = cfg["num_attention_heads"]
    F = cfg["intermediate_size"]
    eps = cfg["layer_norm_eps"]
    N = (pixel_values.shape[2] // P) * (pixel_values.shape[3] // P)
    hd = D // H
    g = _pick_head_group(H, hd, group_width)
    num_groups = H // g

    tn = min(token_tile, _round_up(N, 8))
    n_pad = _round_up(N, tn)
    tf = min(f_tile, _round_up(F, 128))

    x = patch_embeddings(pixel_values, params["conv_w"], params["conv_b"],
                         params["pos_emb"], P, n_pad, tn)
    for lp in params["layers"]:
        x = encoder_layer(x, lp, H, num_groups, eps, N, tn, tf, gelu_dtype)
    x = post_layernorm(x, params["post_ln_w"], params["post_ln_b"], eps, tn)
    return x[:, :N, :]


# ---------------------------------------------------------------------------
# Deterministic synthetic parameter init + pure-JAX f32 reference
# ---------------------------------------------------------------------------
def init_params(key, cfg):
    D = cfg["hidden_size"]; F = cfg["intermediate_size"]
    C = cfg["num_channels"]; P = cfg["patch_size"]
    N = (cfg["image_size"] // P) ** 2
    L = cfg["num_hidden_layers"]
    keys = jax.random.split(key, 4 + L)

    def rnd(k, shape, scale=0.02):
        return (scale * jax.random.normal(k, shape)).astype(jnp.float32)

    params = {
        "conv_w": rnd(keys[0], (D, C, P, P)),      # Conv2d layout (out, in, kH, kW)
        "conv_b": rnd(keys[1], (D,)),
        "pos_emb": rnd(keys[2], (N, D)),
        "post_ln_w": jnp.ones((1, D), jnp.float32),
        "post_ln_b": jnp.zeros((1, D), jnp.float32),
        "layers": [],
    }
    for li in range(L):
        lk = jax.random.split(keys[4 + li], 8)
        params["layers"].append({
            "ln1_w": jnp.ones((1, D), jnp.float32),
            "ln1_b": jnp.zeros((1, D), jnp.float32),
            "wq": rnd(lk[0], (D, D)), "bq": rnd(lk[1], (1, D)),
            "wk": rnd(lk[2], (D, D)), "bk": jnp.zeros((1, D), jnp.float32),
            "wv": rnd(lk[3], (D, D)), "bv": jnp.zeros((1, D), jnp.float32),
            "wo": rnd(lk[4], (D, D)), "bo": jnp.zeros((1, D), jnp.float32),
            "ln2_w": jnp.ones((1, D), jnp.float32),
            "ln2_b": jnp.zeros((1, D), jnp.float32),
            "w1": rnd(lk[5], (D, F)), "b1": jnp.zeros((1, F), jnp.float32),
            "w2": rnd(lk[6], (F, D)), "b2": jnp.zeros((1, D), jnp.float32),
        })
    return params


def reference_forward(pixel_values, params, cfg):
    P = cfg["patch_size"]; H = cfg["num_attention_heads"]; eps = cfg["layer_norm_eps"]
    D = cfg["hidden_size"]
    B, C, Hh, Ww = pixel_values.shape
    Hp, Wp = Hh // P, Ww // P
    N = Hp * Wp
    K = C * P * P
    patches = pixel_values.reshape(B, C, Hp, P, Wp, P)
    patches = patches.transpose(0, 2, 4, 1, 3, 5).reshape(B, N, K)
    x = patches @ params["conv_w"].reshape(D, K).T + params["conv_b"] + params["pos_emb"][None]
    hd = D // H
    scale = 1.0 / math.sqrt(hd)
    for lp in params["layers"]:
        h = _layer_norm(x, lp["ln1_w"], lp["ln1_b"], eps)
        q = (h @ lp["wq"] + lp["bq"]).reshape(B, N, H, hd).transpose(0, 2, 1, 3) * scale
        k = (h @ lp["wk"] + lp["bk"]).reshape(B, N, H, hd).transpose(0, 2, 1, 3)
        v = (h @ lp["wv"] + lp["bv"]).reshape(B, N, H, hd).transpose(0, 2, 1, 3)
        s = q @ k.transpose(0, 1, 3, 2)
        p = jax.nn.softmax(s, axis=-1)
        o = (p @ v).transpose(0, 2, 1, 3).reshape(B, N, D)
        x = x + (o @ lp["wo"] + lp["bo"])
        h2 = _layer_norm(x, lp["ln2_w"], lp["ln2_b"], eps)
        x = x + (_gelu_tanh(h2 @ lp["w1"] + lp["b1"]) @ lp["w2"] + lp["b2"])
    return _layer_norm(x, params["post_ln_w"], params["post_ln_b"], eps)


# ---------------------------------------------------------------------------
if __name__ == "__main__":
    # Small SiglipVisionConfig-consistent shapes that still exercise the padded
    # token path (N=81 -> 96), the multi-head-group reduction axis, the F-tiled
    # MLP and the padded patch contraction (K=48 -> 128).
    cfg = dict(hidden_size=128, intermediate_size=256, num_hidden_layers=2,
               num_attention_heads=8, num_channels=3, image_size=36,
               patch_size=4, layer_norm_eps=1e-6)
    key = jax.random.PRNGKey(0)
    pkey, xkey = jax.random.split(key)
    params = init_params(pkey, cfg)

    # pixel_values: NCHW, like the PyTorch module.
    pixel_values = jax.random.normal(
        xkey, (2, cfg["num_channels"], cfg["image_size"], cfg["image_size"]),
        dtype=jnp.float32)

    fwd = jax.jit(functools.partial(siglip_vision_transformer, cfg=cfg,
                                    token_tile=32, f_tile=128, group_width=64))
    out = jax.block_until_ready(fwd(pixel_values, params))

    N = (cfg["image_size"] // cfg["patch_size"]) ** 2
    assert out.shape == (2, N, cfg["hidden_size"]), out.shape

    ref = reference_forward(pixel_values, params, cfg)
    max_err = float(jnp.max(jnp.abs(out - ref)))
    # bf16 MXU operands (exact softmax reciprocal) => looser-than-f32 tolerance.
    assert max_err < 5e-2, max_err

    # TODO(synk): attention_dropout (rate 0.0 / eval mode) is a no-op and is omitted.
    print("KERNEL_OK")
</pallas_src>

<mosaic_0001>
module attributes {stable_mosaic.version = 11 : i64} {
  func.func @_embed_kernel(%arg0: i32, %arg1: i32, %arg2: memref<1x32x128xbf16, #tpu.memory_space<vmem>>, %arg3: memref<128x128xbf16, #tpu.memory_space<vmem>>, %arg4: memref<1x128xf32, #tpu.memory_space<vmem>>, %arg5: memref<32x128xf32, #tpu.memory_space<vmem>>, %arg6: memref<1x32x128xf32, #tpu.memory_space<vmem>>) attributes {dimension_semantics = [#tpu.dimension_semantics<parallel>, #tpu.dimension_semantics<parallel>], iteration_bounds = array<i64: 2, 3>, scalar_prefetch = 0 : i64, scratch_operands = 0 : i64, tpu.core_type = #tpu.core_type<tc>, window_params = [{transform_indices = @transform_0, window_bounds = array<i64: 1, 32, 128>}, {pipeline_mode = #tpu.pipeline_mode<synchronous>, transform_indices = @transform_1, window_bounds = array<i64: 128, 128>}, {pipeline_mode = #tpu.pipeline_mode<synchronous>, transform_indices = @transform_2, window_bounds = array<i64: 1, 128>}, {transform_indices = @transform_3, window_bounds = array<i64: 32, 128>}, {transform_indices = @transform_4, window_bounds = array<i64: 1, 32, 128>}]} {
    %c0 = arith.constant 0 : index
    %c0_0 = arith.constant 0 : index
    %c0_1 = arith.constant 0 : index
    %0 = vector.load %arg2[%c0, %c0_0, %c0_1] : memref<1x32x128xbf16, #tpu.memory_space<vmem>>, vector<1x32x128xbf16>
    %1 = vector.shape_cast %0 : vector<1x32x128xbf16> to vector<32x128xbf16>
    %c0_2 = arith.constant 0 : index
    %c0_3 = arith.constant 0 : index
    %2 = vector.load %arg3[%c0_2, %c0_3] : memref<128x128xbf16, #tpu.memory_space<vmem>>, vector<128x128xbf16>
    %cst = arith.constant dense<0.000000e+00> : vector<32x128xf32>
    %3 = tpu.matmul %1, %2, %cst {dimension_numbers = #tpu.dot_dimension_numbers<[1], [0], [0], [1], [0, 0, 1, 1], [], []>} : vector<32x128xbf16>, vector<128x128xbf16>, vector<32x128xf32> -> vector<32x128xf32>
    %c0_4 = arith.constant 0 : index
    %c0_5 = arith.constant 0 : index
    %4 = vector.load %arg4[%c0_4, %c0_5] : memref<1x128xf32, #tpu.memory_space<vmem>>, vector<1x128xf32>
    %5 = vector.broadcast %4 : vector<1x128xf32> to vector<32x128xf32>
    %6 = arith.addf %3, %5 : vector<32x128xf32>
    %c0_6 = arith.constant 0 : index
    %c0_7 = arith.constant 0 : index
    %7 = vector.load %arg5[%c0_6, %c0_7] : memref<32x128xf32, #tpu.memory_space<vmem>>, vector<32x128xf32>
    %8 = arith.addf %6, %7 : vector<32x128xf32>
    %c0_8 = arith.constant 0 : index
    %c0_9 = arith.constant 0 : index
    %c0_10 = arith.constant 0 : index
    %9 = vector.load %arg6[%c0_8, %c0_9, %c0_10] : memref<1x32x128xf32, #tpu.memory_space<vmem>>, vector<1x32x128xf32>
    %10 = vector.shape_cast %9 : vector<1x32x128xf32> to vector<32x128xf32>
    %11 = vector.shape_cast %8 : vector<32x128xf32> to vector<1x32x128xf32>
    tpu.vector_store %arg6[%c0_8, %c0_9, %c0_10], %11 {strides = array<i32>} : memref<1x32x128xf32, #tpu.memory_space<vmem>>, vector<1x32x128xf32>,
    return
  }
  func.func @transform_0(%arg0: i32, %arg1: i32) -> (i32, i32, i32) {
    %c0_i32 = arith.constant 0 : i32
    %c0_i32_0 = arith.constant 0 : i32
    return %arg0, %arg1, %c0_i32 : i32, i32, i32
  }
  func.func @transform_1(%arg0: i32, %arg1: i32) -> (i32, i32) {
    %c0_i32 = arith.constant 0 : i32
    %c0_i32_0 = arith.constant 0 : i32
    %c0_i32_1 = arith.constant 0 : i32
    return %c0_i32, %c0_i32_0 : i32, i32
  }
  func.func @transform_2(%arg0: i32, %arg1: i32) -> (i32, i32) {
    %c0_i32 = arith.constant 0 : i32
    %c0_i32_0 = arith.constant 0 : i32
    %c0_i32_1 = arith.constant 0 : i32
    return %c0_i32, %c0_i32_0 : i32, i32
  }
  func.func @transform_3(%arg0: i32, %arg1: i32) -> (i32, i32) {
    %c0_i32 = arith.constant 0 : i32
    %c0_i32_0 = arith.constant 0 : i32
    return %arg1, %c0_i32 : i32, i32
  }
  func.func @transform_4(%arg0: i32, %arg1: i32) -> (i32, i32, i32) {
    %c0_i32 = arith.constant 0 : i32
    %c0_i32_0 = arith.constant 0 : i32
    return %arg0, %arg1, %c0_i32 : i32, i32, i32
  }
}

module attributes {stable_mosaic.version = 11 : i64} {
  func.func @_ln_qkv_kernel(%arg0: i32, %arg1: i32, %arg2: memref<1x32x128xf32, #tpu.memory_space<vmem>>, %arg3: memref<1x128xf32, #tpu.memory_space<vmem>>, %arg4: memref<1x128xf32, #tpu.memory_space<vmem>>, %arg5: memref<128x384xbf16, #tpu.memory_space<vmem>>, %arg6: memref<1x384xf32, #tpu.memory_space<vmem>>, %arg7: memref<1x2x32x64xbf16, #tpu.memory_space<vmem>>, %arg8: memref<1x2x32x64xbf16, #tpu.memory_space<vmem>>, %arg9: memref<1x2x32x64xbf16, #tpu.memory_space<vmem>>) attributes {dimension_semantics = [#tpu.dimension_semantics<parallel>, #tpu.dimension_semantics<parallel>], iteration_bounds = array<i64: 2, 3>, scalar_prefetch = 0 : i64, scratch_operands = 0 : i64, tpu.core_type = #tpu.core_type<tc>, window_params = [{transform_indices = @transform_0, window_bounds = array<i64: 1, 32, 128>}, {pipeline_mode = #tpu.pipeline_mode<synchronous>, transform_indices = @transform_1, window_bounds = array<i64: 1, 128>}, {pipeline_mode = #tpu.pipeline_mode<synchronous>, transform_indices = @transform_2, window_bounds = array<i64: 1, 128>}, {pipeline_mode = #tpu.pipeline_mode<synchronous>, transform_indices = @transform_3, window_bounds = array<i64: 128, 384>}, {pipeline_mode = #tpu.pipeline_mode<synchronous>, transform_indices = @transform_4, window_bounds = array<i64: 1, 384>}, {transform_indices = @transform_5, window_bounds = array<i64: 1, 2, 32, 64>}, {transform_indices = @transform_6, window_bounds = array<i64: 1, 2, 32, 64>}, {transform_indices = @transform_7, window_bounds = array<i64: 1, 2, 32, 64>}]} {
    %c0 = arith.constant 0 : index
    %c0_0 = arith.constant 0 : index
    %c0_1 = arith.constant 0 : index
    %0 = vector.load %arg2[%c0, %c0_0, %c0_1] : memref<1x32x128xf32, #tpu.memory_space<vmem>>, vector<1x32x128xf32>
    %1 = vector.shape_cast %0 : vector<1x32x128xf32> to vector<32x128xf32>
    %c0_2 = arith.constant 0 : index
    %c0_3 = arith.constant 0 : index
    %2 = vector.load %arg3[%c0_2, %c0_3] : memref<1x128xf32, #tpu.memory_space<vmem>>, vector<1x128xf32>
    %c0_4 = arith.constant 0 : index
    %c0_5 = arith.constant 0 : index
    %3 = vector.load %arg4[%c0_4, %c0_5] : memref<1x128xf32, #tpu.memory_space<vmem>>, vector<1x128xf32>
    %cst = arith.constant dense<0.000000e+00> : vector<32xf32>
    %4 = vector.multi_reduction <add>, %1, %cst [1] : vector<32x128xf32> to vector<32xf32>
    %5 = vector.shape_cast %4 : vector<32xf32> to vector<32x1xf32>
    %cst_6 = arith.constant 1.280000e+02 : f32
    %6 = vector.broadcast %cst_6 : f32 to vector<32x1xf32>
    %7 = arith.divf %5, %6 : vector<32x1xf32>
    %8 = vector.broadcast %7 : vector<32x1xf32> to vector<32x128xf32>
    %9 = arith.subf %1, %8 : vector<32x128xf32>
    %10 = arith.mulf %9, %9 : vector<32x128xf32>
    %cst_7 = arith.constant dense<0.000000e+00> : vector<32xf32>
    %11 = vector.multi_reduction <add>, %10, %cst_7 [1] : vector<32x128xf32> to vector<32xf32>
    %12 = vector.shape_cast %11 : vector<32xf32> to vector<32x1xf32>
    %cst_8 = arith.constant 1.280000e+02 : f32
    %13 = vector.broadcast %cst_8 : f32 to vector<32x1xf32>
    %14 = arith.divf %12, %13 : vector<32x1xf32>
    %15 = vector.broadcast %7 : vector<32x1xf32> to vector<32x128xf32>
    %16 = arith.subf %1, %15 : vector<32x128xf32>
    %cst_9 = arith.constant 9.99999997E-7 : f32
    %17 = vector.broadcast %cst_9 : f32 to vector<32x1xf32>
    %18 = arith.addf %14, %17 : vector<32x1xf32>
    %19 = math.rsqrt %18 : vector<32x1xf32>
    %20 = vector.broadcast %19 : vector<32x1xf32> to vector<32x128xf32>
    %21 = arith.mulf %16, %20 : vector<32x128xf32>
    %22 = vector.broadcast %2 : vector<1x128xf32> to vector<32x128xf32>
    %23 = arith.mulf %21, %22 : vector<32x128xf32>
    %24 = vector.broadcast %3 : vector<1x128xf32> to vector<32x128xf32>
    %25 = arith.addf %23, %24 : vector<32x128xf32>
    %26 = arith.truncf %25 : vector<32x128xf32> to vector<32x128xbf16>
    %c0_10 = arith.constant 0 : index
    %c0_11 = arith.constant 0 : index
    %27 = vector.load %arg5[%c0_10, %c0_11] : memref<128x384xbf16, #tpu.memory_space<vmem>>, vector<128x384xbf16>
    %cst_12 = arith.constant dense<0.000000e+00> : vector<32x384xf32>
    %28 = tpu.matmul %26, %27, %cst_12 {dimension_numbers = #tpu.dot_dimension_numbers<[1], [0], [0], [1], [0, 0, 1, 1], [], []>} : vector<32x128xbf16>, vector<128x384xbf16>, vector<32x384xf32> -> vector<32x384xf32>
    %c0_13 = arith.constant 0 : index
    %c0_14 = arith.constant 0 : index
    %29 = vector.load %arg6[%c0_13, %c0_14] : memref<1x384xf32, #tpu.memory_space<vmem>>, vector<1x384xf32>
    %30 = vector.broadcast %29 : vector<1x384xf32> to vector<32x384xf32>
    %31 = arith.addf %28, %30 : vector<32x384xf32>
    %32 = arith.truncf %31 : vector<32x384xf32> to vector<32x384xbf16>
    %33 = vector.extract_strided_slice %32 {offsets = [0, 0], sizes = [32, 64], strides = [1, 1]} : vector<32x384xbf16> to vector<32x64xbf16>
    %c0_15 = arith.constant 0 : index
    %c0_16 = arith.constant 0 : index
    %c0_17 = arith.constant 0 : index
    %c0_18 = arith.constant 0 : index
    %34 = vector.load %arg7[%c0_15, %c0_16, %c0_17, %c0_18] : memref<1x2x32x64xbf16, #tpu.memory_space<vmem>>, vector<1x1x32x64xbf16>
    %35 = vector.shape_cast %34 : vector<1x1x32x64xbf16> to vector<32x64xbf16>
    %36 = vector.shape_cast %33 : vector<32x64xbf16> to vector<1x1x32x64xbf16>
    tpu.vector_store %arg7[%c0_15, %c0_16, %c0_17, %c0_18], %36 {strides = array<i32>} : memref<1x2x32x64xbf16, #tpu.memory_space<vmem>>, vector<1x1x32x64xbf16>,
    %37 = vector.extract_strided_slice %32 {offsets = [0, 128], sizes = [32, 64], strides = [1, 1]} : vector<32x384xbf16> to vector<32x64xbf16>
    %c0_19 = arith.constant 0 : index
    %c0_20 = arith.constant 0 : index
    %c0_21 = arith.constant 0 : index
    %c0_22 = arith.constant 0 : index
    %38 = vector.load %arg8[%c0_19, %c0_20, %c0_21, %c0_22] : memref<1x2x32x64xbf16, #tpu.memory_space<vmem>>, vector<1x1x32x64xbf16>
    %39 = vector.shape_cast %38 : vector<1x1x32x64xbf16> to vector<32x64xbf16>
    %40 = vector.shape_cast %37 : vector<32x64xbf16> to vector<1x1x32x64xbf16>
    tpu.vector_store %arg8[%c0_19, %c0_20, %c0_21, %c0_22], %40 {strides = array<i32>} : memref<1x2x32x64xbf16, #tpu.memory_space<vmem>>, vector<1x1x32x64xbf16>,
    %41 = vector.extract_strided_slice %32 {offsets = [0, 256], sizes = [32, 64], strides = [1, 1]} : vector<32x384xbf16> to vector<32x64xbf16>
    %c0_23 = arith.constant 0 : index
    %c0_24 = arith.constant 0 : index
    %c0_25 = arith.constant 0 : index
    %c0_26 = arith.constant 0 : index
    %42 = vector.load %arg9[%c0_23, %c0_24, %c0_25, %c0_26] : memref<1x2x32x64xbf16, #tpu.memory_space<vmem>>, vector<1x1x32x64xbf16>
    %43 = vector.shape_cast %42 : vector<1x1x32x64xbf16> to vector<32x64xbf16>
    %44 = vector.shape_cast %41 : vector<32x64xbf16> to vector<1x1x32x64xbf16>
    tpu.vector_store %arg9[%c0_23, %c0_24, %c0_25, %c0_26], %44 {strides = array<i32>} : memref<1x2x32x64xbf16, #tpu.memory_space<vmem>>, vector<1x1x32x64xbf16>,
    %45 = vector.extract_strided_slice %32 {offsets = [0, 64], sizes = [32, 64], strides = [1, 1]} : vector<32x384xbf16> to vector<32x64xbf16>
    %c0_27 = arith.constant 0 : index
    %c1 = arith.constant 1 : index
    %c0_28 = arith.constant 0 : index
    %c0_29 = arith.constant 0 : index
    %46 = vector.load %arg7[%c0_27, %c1, %c0_28, %c0_29] : memref<1x2x32x64xbf16, #tpu.memory_space<vmem>>, vector<1x1x32x64xbf16>
    %47 = vector.shape_cast %46 : vector<1x1x32x64xbf16> to vector<32x64xbf16>
    %48 = vector.shape_cast %45 : vector<32x64xbf16> to vector<1x1x32x64xbf16>
    tpu.vector_store %arg7[%c0_27, %c1, %c0_28, %c0_29], %48 {strides = array<i32>} : memref<1x2x32x64xbf16, #tpu.memory_space<vmem>>, vector<1x1x32x64xbf16>,
    %49 = vector.extract_strided_slice %32 {offsets = [0, 192], sizes = [32, 64], strides = [1, 1]} : vector<32x384xbf16> to vector<32x64xbf16>
    %c0_30 = arith.constant 0 : index
    %c1_31 = arith.constant 1 : index
    %c0_32 = arith.constant 0 : index
    %c0_33 = arith.constant 0 : index
    %50 = vector.load %arg8[%c0_30, %c1_31, %c0_32, %c0_33] : memref<1x2x32x64xbf16, #tpu.memory_space<vmem>>, vector<1x1x32x64xbf16>
    %51 = vector.shape_cast %50 : vector<1x1x32x64xbf16> to vector<32x64xbf16>
    %52 = vector.shape_cast %49 : vector<32x64xbf16> to vector<1x1x32x64xbf16>
    tpu.vector_store %arg8[%c0_30, %c1_31, %c0_32, %c0_33], %52 {strides = array<i32>} : memref<1x2x32x64xbf16, #tpu.memory_space<vmem>>, vector<1x1x32x64xbf16>,
    %53 = vector.extract_strided_slice %32 {offsets = [0, 320], sizes = [32, 64], strides = [1, 1]} : vector<32x384xbf16> to vector<32x64xbf16>
    %c0_34 = arith.constant 0 : index
    %c1_35 = arith.constant 1 : index
    %c0_36 = arith.constant 0 : index
    %c0_37 = arith.constant 0 : index
    %54 = vector.load %arg9[%c0_34, %c1_35, %c0_36, %c0_37] : memref<1x2x32x64xbf16, #tpu.memory_space<vmem>>, vector<1x1x32x64xbf16>
    %55 = vector.shape_cast %54 : vector<1x1x32x64xbf16> to vector<32x64xbf16>
    %56 = vector.shape_cast %53 : vector<32x64xbf16> to vector<1x1x32x64xbf16>
    tpu.vector_store %arg9[%c0_34, %c1_35, %c0_36, %c0_37], %56 {strides = array<i32>} : memref<1x2x32x64xbf16, #tpu.memory_space<vmem>>, vector<1x1x32x64xbf16>,
    return
  }
  func.func @transform_0(%arg0: i32, %arg1: i32) -> (i32, i32, i32) {
    %c0_i32 = arith.constant 0 : i32
    %c0_i32_0 = arith.constant 0 : i32
    return %arg0, %arg1, %c0_i32 : i32, i32, i32
  }
  func.func @transform_1(%arg0: i32, %arg1: i32) -> (i32, i32) {
    %c0_i32 = arith.constant 0 : i32
    %c0_i32_0 = arith.constant 0 : i32
    %c0_i32_1 = arith.constant 0 : i32
    return %c0_i32, %c0_i32_0 : i32, i32
  }
  func.func @transform_2(%arg0: i32, %arg1: i32) -> (i32, i32) {
    %c0_i32 = arith.constant 0 : i32
    %c0_i32_0 = arith.constant 0 : i32
    %c0_i32_1 = arith.constant 0 : i32
    return %c0_i32, %c0_i32_0 : i32, i32
  }
  func.func @transform_3(%arg0: i32, %arg1: i32) -> (i32, i32) {
    %c0_i32 = arith.constant 0 : i32
    %c0_i32_0 = arith.constant 0 : i32
    %c0_i32_1 = arith.constant 0 : i32
    return %c0_i32, %c0_i32_0 : i32, i32
  }
  func.func @transform_4(%arg0: i32, %arg1: i32) -> (i32, i32) {
    %c0_i32 = arith.constant 0 : i32
    %c0_i32_0 = arith.constant 0 : i32
    %c0_i32_1 = arith.constant 0 : i32
    return %c0_i32, %c0_i32_0 : i32, i32
  }
  func.func @transform_5(%arg0: i32, %arg1: i32) -> (i32, i32, i32, i32) {
    %c0_i32 = arith.constant 0 : i32
    %c0_i32_0 = arith.constant 0 : i32
    %c0_i32_1 = arith.constant 0 : i32
    return %arg0, %c0_i32, %arg1, %c0_i32_0 : i32, i32, i32, i32
  }
  func.func @transform_6(%arg0: i32, %arg1: i32) -> (i32, i32, i32, i32) {
    %c0_i32 = arith.constant 0 : i32
    %c0_i32_0 = arith.constant 0 : i32
    %c0_i32_1 = arith.constant 0 : i32
    return %arg0, %c0_i32, %arg1, %c0_i32_0 : i32, i32, i32, i32
  }
  func.func @transform_7(%arg0: i32, %arg1: i32) -> (i32, i32, i32, i32) {
    %c0_i32 = arith.constant 0 : i32
    %c0_i32_0 = arith.constant 0 : i32
    %c0_i32_1 = arith.constant 0 : i32
    return %arg0, %c0_i32, %arg1, %c0_i32_0 : i32, i32, i32, i32
  }
}

module attributes {stable_mosaic.version = 11 : i64} {
  func.func @_attn_kernel(%arg0: i32, %arg1: i32, %arg2: i32, %arg3: memref<1x32x128xf32, #tpu.memory_space<vmem>>, %arg4: memref<1x1x32x64xbf16, #tpu.memory_space<vmem>>, %arg5: memref<1x1x96x64xbf16, #tpu.memory_space<vmem>>, %arg6: memref<1x1x96x64xbf16, #tpu.memory_space<vmem>>, %arg7: memref<1x64x128xbf16, #tpu.memory_space<vmem>>, %arg8: memref<1x128xf32, #tpu.memory_space<vmem>>, %arg9: memref<1x32x128xf32, #tpu.memory_space<vmem>>, %arg10: memref<32x128xf32, #tpu.memory_space<vmem>>, %arg11: memref<32x64xbf16, #tpu.memory_space<vmem>>) attributes {dimension_semantics = [#tpu.dimension_semantics<parallel>, #tpu.dimension_semantics<parallel>, #tpu.dimension_semantics<arbitrary>], iteration_bounds = array<i64: 2, 3, 2>, scalar_prefetch = 0 : i64, scratch_operands = 2 : i64, tpu.core_type = #tpu.core_type<tc>, window_params = [{transform_indices = @transform_0, window_bounds = array<i64: 1, 32, 128>}, {transform_indices = @transform_1, window_bounds = array<i64: 1, 1, 32, 64>}, {transform_indices = @transform_2, window_bounds = array<i64: 1, 1, 96, 64>}, {transform_indices = @transform_3, window_bounds = array<i64: 1, 1, 96, 64>}, {transform_indices = @transform_4, window_bounds = array<i64: 1, 64, 128>}, {pipeline_mode = #tpu.pipeline_mode<synchronous>, transform_indices = @transform_5, window_bounds = array<i64: 1, 128>}, {transform_indices = @transform_6, window_bounds = array<i64: 1, 32, 128>}]} {
    %c0_i32 = arith.constant 0 : i32
    %0 = arith.cmpi eq, %arg2, %c0_i32 : i32
    %1 = arith.extui %0 : i1 to i32
    %c0_i32_0 = arith.constant 0 : i32
    %2 = arith.cmpi ne, %1, %c0_i32_0 : i32
    scf.if %2 {
      %c0_47 = arith.constant 0 : index
      %c0_48 = arith.constant 0 : index
      %c0_49 = arith.constant 0 : index
      %98 = vector.load %arg3[%c0_47, %c0_48, %c0_49] : memref<1x32x128xf32, #tpu.memory_space<vmem>>, vector<1x32x128xf32>
      %99 = vector.shape_cast %98 : vector<1x32x128xf32> to vector<32x128xf32>
      %c0_50 = arith.constant 0 : index
      %c0_51 = arith.constant 0 : index
      %100 = vector.load %arg8[%c0_50, %c0_51] : memref<1x128xf32, #tpu.memory_space<vmem>>, vector<1x128xf32>
      %101 = vector.broadcast %100 : vector<1x128xf32> to vector<32x128xf32>
      %102 = arith.addf %99, %101 : vector<32x128xf32>
      %c0_52 = arith.constant 0 : index
      %c0_53 = arith.constant 0 : index
      %103 = vector.load %arg10[%c0_52, %c0_53] : memref<32x128xf32, #tpu.memory_space<vmem>>, vector<32x128xf32>
      tpu.vector_store %arg10[%c0_52, %c0_53], %102 {strides = array<i32>} : memref<32x128xf32, #tpu.memory_space<vmem>>, vector<32x128xf32>,
    } else {
    }
    %c0 = arith.constant 0 : index
    %c0_1 = arith.constant 0 : index
    %c0_2 = arith.constant 0 : index
    %c0_3 = arith.constant 0 : index
    %3 = vector.load %arg4[%c0, %c0_1, %c0_2, %c0_3] : memref<1x1x32x64xbf16, #tpu.memory_space<vmem>>, vector<1x1x32x64xbf16>
    %4 = vector.shape_cast %3 : vector<1x1x32x64xbf16> to vector<32x64xbf16>
    %c0_4 = arith.constant 0 : index
    %c0_5 = arith.constant 0 : index
    %c0_6 = arith.constant 0 : index
    %c0_7 = arith.constant 0 : index
    %5 = vector.load %arg5[%c0_4, %c0_5, %c0_6, %c0_7] : memref<1x1x96x64xbf16, #tpu.memory_space<vmem>>, vector<1x1x96x64xbf16>
    %6 = vector.shape_cast %5 : vector<1x1x96x64xbf16> to vector<96x64xbf16>
    %c0_8 = arith.constant 0 : index
    %c0_9 = arith.constant 0 : index
    %c0_10 = arith.constant 0 : index
    %c0_11 = arith.constant 0 : index
    %7 = vector.load %arg6[%c0_8, %c0_9, %c0_10, %c0_11] : memref<1x1x96x64xbf16, #tpu.memory_space<vmem>>, vector<1x1x96x64xbf16>
    %8 = vector.shape_cast %7 : vector<1x1x96x64xbf16> to vector<96x64xbf16>
    %9 = tpu.iota {dimensions = array<i32: 1>} : vector<32x96xi32>
    %c81_i32 = arith.constant 81 : i32
    %10 = vector.broadcast %c81_i32 : i32 to vector<32x96xi32>
    %11 = arith.cmpi slt, %9, %10 : vector<32x96xi32>
    %12 = vector.extract_strided_slice %4 {offsets = [0, 0], sizes = [32, 16], strides = [1, 1]} : vector<32x64xbf16> to vector<32x16xbf16>
    %13 = vector.extract_strided_slice %6 {offsets = [0, 0], sizes = [96, 16], strides = [1, 1]} : vector<96x64xbf16> to vector<96x16xbf16>
    %cst = arith.constant dense<0.000000e+00> : vector<32x96xf32>
    %14 = tpu.matmul %12, %13, %cst {dimension_numbers = #tpu.dot_dimension_numbers<[1], [1], [0], [0], [0, 0, 1, 0], [], []>} : vector<32x16xbf16>, vector<96x16xbf16>, vector<32x96xf32> -> vector<32x96xf32>
    %cst_12 = arith.constant -1.000000e+30 : f32
    %15 = vector.broadcast %cst_12 : f32 to vector<32x96xf32>
    %16 = arith.select %11, %14, %15 : vector<32x96xi1>, vector<32x96xf32>
    %cst_13 = arith.constant dense<0xFF800000> : vector<32xf32>
    %17 = vector.multi_reduction <maximumf>, %16, %cst_13 [1] : vector<32x96xf32> to vector<32xf32>
    %18 = vector.shape_cast %17 : vector<32xf32> to vector<32x1xf32>
    %19 = vector.broadcast %18 : vector<32x1xf32> to vector<32x96xf32>
    %20 = arith.subf %16, %19 : vector<32x96xf32>
    %21 = math.exp %20 : vector<32x96xf32>
    %cst_14 = arith.constant dense<0.000000e+00> : vector<32xf32>
    %22 = vector.multi_reduction <add>, %21, %cst_14 [1] : vector<32x96xf32> to vector<32xf32>
    %23 = vector.shape_cast %22 : vector<32xf32> to vector<32x1xf32>
    %24 = vector.broadcast %23 : vector<32x1xf32> to vector<32x96xf32>
    %25 = arith.divf %21, %24 : vector<32x96xf32>
    %26 = arith.truncf %25 : vector<32x96xf32> to vector<32x96xbf16>
    %27 = vector.extract_strided_slice %8 {offsets = [0, 0], sizes = [96, 16], strides = [1, 1]} : vector<96x64xbf16> to vector<96x16xbf16>
    %cst_15 = arith.constant dense<0.000000e+00> : vector<32x16xf32>
    %28 = tpu.matmul %26, %27, %cst_15 {dimension_numbers = #tpu.dot_dimension_numbers<[1], [0], [0], [1], [0, 0, 1, 1], [], []>} : vector<32x96xbf16>, vector<96x16xbf16>, vector<32x16xf32> -> vector<32x16xf32>
    %29 = arith.truncf %28 : vector<32x16xf32> to vector<32x16xbf16>
    %c0_16 = arith.constant 0 : index
    %c0_17 = arith.constant 0 : index
    %30 = vector.load %arg11[%c0_16, %c0_17] : memref<32x64xbf16, #tpu.memory_space<vmem>>, vector<32x16xbf16>
    tpu.vector_store %arg11[%c0_16, %c0_17], %29 {strides = array<i32>} : memref<32x64xbf16, #tpu.memory_space<vmem>>, vector<32x16xbf16>,
    %31 = vector.extract_strided_slice %4 {offsets = [0, 16], sizes = [32, 16], strides = [1, 1]} : vector<32x64xbf16> to vector<32x16xbf16>
    %32 = vector.extract_strided_slice %6 {offsets = [0, 16], sizes = [96, 16], strides = [1, 1]} : vector<96x64xbf16> to vector<96x16xbf16>
    %cst_18 = arith.constant dense<0.000000e+00> : vector<32x96xf32>
    %33 = tpu.matmul %31, %32, %cst_18 {dimension_numbers = #tpu.dot_dimension_numbers<[1], [1], [0], [0], [0, 0, 1, 0], [], []>} : vector<32x16xbf16>, vector<96x16xbf16>, vector<32x96xf32> -> vector<32x96xf32>
    %cst_19 = arith.constant -1.000000e+30 : f32
    %34 = vector.broadcast %cst_19 : f32 to vector<32x96xf32>
    %35 = arith.select %11, %33, %34 : vector<32x96xi1>, vector<32x96xf32>
    %cst_20 = arith.constant dense<0xFF800000> : vector<32xf32>
    %36 = vector.multi_reduction <maximumf>, %35, %cst_20 [1] : vector<32x96xf32> to vector<32xf32>
    %37 = vector.shape_cast %36 : vector<32xf32> to vector<32x1xf32>
    %38 = vector.broadcast %37 : vector<32x1xf32> to vector<32x96xf32>
    %39 = arith.subf %35, %38 : vector<32x96xf32>
    %40 = math.exp %39 : vector<32x96xf32>
    %cst_21 = arith.constant dense<0.000000e+00> : vector<32xf32>
    %41 = vector.multi_reduction <add>, %40, %cst_21 [1] : vector<32x96xf32> to vector<32xf32>
    %42 = vector.shape_cast %41 : vector<32xf32> to vector<32x1xf32>
    %43 = vector.broadcast %42 : vector<32x1xf32> to vector<32x96xf32>
    %44 = arith.divf %40, %43 : vector<32x96xf32>
    %45 = arith.truncf %44 : vector<32x96xf32> to vector<32x96xbf16>
    %46 = vector.extract_strided_slice %8 {offsets = [0, 16], sizes = [96, 16], strides = [1, 1]} : vector<96x64xbf16> to vector<96x16xbf16>
    %cst_22 = arith.constant dense<0.000000e+00> : vector<32x16xf32>
    %47 = tpu.matmul %45, %46, %cst_22 {dimension_numbers = #tpu.dot_dimension_numbers<[1], [0], [0], [1], [0, 0, 1, 1], [], []>} : vector<32x96xbf16>, vector<96x16xbf16>, vector<32x16xf32> -> vector<32x16xf32>
    %48 = arith.truncf %47 : vector<32x16xf32> to vector<32x16xbf16>
    %c0_23 = arith.constant 0 : index
    %c16 = arith.constant 16 : index
    %49 = vector.load %arg11[%c0_23, %c16] : memref<32x64xbf16, #tpu.memory_space<vmem>>, vector<32x16xbf16>
    tpu.vector_store %arg11[%c0_23, %c16], %48 {strides = array<i32>} : memref<32x64xbf16, #tpu.memory_space<vmem>>, vector<32x16xbf16>,
    %50 = vector.extract_strided_slice %4 {offsets = [0, 32], sizes = [32, 16], strides = [1, 1]} : vector<32x64xbf16> to vector<32x16xbf16>
    %51 = vector.extract_strided_slice %6 {offsets = [0, 32], sizes = [96, 16], strides = [1, 1]} : vector<96x64xbf16> to vector<96x16xbf16>
    %cst_24 = arith.constant dense<0.000000e+00> : vector<32x96xf32>
    %52 = tpu.matmul %50, %51, %cst_24 {dimension_numbers = #tpu.dot_dimension_numbers<[1], [1], [0], [0], [0, 0, 1, 0], [], []>} : vector<32x16xbf16>, vector<96x16xbf16>, vector<32x96xf32> -> vector<32x96xf32>
    %cst_25 = arith.constant -1.000000e+30 : f32
    %53 = vector.broadcast %cst_25 : f32 to vector<32x96xf32>
    %54 = arith.select %11, %52, %53 : vector<32x96xi1>, vector<32x96xf32>
    %cst_26 = arith.constant dense<0xFF800000> : vector<32xf32>
    %55 = vector.multi_reduction <maximumf>, %54, %cst_26 [1] : vector<32x96xf32> to vector<32xf32>
    %56 = vector.shape_cast %55 : vector<32xf32> to vector<32x1xf32>
    %57 = vector.broadcast %56 : vector<32x1xf32> to vector<32x96xf32>
    %58 = arith.subf %54, %57 : vector<32x96xf32>
    %59 = math.exp %58 : vector<32x96xf32>
    %cst_27 = arith.constant dense<0.000000e+00> : vector<32xf32>
    %60 = vector.multi_reduction <add>, %59, %cst_27 [1] : vector<32x96xf32> to vector<32xf32>
    %61 = vector.shape_cast %60 : vector<32xf32> to vector<32x1xf32>
    %62 = vector.broadcast %61 : vector<32x1xf32> to vector<32x96xf32>
    %63 = arith.divf %59, %62 : vector<32x96xf32>
    %64 = arith.truncf %63 : vector<32x96xf32> to vector<32x96xbf16>
    %65 = vector.extract_strided_slice %8 {offsets = [0, 32], sizes = [96, 16], strides = [1, 1]} : vector<96x64xbf16> to vector<96x16xbf16>
    %cst_28 = arith.constant dense<0.000000e+00> : vector<32x16xf32>
    %66 = tpu.matmul %64, %65, %cst_28 {dimension_numbers = #tpu.dot_dimension_numbers<[1], [0], [0], [1], [0, 0, 1, 1], [], []>} : vector<32x96xbf16>, vector<96x16xbf16>, vector<32x16xf32> -> vector<32x16xf32>
    %67 = arith.truncf %66 : vector<32x16xf32> to vector<32x16xbf16>
    %c0_29 = arith.constant 0 : index
    %c32 = arith.constant 32 : index
    %68 = vector.load %arg11[%c0_29, %c32] : memref<32x64xbf16, #tpu.memory_space<vmem>>, vector<32x16xbf16>
    tpu.vector_store %arg11[%c0_29, %c32], %67 {strides = array<i32>} : memref<32x64xbf16, #tpu.memory_space<vmem>>, vector<32x16xbf16>,
    %69 = vector.extract_strided_slice %4 {offsets = [0, 48], sizes = [32, 16], strides = [1, 1]} : vector<32x64xbf16> to vector<32x16xbf16>
    %70 = vector.extract_strided_slice %6 {offsets = [0, 48], sizes = [96, 16], strides = [1, 1]} : vector<96x64xbf16> to vector<96x16xbf16>
    %cst_30 = arith.constant dense<0.000000e+00> : vector<32x96xf32>
    %71 = tpu.matmul %69, %70, %cst_30 {dimension_numbers = #tpu.dot_dimension_numbers<[1], [1], [0], [0], [0, 0, 1, 0], [], []>} : vector<32x16xbf16>, vector<96x16xbf16>, vector<32x96xf32> -> vector<32x96xf32>
    %cst_31 = arith.constant -1.000000e+30 : f32
    %72 = vector.broadcast %cst_31 : f32 to vector<32x96xf32>
    %73 = arith.select %11, %71, %72 : vector<32x96xi1>, vector<32x96xf32>
    %cst_32 = arith.constant dense<0xFF800000> : vector<32xf32>
    %74 = vector.multi_reduction <maximumf>, %73, %cst_32 [1] : vector<32x96xf32> to vector<32xf32>
    %75 = vector.shape_cast %74 : vector<32xf32> to vector<32x1xf32>
    %76 = vector.broadcast %75 : vector<32x1xf32> to vector<32x96xf32>
    %77 = arith.subf %73, %76 : vector<32x96xf32>
    %78 = math.exp %77 : vector<32x96xf32>
    %cst_33 = arith.constant dense<0.000000e+00> : vector<32xf32>
    %79 = vector.multi_reduction <add>, %78, %cst_33 [1] : vector<32x96xf32> to vector<32xf32>
    %80 = vector.shape_cast %79 : vector<32xf32> to vector<32x1xf32>
    %81 = vector.broadcast %80 : vector<32x1xf32> to vector<32x96xf32>
    %82 = arith.divf %78, %81 : vector<32x96xf32>
    %83 = arith.truncf %82 : vector<32x96xf32> to vector<32x96xbf16>
    %84 = vector.extract_strided_slice %8 {offsets = [0, 48], sizes = [96, 16], strides = [1, 1]} : vector<96x64xbf16> to vector<96x16xbf16>
    %cst_34 = arith.constant dense<0.000000e+00> : vector<32x16xf32>
    %85 = tpu.matmul %83, %84, %cst_34 {dimension_numbers = #tpu.dot_dimension_numbers<[1], [0], [0], [1], [0, 0, 1, 1], [], []>} : vector<32x96xbf16>, vector<96x16xbf16>, vector<32x16xf32> -> vector<32x16xf32>
    %86 = arith.truncf %85 : vector<32x16xf32> to vector<32x16xbf16>
    %c0_35 = arith.constant 0 : index
    %c48 = arith.constant 48 : index
    %87 = vector.load %arg11[%c0_35, %c48] : memref<32x64xbf16, #tpu.memory_space<vmem>>, vector<32x16xbf16>
    tpu.vector_store %arg11[%c0_35, %c48], %86 {strides = array<i32>} : memref<32x64xbf16, #tpu.memory_space<vmem>>, vector<32x16xbf16>,
    %c0_36 = arith.constant 0 : index
    %c0_37 = arith.constant 0 : index
    %88 = vector.load %arg10[%c0_36, %c0_37] : memref<32x128xf32, #tpu.memory_space<vmem>>, vector<32x128xf32>
    %c0_38 = arith.constant 0 : index
    %c0_39 = arith.constant 0 : index
    %89 = vector.load %arg11[%c0_38, %c0_39] : memref<32x64xbf16, #tpu.memory_space<vmem>>, vector<32x64xbf16>
    %c0_40 = arith.constant 0 : index
    %c0_41 = arith.constant 0 : index
    %c0_42 = arith.constant 0 : index
    %90 = vector.load %arg7[%c0_40, %c0_41, %c0_42] : memref<1x64x128xbf16, #tpu.memory_space<vmem>>, vector<1x64x128xbf16>
    %91 = vector.shape_cast %90 : vector<1x64x128xbf16> to vector<64x128xbf16>
    %cst_43 = arith.constant dense<0.000000e+00> : vector<32x128xf32>
    %92 = tpu.matmul %89, %91, %cst_43 {dimension_numbers = #tpu.dot_dimension_numbers<[1], [0], [0], [1], [0, 0, 1, 1], [], []>} : vector<32x64xbf16>, vector<64x128xbf16>, vector<32x128xf32> -> vector<32x128xf32>
    %93 = arith.addf %88, %92 : vector<32x128xf32>
    %c0_44 = arith.constant 0 : index
    %c0_45 = arith.constant 0 : index
    %94 = vector.load %arg10[%c0_44, %c0_45] : memref<32x128xf32, #tpu.memory_space<vmem>>, vector<32x128xf32>
    tpu.vector_store %arg10[%c0_44, %c0_45], %93 {strides = array<i32>} : memref<32x128xf32, #tpu.memory_space<vmem>>, vector<32x128xf32>,
    %c1_i32 = arith.constant 1 : i32
    %95 = arith.cmpi eq, %arg2, %c1_i32 : i32
    %96 = arith.extui %95 : i1 to i32
    %c0_i32_46 = arith.constant 0 : i32
    %97 = arith.cmpi ne, %96, %c0_i32_46 : i32
    scf.if %97 {
      %c0_47 = arith.constant 0 : index
      %c0_48 = arith.constant 0 : index
      %98 = vector.load %arg10[%c0_47, %c0_48] : memref<32x128xf32, #tpu.memory_space<vmem>>, vector<32x128xf32>
      %c0_49 = arith.constant 0 : index
      %c0_50 = arith.constant 0 : index
      %c0_51 = arith.constant 0 : index
      %99 = vector.load %arg9[%c0_49, %c0_50, %c0_51] : memref<1x32x128xf32, #tpu.memory_space<vmem>>, vector<1x32x128xf32>
      %100 = vector.shape_cast %99 : vector<1x32x128xf32> to vector<32x128xf32>
      %101 = vector.shape_cast %98 : vector<32x128xf32> to vector<1x32x128xf32>
      tpu.vector_store %arg9[%c0_49, %c0_50, %c0_51], %101 {strides = array<i32>} : memref<1x32x128xf32, #tpu.memory_space<vmem>>, vector<1x32x128xf32>,
    } else {
    }
    return
  }
  func.func @transform_0(%arg0: i32, %arg1: i32, %arg2: i32) -> (i32, i32, i32) {
    %c0_i32 = arith.constant 0 : i32
    %c0_i32_0 = arith.constant 0 : i32
    return %arg0, %arg1, %c0_i32 : i32, i32, i32
  }
  func.func @transform_1(%arg0: i32, %arg1: i32, %arg2: i32) -> (i32, i32, i32, i32) {
    %c0_i32 = arith.constant 0 : i32
    %c0_i32_0 = arith.constant 0 : i32
    return %arg0, %arg2, %arg1, %c0_i32 : i32, i32, i32, i32
  }
  func.func @transform_2(%arg0: i32, %arg1: i32, %arg2: i32) -> (i32, i32, i32, i32) {
    %c0_i32 = arith.constant 0 : i32
    %c0_i32_0 = arith.constant 0 : i32
    %c0_i32_1 = arith.constant 0 : i32
    return %arg0, %arg2, %c0_i32, %c0_i32_0 : i32, i32, i32, i32
  }
  func.func @transform_3(%arg0: i32, %arg1: i32, %arg2: i32) -> (i32, i32, i32, i32) {
    %c0_i32 = arith.constant 0 : i32
    %c0_i32_0 = arith.constant 0 : i32
    %c0_i32_1 = arith.constant 0 : i32
    return %arg0, %arg2, %c0_i32, %c0_i32_0 : i32, i32, i32, i32
  }
  func.func @transform_4(%arg0: i32, %arg1: i32, %arg2: i32) -> (i32, i32, i32) {
    %c0_i32 = arith.constant 0 : i32
    %c0_i32_0 = arith.constant 0 : i32
    %c0_i32_1 = arith.constant 0 : i32
    return %arg2, %c0_i32, %c0_i32_0 : i32, i32, i32
  }
  func.func @transform_5(%arg0: i32, %arg1: i32, %arg2: i32) -> (i32, i32) {
    %c0_i32 = arith.constant 0 : i32
    %c0_i32_0 = arith.constant 0 : i32
    %c0_i32_1 = arith.constant 0 : i32
    return %c0_i32, %c0_i32_0 : i32, i32
  }
  func.func @transform_6(%arg0: i32, %arg1: i32, %arg2: i32) -> (i32, i32, i32) {
    %c0_i32 = arith.constant 0 : i32
    %c0_i32_0 = arith.constant 0 : i32
    return %arg0, %arg1, %c0_i32 : i32, i32, i32
  }
}

module attributes {stable_mosaic.version = 11 : i64} {
  func.func @_post_ln_kernel(%arg0: i32, %arg1: i32, %arg2: memref<1x32x128xf32, #tpu.memory_space<vmem>>, %arg3: memref<1x128xf32, #tpu.memory_space<vmem>>, %arg4: memref<1x128xf32, #tpu.memory_space<vmem>>, %arg5: memref<1x32x128xf32, #tpu.memory_space<vmem>>) attributes {dimension_semantics = [#tpu.dimension_semantics<parallel>, #tpu.dimension_semantics<parallel>], iteration_bounds = array<i64: 2, 3>, scalar_prefetch = 0 : i64, scratch_operands = 0 : i64, tpu.core_type = #tpu.core_type<tc>, window_params = [{transform_indices = @transform_0, window_bounds = array<i64: 1, 32, 128>}, {pipeline_mode = #tpu.pipeline_mode<synchronous>, transform_indices = @transform_1, window_bounds = array<i64: 1, 128>}, {pipeline_mode = #tpu.pipeline_mode<synchronous>, transform_indices = @transform_2, window_bounds = array<i64: 1, 128>}, {transform_indices = @transform_3, window_bounds = array<i64: 1, 32, 128>}]} {
    %c0 = arith.constant 0 : index
    %c0_0 = arith.constant 0 : index
    %c0_1 = arith.constant 0 : index
    %0 = vector.load %arg2[%c0, %c0_0, %c0_1] : memref<1x32x128xf32, #tpu.memory_space<vmem>>, vector<1x32x128xf32>
    %1 = vector.shape_cast %0 : vector<1x32x128xf32> to vector<32x128xf32>
    %c0_2 = arith.constant 0 : index
    %c0_3 = arith.constant 0 : index
    %2 = vector.load %arg3[%c0_2, %c0_3] : memref<1x128xf32, #tpu.memory_space<vmem>>, vector<1x128xf32>
    %c0_4 = arith.constant 0 : index
    %c0_5 = arith.constant 0 : index
    %3 = vector.load %arg4[%c0_4, %c0_5] : memref<1x128xf32, #tpu.memory_space<vmem>>, vector<1x128xf32>
    %cst = arith.constant dense<0.000000e+00> : vector<32xf32>
    %4 = vector.multi_reduction <add>, %1, %cst [1] : vector<32x128xf32> to vector<32xf32>
    %5 = vector.shape_cast %4 : vector<32xf32> to vector<32x1xf32>
    %cst_6 = arith.constant 1.280000e+02 : f32
    %6 = vector.broadcast %cst_6 : f32 to vector<32x1xf32>
    %7 = arith.divf %5, %6 : vector<32x1xf32>
    %8 = vector.broadcast %7 : vector<32x1xf32> to vector<32x128xf32>
    %9 = arith.subf %1, %8 : vector<32x128xf32>
    %10 = arith.mulf %9, %9 : vector<32x128xf32>
    %cst_7 = arith.constant dense<0.000000e+00> : vector<32xf32>
    %11 = vector.multi_reduction <add>, %10, %cst_7 [1] : vector<32x128xf32> to vector<32xf32>
    %12 = vector.shape_cast %11 : vector<32xf32> to vector<32x1xf32>
    %cst_8 = arith.constant 1.280000e+02 : f32
    %13 = vector.broadcast %cst_8 : f32 to vector<32x1xf32>
    %14 = arith.divf %12, %13 : vector<32x1xf32>
    %15 = vector.broadcast %7 : vector<32x1xf32> to vector<32x128xf32>
    %16 = arith.subf %1, %15 : vector<32x128xf32>
    %cst_9 = arith.constant 9.99999997E-7 : f32
    %17 = vector.broadcast %cst_9 : f32 to vector<32x1xf32>
    %18 = arith.addf %14, %17 : vector<32x1xf32>
    %19 = math.rsqrt %18 : vector<32x1xf32>
    %20 = vector.broadcast %19 : vector<32x1xf32> to vector<32x128xf32>
    %21 = arith.mulf %16, %20 : vector<32x128xf32>
    %22 = vector.broadcast %2 : vector<1x128xf32> to vector<32x128xf32>
    %23 = arith.mulf %21, %22 : vector<32x128xf32>
    %24 = vector.broadcast %3 : vector<1x128xf32> to vector<32x128xf32>
    %25 = arith.addf %23, %24 : vector<32x128xf32>
    %c0_10 = arith.constant 0 : index
    %c0_11 = arith.constant 0 : index
    %c0_12 = arith.constant 0 : index
    %26 = vector.load %arg5[%c0_10, %c0_11, %c0_12] : memref<1x32x128xf32, #tpu.memory_space<vmem>>, vector<1x32x128xf32>
    %27 = vector.shape_cast %26 : vector<1x32x128xf32> to vector<32x128xf32>
    %28 = vector.shape_cast %25 : vector<32x128xf32> to vector<1x32x128xf32>
    tpu.vector_store %arg5[%c0_10, %c0_11, %c0_12], %28 {strides = array<i32>} : memref<1x32x128xf32, #tpu.memory_space<vmem>>, vector<1x32x128xf32>,
    return
  }
  func.func @transform_0(%arg0: i32, %arg1: i32) -> (i32, i32, i32) {
    %c0_i32 = arith.constant 0 : i32
    %c0_i32_0 = arith.constant 0 : i32
    return %arg0, %arg1, %c0_i32 : i32, i32, i32
  }
  func.func @transform_1(%arg0: i32, %arg1: i32) -> (i32, i32) {
    %c0_i32 = arith.constant 0 : i32
    %c0_i32_0 = arith.constant 0 : i32
    %c0_i32_1 = arith.constant 0 : i32
    return %c0_i32, %c0_i32_0 : i32, i32
  }
  func.func @transform_2(%arg0: i32, %arg1: i32) -> (i32, i32) {
    %c0_i32 = arith.constant 0 : i32
    %c0_i32_0 = arith.constant 0 : i32
    %c0_i32_1 = arith.constant 0 : i32
    return %c0_i32, %c0_i32_0 : i32, i32
  }
  func.func @transform_3(%arg0: i32, %arg1: i32) -> (i32, i32, i32) {
    %c0_i32 = arith.constant 0 : i32
    %c0_i32_0 = arith.constant 0 : i32
    return %arg0, %arg1, %c0_i32 : i32, i32, i32
  }
}

module attributes {stable_mosaic.version = 11 : i64} {
  func.func @_mlp_kernel(%arg0: i32, %arg1: i32, %arg2: i32, %arg3: memref<1x32x128xf32, #tpu.memory_space<vmem>>, %arg4: memref<1x128xf32, #tpu.memory_space<vmem>>, %arg5: memref<1x128xf32, #tpu.memory_space<vmem>>, %arg6: memref<128x128xbf16, #tpu.memory_space<vmem>>, %arg7: memref<1x128xf32, #tpu.memory_space<vmem>>, %arg8: memref<128x128xbf16, #tpu.memory_space<vmem>>, %arg9: memref<1x128xf32, #tpu.memory_space<vmem>>, %arg10: memref<1x32x128xf32, #tpu.memory_space<vmem>>, %arg11: memref<32x128xf32, #tpu.memory_space<vmem>>, %arg12: memref<32x128xbf16, #tpu.memory_space<vmem>>) attributes {dimension_semantics = [#tpu.dimension_semantics<parallel>, #tpu.dimension_semantics<parallel>, #tpu.dimension_semantics<arbitrary>], iteration_bounds = array<i64: 2, 3, 2>, scalar_prefetch = 0 : i64, scratch_operands = 2 : i64, tpu.core_type = #tpu.core_type<tc>, window_params = [{transform_indices = @transform_0, window_bounds = array<i64: 1, 32, 128>}, {pipeline_mode = #tpu.pipeline_mode<synchronous>, transform_indices = @transform_1, window_bounds = array<i64: 1, 128>}, {pipeline_mode = #tpu.pipeline_mode<synchronous>, transform_indices = @transform_2, window_bounds = array<i64: 1, 128>}, {transform_indices = @transform_3, window_bounds = array<i64: 128, 128>}, {transform_indices = @transform_4, window_bounds = array<i64: 1, 128>}, {transform_indices = @transform_5, window_bounds = array<i64: 128, 128>}, {pipeline_mode = #tpu.pipeline_mode<synchronous>, transform_indices = @transform_6, window_bounds = array<i64: 1, 128>}, {transform_indices = @transform_7, window_bounds = array<i64: 1, 32, 128>}]} {
    %c0_i32 = arith.constant 0 : i32
    %0 = arith.cmpi eq, %arg2, %c0_i32 : i32
    %1 = arith.extui %0 : i1 to i32
    %c0_i32_0 = arith.constant 0 : i32
    %2 = arith.cmpi ne, %1, %c0_i32_0 : i32
    scf.if %2 {
      %c0_18 = arith.constant 0 : index
      %c0_19 = arith.constant 0 : index
      %c0_20 = arith.constant 0 : index
      %31 = vector.load %arg3[%c0_18, %c0_19, %c0_20] : memref<1x32x128xf32, #tpu.memory_space<vmem>>, vector<1x32x128xf32>
      %32 = vector.shape_cast %31 : vector<1x32x128xf32> to vector<32x128xf32>
      %c0_21 = arith.constant 0 : index
      %c0_22 = arith.constant 0 : index
      %33 = vector.load %arg4[%c0_21, %c0_22] : memref<1x128xf32, #tpu.memory_space<vmem>>, vector<1x128xf32>
      %c0_23 = arith.constant 0 : index
      %c0_24 = arith.constant 0 : index
      %34 = vector.load %arg5[%c0_23, %c0_24] : memref<1x128xf32, #tpu.memory_space<vmem>>, vector<1x128xf32>
      %cst_25 = arith.constant dense<0.000000e+00> : vector<32xf32>
      %35 = vector.multi_reduction <add>, %32, %cst_25 [1] : vector<32x128xf32> to vector<32xf32>
      %36 = vector.shape_cast %35 : vector<32xf32> to vector<32x1xf32>
      %cst_26 = arith.constant 1.280000e+02 : f32
      %37 = vector.broadcast %cst_26 : f32 to vector<32x1xf32>
      %38 = arith.divf %36, %37 : vector<32x1xf32>
      %39 = vector.broadcast %38 : vector<32x1xf32> to vector<32x128xf32>
      %40 = arith.subf %32, %39 : vector<32x128xf32>
      %41 = arith.mulf %40, %40 : vector<32x128xf32>
      %cst_27 = arith.constant dense<0.000000e+00> : vector<32xf32>
      %42 = vector.multi_reduction <add>, %41, %cst_27 [1] : vector<32x128xf32> to vector<32xf32>
      %43 = vector.shape_cast %42 : vector<32xf32> to vector<32x1xf32>
      %cst_28 = arith.constant 1.280000e+02 : f32
      %44 = vector.broadcast %cst_28 : f32 to vector<32x1xf32>
      %45 = arith.divf %43, %44 : vector<32x1xf32>
      %46 = vector.broadcast %38 : vector<32x1xf32> to vector<32x128xf32>
      %47 = arith.subf %32, %46 : vector<32x128xf32>
      %cst_29 = arith.constant 9.99999997E-7 : f32
      %48 = vector.broadcast %cst_29 : f32 to vector<32x1xf32>
      %49 = arith.addf %45, %48 : vector<32x1xf32>
      %50 = math.rsqrt %49 : vector<32x1xf32>
      %51 = vector.broadcast %50 : vector<32x1xf32> to vector<32x128xf32>
      %52 = arith.mulf %47, %51 : vector<32x128xf32>
      %53 = vector.broadcast %33 : vector<1x128xf32> to vector<32x128xf32>
      %54 = arith.mulf %52, %53 : vector<32x128xf32>
      %55 = vector.broadcast %34 : vector<1x128xf32> to vector<32x128xf32>
      %56 = arith.addf %54, %55 : vector<32x128xf32>
      %57 = arith.truncf %56 : vector<32x128xf32> to vector<32x128xbf16>
      %c0_30 = arith.constant 0 : index
      %c0_31 = arith.constant 0 : index
      %58 = vector.load %arg12[%c0_30, %c0_31] : memref<32x128xbf16, #tpu.memory_space<vmem>>, vector<32x128xbf16>
      tpu.vector_store %arg12[%c0_30, %c0_31], %57 {strides = array<i32>} : memref<32x128xbf16, #tpu.memory_space<vmem>>, vector<32x128xbf16>,
      %c0_32 = arith.constant 0 : index
      %c0_33 = arith.constant 0 : index
      %59 = vector.load %arg9[%c0_32, %c0_33] : memref<1x128xf32, #tpu.memory_space<vmem>>, vector<1x128xf32>
      %60 = vector.broadcast %59 : vector<1x128xf32> to vector<32x128xf32>
      %61 = arith.addf %32, %60 : vector<32x128xf32>
      %c0_34 = arith.constant 0 : index
      %c0_35 = arith.constant 0 : index
      %62 = vector.load %arg11[%c0_34, %c0_35] : memref<32x128xf32, #tpu.memory_space<vmem>>, vector<32x128xf32>
      tpu.vector_store %arg11[%c0_34, %c0_35], %61 {strides = array<i32>} : memref<32x128xf32, #tpu.memory_space<vmem>>, vector<32x128xf32>,
    } else {
    }
    %c0 = arith.constant 0 : index
    %c0_1 = arith.constant 0 : index
    %3 = vector.load %arg12[%c0, %c0_1] : memref<32x128xbf16, #tpu.memory_space<vmem>>, vector<32x128xbf16>
    %c0_2 = arith.constant 0 : index
    %c0_3 = arith.constant 0 : index
    %4 = vector.load %arg6[%c0_2, %c0_3] : memref<128x128xbf16, #tpu.memory_space<vmem>>, vector<128x128xbf16>
    %cst = arith.constant dense<0.000000e+00> : vector<32x128xf32>
    %5 = tpu.matmul %3, %4, %cst {dimension_numbers = #tpu.dot_dimension_numbers<[1], [0], [0], [1], [0, 0, 1, 1], [], []>} : vector<32x128xbf16>, vector<128x128xbf16>, vector<32x128xf32> -> vector<32x128xf32>
    %c0_4 = arith.constant 0 : index
    %c0_5 = arith.constant 0 : index
    %6 = vector.load %arg7[%c0_4, %c0_5] : memref<1x128xf32, #tpu.memory_space<vmem>>, vector<1x128xf32>
    %7 = vector.broadcast %6 : vector<1x128xf32> to vector<32x128xf32>
    %8 = arith.addf %5, %7 : vector<32x128xf32>
    %9 = arith.truncf %8 : vector<32x128xf32> to vector<32x128xbf16>
    %cst_6 = arith.constant 5.000000e-01 : bf16
    %10 = vector.broadcast %cst_6 : bf16 to vector<32x128xbf16>
    %11 = arith.mulf %10, %9 : vector<32x128xbf16>
    %cst_7 = arith.constant 4.467770e-02 : bf16
    %12 = vector.broadcast %cst_7 : bf16 to vector<32x128xbf16>
    %13 = arith.mulf %12, %9 : vector<32x128xbf16>
    %14 = arith.mulf %13, %9 : vector<32x128xbf16>
    %15 = arith.mulf %14, %9 : vector<32x128xbf16>
    %16 = arith.addf %9, %15 : vector<32x128xbf16>
    %cst_8 = arith.constant 7.968750e-01 : bf16
    %17 = vector.broadcast %cst_8 : bf16 to vector<32x128xbf16>
    %18 = arith.mulf %17, %16 : vector<32x128xbf16>
    %19 = math.tanh %18 : vector<32x128xbf16>
    %cst_9 = arith.constant 1.000000e+00 : bf16
    %20 = vector.broadcast %cst_9 : bf16 to vector<32x128xbf16>
    %21 = arith.addf %20, %19 : vector<32x128xbf16>
    %22 = arith.mulf %11, %21 : vector<32x128xbf16>
    %c0_10 = arith.constant 0 : index
    %c0_11 = arith.constant 0 : index
    %23 = vector.load %arg11[%c0_10, %c0_11] : memref<32x128xf32, #tpu.memory_space<vmem>>, vector<32x128xf32>
    %c0_12 = arith.constant 0 : index
    %c0_13 = arith.constant 0 : index
    %24 = vector.load %arg8[%c0_12, %c0_13] : memref<128x128xbf16, #tpu.memory_space<vmem>>, vector<128x128xbf16>
    %cst_14 = arith.constant dense<0.000000e+00> : vector<32x128xf32>
    %25 = tpu.matmul %22, %24, %cst_14 {dimension_numbers = #tpu.dot_dimension_numbers<[1], [0], [0], [1], [0, 0, 1, 1], [], []>} : vector<32x128xbf16>, vector<128x128xbf16>, vector<32x128xf32> -> vector<32x128xf32>
    %26 = arith.addf %23, %25 : vector<32x128xf32>
    %c0_15 = arith.constant 0 : index
    %c0_16 = arith.constant 0 : index
    %27 = vector.load %arg11[%c0_15, %c0_16] : memref<32x128xf32, #tpu.memory_space<vmem>>, vector<32x128xf32>
    tpu.vector_store %arg11[%c0_15, %c0_16], %26 {strides = array<i32>} : memref<32x128xf32, #tpu.memory_space<vmem>>, vector<32x128xf32>,
    %c1_i32 = arith.constant 1 : i32
    %28 = arith.cmpi eq, %arg2, %c1_i32 : i32
    %29 = arith.extui %28 : i1 to i32
    %c0_i32_17 = arith.constant 0 : i32
    %30 = arith.cmpi ne, %29, %c0_i32_17 : i32
    scf.if %30 {
      %c0_18 = arith.constant 0 : index
      %c0_19 = arith.constant 0 : index
      %31 = vector.load %arg11[%c0_18, %c0_19] : memref<32x128xf32, #tpu.memory_space<vmem>>, vector<32x128xf32>
      %c0_20 = arith.constant 0 : index
      %c0_21 = arith.constant 0 : index
      %c0_22 = arith.constant 0 : index
      %32 = vector.load %arg10[%c0_20, %c0_21, %c0_22] : memref<1x32x128xf32, #tpu.memory_space<vmem>>, vector<1x32x128xf32>
      %33 = vector.shape_cast %32 : vector<1x32x128xf32> to vector<32x128xf32>
      %34 = vector.shape_cast %31 : vector<32x128xf32> to vector<1x32x128xf32>
      tpu.vector_store %arg10[%c0_20, %c0_21, %c0_22], %34 {strides = array<i32>} : memref<1x32x128xf32, #tpu.memory_space<vmem>>, vector<1x32x128xf32>,
    } else {
    }
    return
  }
  func.func @transform_0(%arg0: i32, %arg1: i32, %arg2: i32) -> (i32, i32, i32) {
    %c0_i32 = arith.constant 0 : i32
    %c0_i32_0 = arith.constant 0 : i32
    return %arg0, %arg1, %c0_i32 : i32, i32, i32
  }
  func.func @transform_1(%arg0: i32, %arg1: i32, %arg2: i32) -> (i32, i32) {
    %c0_i32 = arith.constant 0 : i32
    %c0_i32_0 = arith.constant 0 : i32
    %c0_i32_1 = arith.constant 0 : i32
    return %c0_i32, %c0_i32_0 : i32, i32
  }
  func.func @transform_2(%arg0: i32, %arg1: i32, %arg2: i32) -> (i32, i32) {
    %c0_i32 = arith.constant 0 : i32
    %c0_i32_0 = arith.constant 0 : i32
    %c0_i32_1 = arith.constant 0 : i32
    return %c0_i32, %c0_i32_0 : i32, i32
  }
  func.func @transform_3(%arg0: i32, %arg1: i32, %arg2: i32) -> (i32, i32) {
    %c0_i32 = arith.constant 0 : i32
    %c0_i32_0 = arith.constant 0 : i32
    return %c0_i32, %arg2 : i32, i32
  }
  func.func @transform_4(%arg0: i32, %arg1: i32, %arg2: i32) -> (i32, i32) {
    %c0_i32 = arith.constant 0 : i32
    %c0_i32_0 = arith.constant 0 : i32
    return %c0_i32, %arg2 : i32, i32
  }
  func.func @transform_5(%arg0: i32, %arg1: i32, %arg2: i32) -> (i32, i32) {
    %c0_i32 = arith.constant 0 : i32
    %c0_i32_0 = arith.constant 0 : i32
    return %arg2, %c0_i32 : i32, i32
  }
  func.func @transform_6(%arg0: i32, %arg1: i32, %arg2: i32) -> (i32, i32) {
    %c0_i32 = arith.constant 0 : i32
    %c0_i32_0 = arith.constant 0 : i32
    %c0_i32_1 = arith.constant 0 : i32
    return %c0_i32, %c0_i32_0 : i32, i32
  }
  func.func @transform_7(%arg0: i32, %arg1: i32, %arg2: i32) -> (i32, i32, i32) {
    %c0_i32 = arith.constant 0 : i32
    %c0_i32_0 = arith.constant 0 : i32
    return %arg0, %arg1, %c0_i32 : i32, i32, i32
  }
}

</mosaic_0001>

<llo_original>
// kernel: siglip_vision_transformer.8
$region0: #{siglip_vision_transformer.8}
  #allocation0 [shape = 'u32[]', space=smem, size = 0x4, offset = 0x4, fixed_abs, tag = 'smem constant byte address 0x4 - core index']
  #allocation1 [shape = 'u32[72,128]{1,0:T(1,128)}', space=vmem, size = 0x9000, scoped, tag = 'internal scratch']
  %s0 = inlined_call_operand.vmem [shape: bf16[2,96,128], index: 0, kind: input, shape index: {}]
  %s1 = inlined_call_operand.vmem [shape: bf16[128,128], index: 1, kind: input, shape index: {}]
  %s2 = inlined_call_operand.vmem [shape: f32[1,128], index: 2, kind: input, shape index: {}]
  %s3 = inlined_call_operand.vmem [shape: f32[96,128], index: 3, kind: input, shape index: {}]
  %s4 = inlined_call_operand.vmem [shape: f32[2,96,128], index: 4, kind: output, shape index: {}]
  %s5 = sld [smem:[#allocation0]]
  $region49: #{siglip_vision_transformer.8} parent=0
    _
  %s7 = ssub.s32 1, %s5
  %s8 = scalar_select 0, %s7, %s5
  loop: start=0, step=1, limit=8
  $region2: #{siglip_vision_transformer.8} parent=0 // loop_pre_header
    _
  $region3: #{siglip_vision_transformer.8} parent=0 // loop_header
    %s10 = sphi 0, %s14
    %p11 = scmp.ge.s32.totalorder %s10, 8
    %s17 = sphi 0, %s29
    %s18 = sphi 0, %s25
    %s19 = sphi 0, %s17
    %s20 = sphi 0, %s18
    %s21 = sphi 0, %s19
    %s22 = sphi 0, %s20
    %s34 = sphi 0, %s36
    %s37 = sphi 0, %s34
    %s38 = sphi 0, %s37
    %s54 = sphi 0, %s38
    %s58 = sphi 0, %s58
    %s60 = sphi 0, %s58
    %s61 = sphi 0, %s60
    %s75 = sphi 0, %s61
    %s79 = sphi 0, %s79
    %s81 = sphi 0, %s79
    %s82 = sphi 0, %s81
    %s96 = sphi 0, %s82
    %s102 = sphi 0, %s104
    %s105 = sphi 0, %s102
    %s106 = sphi 0, %s105
    %s122 = sphi 0, %s106
    %s130 = sphi 0, %s132
    %s133 = sphi 0, %s130
    %s134 = sphi 0, %s133
    %s150 = sphi 0, %s134
  $region4: #{siglip_vision_transformer.8} parent=0 // loop_header_branch
    %13 = sbr.rel (%p11) target = $region8
  $region5: #{siglip_vision_transformer.8} parent=0 // loop_body
    %s15 = ssub.s32 %s10, 1
    %s16 = ssub.s32 %s10, 2
    %s23 = sadd.s32 1, %s18
    %p24 = scmp.ge.s32.totalorder %s23, 3
    %s25 = scalar_select %p24, 0, %s23
    %s26 = sadd.s32 1, %s17
    %s27 = scalar_select %p24, %s26, %s17
    %p28 = scmp.ge.s32.totalorder %s27, 2
    %s29 = scalar_select %p28, 0, %s27
    %s30 = ssub.s32 %s17, %s29
    %s31 = ssub.s32 %s18, %s25
    %s32 = sor.u32 %s30, %s31
    %p33 = scmp.eq.s32.totalorder %s32, 0
    %s35 = sadd.s32 %s34, 1
    %s36 = scalar_select %p33, %s34, %s35
    %p39 = pneg %p33
    %p40 = scmp.eq.s32.totalorder %s10, 5
    %p41 = por %p39, %p40
    %p42 = scmp.ne.s32.totalorder %s34, %s37
    %p43 = scmp.eq.s32.totalorder %s10, 0
    %p44 = por %p42, %p43
    %p45 = scmp.ne.s32.totalorder %s34, %s37
    %p46 = scmp.eq.s32.totalorder %s15, 5
    %p47 = por %p45, %p46
    %p48 = scmp.ne.s32.totalorder %s37, %s38
    %p49 = scmp.eq.s32.totalorder %s15, 0
    %p50 = por %p48, %p49
    %p51 = scmp.ne.s32.totalorder %s37, %s38
    %p52 = scmp.eq.s32.totalorder %s16, 5
    %p53 = por %p51, %p52
    %p55 = scmp.ne.s32.totalorder %s38, %s54
    %p56 = scmp.eq.s32.totalorder %s16, 0
    %p57 = por %p55, %p56
    %s59 = sadd.s32 %s58, 1
    %p62 = scmp.eq.s32.totalorder %s10, 5
    %p63 = scmp.ne.s32.totalorder %s58, %s60
    %p64 = scmp.eq.s32.totalorder %s10, 0
    %p65 = por %p63, %p64
    %p66 = scmp.ne.s32.totalorder %s58, %s60
    %p67 = scmp.eq.s32.totalorder %s15, 5
    %p68 = por %p66, %p67
    %p69 = scmp.ne.s32.totalorder %s60, %s61
    %p70 = scmp.eq.s32.totalorder %s15, 0
    %p71 = por %p69, %p70
    %p72 = scmp.ne.s32.totalorder %s60, %s61
    %p73 = scmp.eq.s32.totalorder %s16, 5
    %p74 = por %p72, %p73
    %p76 = scmp.ne.s32.totalorder %s61, %s75
    %p77 = scmp.eq.s32.totalorder %s16, 0
    %p78 = por %p76, %p77
    %s80 = sadd.s32 %s79, 1
    %p83 = scmp.eq.s32.totalorder %s10, 5
    %p84 = scmp.ne.s32.totalorder %s79, %s81
    %p85 = scmp.eq.s32.totalorder %s10, 0
    %p86 = por %p84, %p85
    %p87 = scmp.ne.s32.totalorder %s79, %s81
    %p88 = scmp.eq.s32.totalorder %s15, 5
    %p89 = por %p87, %p88
    %p90 = scmp.ne.s32.totalorder %s81, %s82
    %p91 = scmp.eq.s32.totalorder %s15, 0
    %p92 = por %p90, %p91
    %p93 = scmp.ne.s32.totalorder %s81, %s82
    %p94 = scmp.eq.s32.totalorder %s16, 5
    %p95 = por %p93, %p94
    %p97 = scmp.ne.s32.totalorder %s82, %s96
    %p98 = scmp.eq.s32.totalorder %s16, 0
    %p99 = por %p97, %p98
    %s100 = ssub.s32 %s18, %s25
    %p101 = scmp.eq.s32.totalorder %s100, 0
    %s103 = sadd.s32 %s102, 1
    %s104 = scalar_select %p101, %s102, %s103
    %p107 = pneg %p101
    %p108 = scmp.eq.s32.totalorder %s10, 5
    %p109 = por %p107, %p108
    %p110 = scmp.ne.s32.totalorder %s102, %s105
    %p111 = scmp.eq.s32.totalorder %s10, 0
    %p112 = por %p110, %p111
    %p113 = scmp.ne.s32.totalorder %s102, %s105
    %p114 = scmp.eq.s32.totalorder %s15, 5
    %p115 = por %p113, %p114
    %p116 = scmp.ne.s32.totalorder %s105, %s106
    %p117 = scmp.eq.s32.totalorder %s15, 0
    %p118 = por %p116, %p117
    %p119 = scmp.ne.s32.totalorder %s105, %s106
    %p120 = scmp.eq.s32.totalorder %s16, 5
    %p121 = por %p119, %p120
    %p123 = scmp.ne.s32.totalorder %s106, %s122
    %p124 = scmp.eq.s32.totalorder %s16, 0
    %p125 = por %p123, %p124
    %s126 = ssub.s32 %s17, %s29
    %s127 = ssub.s32 %s18, %s25
    %s128 = sor.u32 %s126, %s127
    %p129 = scmp.eq.s32.totalorder %s128, 0
    %s131 = sadd.s32 %s130, 1
    %s132 = scalar_select %p129, %s130, %s131
    %p135 = pneg %p129
    %p136 = scmp.eq.s32.totalorder %s10, 5
    %p137 = por %p135, %p136
    %p138 = scmp.ne.s32.totalorder %s130, %s133
    %p139 = scmp.eq.s32.totalorder %s10, 0
    %p140 = por %p138, %p139
    %p141 = scmp.ne.s32.totalorder %s130, %s133
    %p142 = scmp.eq.s32.totalorder %s15, 5
    %p143 = por %p141, %p142
    %p144 = scmp.ne.s32.totalorder %s133, %s134
    %p145 = scmp.eq.s32.totalorder %s15, 0
    %p146 = por %p144, %p145
    %p147 = scmp.ne.s32.totalorder %s133, %s134
    %p148 = scmp.eq.s32.totalorder %s16, 5
    %p149 = por %p147, %p148
    %p151 = scmp.ne.s32.totalorder %s134, %s150
    %p152 = scmp.eq.s32.totalorder %s16, 0
    %p153 = por %p151, %p152
    %p154 = scmp.le.s32.totalorder 1, %s10
    %p155 = scmp.lt.s32.totalorder %s10, 7
    %p156 = pnand %p154, %p155
    %p157 = pneg %p156
    // Predicated region
    $region9: #{siglip_vision_transformer.8} parent=5 // pred_check
      _
    $region10: #{siglip_vision_transformer.8} parent=5 // pred_check_branch
      %159 = sbr.rel (%p156) target = $region12
    $region11: #{siglip_vision_transformer.8} parent=5 // pred_region
      %s160 = ssub.s32 %s10, 1
      // Predicated region
      $region13: #{siglip_vision_transformer.8} parent=11 // pred_check
        %p161 = pneg %p71
      $region14: #{siglip_vision_transformer.8} parent=11 // pred_check_branch
        %163 = sbr.rel (%p161) target = $region16
      $region15: #{siglip_vision_transformer.8} parent=11 // pred_region
        _
      $region16: #{siglip_vision_transformer.8} parent=11 // pred_fallthru
        _
      // Predicated region
      $region17: #{siglip_vision_transformer.8} parent=11 // pred_check
        %p164 = pneg %p92
      $region18: #{siglip_vision_transformer.8} parent=11 // pred_check_branch
        %166 = sbr.rel (%p164) target = $region20
      $region19: #{siglip_vision_transformer.8} parent=11 // pred_region
        _
      $region20: #{siglip_vision_transformer.8} parent=11 // pred_fallthru
        _
    $region12: #{siglip_vision_transformer.8} parent=5 // pred_fallthru
      _
    %p167 = scmp.lt.s32.totalorder %s10, 6
    // Predicated region
    $region21: #{siglip_vision_transformer.8} parent=5 // pred_check
      %p168 = pneg %p167
    $region22: #{siglip_vision_transformer.8} parent=5 // pred_check_branch
      %170 = sbr.rel (%p168) target = $region24
    $region23: #{siglip_vision_transformer.8} parent=5 // pred_region
      // Predicated region
      $region25: #{siglip_vision_transformer.8} parent=23 // pred_check
        %p171 = pneg %p44
      $region26: #{siglip_vision_transformer.8} parent=23 // pred_check_branch
        %173 = sbr.rel (%p171) target = $region28
      $region27: #{siglip_vision_transformer.8} parent=23 // pred_region
        %s174 = smul.u32 4, %s18
        %p175 = scmp.lt.s32.totalorder %s17, 1
        %s176 = scalar_select %p175, %s17, 1
        %p177 = scmp.lt.s32.totalorder %s174, 11
        %s178 = scalar_select %p177, %s174, 11
        %s179 = smul.addr %s176, 12
        %s180 = sadd.s32 %s178, %s179
        %s181 = smul.addr %s180, 4
        %s182 = scalar_lea.vmem %s0, %s181
        %s183 = smul.u32 4, %s18
      $region28: #{siglip_vision_transformer.8} parent=23 // pred_fallthru
        _
      // Predicated region
      $region29: #{siglip_vision_transformer.8} parent=23 // pred_check
        %p184 = pneg %p112
      $region30: #{siglip_vision_transformer.8} parent=23 // pred_check_branch
        %186 = sbr.rel (%p184) target = $region32
      $region31: #{siglip_vision_transformer.8} parent=23 // pred_region
        %s187 = smul.u32 4, %s18
        %p188 = scmp.lt.s32.totalorder %s187, 11
        %s189 = scalar_select %p188, %s187, 11
        %s190 = smul.addr %s189, 8
        %s191 = scalar_lea.vmem %s3, %s190
        %s192 = smul.u32 4, %s18
      $region32: #{siglip_vision_transformer.8} parent=23 // pred_fallthru
        _
    $region24: #{siglip_vision_transformer.8} parent=5 // pred_fallthru
      _
    %p193 = scmp.le.s32.totalorder 1, %s10
    %p194 = scmp.lt.s32.totalorder %s10, 7
    %p195 = pnand %p193, %p194
    %p196 = pneg %p195
    // Predicated region
    $region33: #{siglip_vision_transformer.8} parent=5 // pred_check
      _
    $region34: #{siglip_vision_transformer.8} parent=5 // pred_check_branch
      %198 = sbr.rel (%p195) target = $region36
    $region35: #{siglip_vision_transformer.8} parent=5 // pred_region
      %s199 = ssub.s32 %s10, 1
      %s200 = smul.u32 4, %s20
      %p201 = scmp.lt.s32.totalorder %s19, 1
      %s202 = scalar_select %p201, %s19, 1
      %p203 = scmp.lt.s32.totalorder %s200, 11
      %s204 = scalar_select %p203, %s200, 11
      %s205 = smul.addr %s202, 12
      %s206 = sadd.s32 %s204, %s205
      %s207 = smul.addr %s206, 4
      %s208 = scalar_lea.vmem %s0, %s207
      %p209 = pneg %p50
      %p210 = pneg %p47
      %p211 = pneg %p71
      %p212 = pneg %p68
      %p213 = pneg %p92
      %p214 = pneg %p89
      %s215 = smul.u32 4, %s20
      %p216 = scmp.lt.s32.totalorder %s215, 11
      %s217 = scalar_select %p216, %s215, 11
      %s218 = smul.addr %s217, 8
      %s219 = scalar_lea.vmem %s3, %s218
      %p220 = pneg %p118
      %p221 = pneg %p115
      %p222 = pneg %p146
      %p223 = pneg %p143
      %s224 = smul.u32 4, %s20
      %p225 = scmp.lt.s32.totalorder %s19, 1
      %s226 = scalar_select %p225, %s19, 1
      %p227 = scmp.lt.s32.totalorder %s224, 11
      %s228 = scalar_select %p227, %s224, 11
      %s229 = smul.addr %s226, 12
      %s230 = sadd.s32 %s228, %s229
      %s231 = smul.addr %s230, 8
      %s232 = scalar_lea.vmem %s4, %s231
      %s233 = smul.u32 4, %s20
      %p234 = scmp.lt.s32.totalorder %s19, 1
      %s235 = scalar_select %p234, %s19, 1
      %p236 = scmp.lt.s32.totalorder %s233, 11
      %s237 = scalar_select %p236, %s233, 11
      %s238 = smul.addr %s235, 12
      %s239 = sadd.s32 %s237, %s238
      %s240 = smul.addr %s239, 4
      %s241 = scalar_lea.vmem %s0, %s240
      %s242 = smul.u32 4, %s20
      %s243 = smul.u32 4, %s20
      %p244 = scmp.lt.s32.totalorder %s243, 11
      %s245 = scalar_select %p244, %s243, 11
      %s246 = smul.addr %s245, 8
      %s247 = scalar_lea.vmem %s3, %s246
      %s248 = smul.u32 4, %s20
      %s249 = smul.u32 4, %s20
      %p250 = scmp.lt.s32.totalorder %s19, 1
      %s251 = scalar_select %p250, %s19, 1
      %p252 = scmp.lt.s32.totalorder %s249, 11
      %s253 = scalar_select %p252, %s249, 11
      %s254 = smul.addr %s251, 12
      %s255 = sadd.s32 %s253, %s254
      %s256 = smul.addr %s255, 8
      %s257 = scalar_lea.vmem %s4, %s256
      %s258 = smul.u32 4, %s20
      %v259 = vld [vmem:[%s241] sm:$0xf]
      %v260 = vld [vmem:[%s241 + $0x4] sm:$0xf]
      %v261 = vld [vmem:[%s241 + $0x8] sm:$0xf]
      %v262 = vld [vmem:[%s241 + $0xc] sm:$0xf]
      %v263 = vld [vmem:[%s1] sm:$0xf]
      %v264 = vld [vmem:[%s1 + $0x4] sm:$0xf]
      %v265 = vld [vmem:[%s1 + $0x8] sm:$0xf]
      %v266 = vld [vmem:[%s1 + $0xc] sm:$0xf]
      %v267 = vld [vmem:[%s1 + $0x10] sm:$0xf]
      %v268 = vld [vmem:[%s1 + $0x14] sm:$0xf]
      %v269 = vld [vmem:[%s1 + $0x18] sm:$0xf]
      %v270 = vld [vmem:[%s1 + $0x1c] sm:$0xf]
      %v271 = vld [vmem:[%s1 + $0x20] sm:$0xf]
      %v272 = vld [vmem:[%s1 + $0x24] sm:$0xf]
      %v273 = vld [vmem:[%s1 + $0x28] sm:$0xf]
      %v274 = vld [vmem:[%s1 + $0x2c] sm:$0xf]
      %v275 = vld [vmem:[%s1 + $0x30] sm:$0xf]
      %v276 = vld [vmem:[%s1 + $0x34] sm:$0xf]
      %v277 = vld [vmem:[%s1 + $0x38] sm:$0xf]
      %v278 = vld [vmem:[%s1 + $0x3c] sm:$0xf]
      %v279 = vld [vmem:[%s2] sm:$0x1]
      %v281 = vperm.slane %v279, 0
      %v287 = vunpack.c.l.b16 %v259
      %v288 = vunpack.c.l.b16 %v260
      %v289 = vunpack.c.l.b16 %v261
      %v290 = vunpack.c.l.b16 %v262
      %v291 = vpack.c.b16 %v288, %v287
      %v292 = vpack.c.b16 %v290, %v289
      %v311 = vunpack.c.l.b16 %v263
      %v312 = vunpack.c.l.b16 %v264
      %v313 = vunpack.c.l.b16 %v265
      %v314 = vunpack.c.l.b16 %v266
      %v315 = vunpack.c.l.b16 %v267
      %v316 = vunpack.c.l.b16 %v268
      %v317 = vunpack.c.l.b16 %v269
      %v318 = vunpack.c.l.b16 %v270
      %v319 = vunpack.c.l.b16 %v271
      %v320 = vunpack.c.l.b16 %v272
      %v321 = vunpack.c.l.b16 %v273
      %v322 = vunpack.c.l.b16 %v274
      %v323 = vunpack.c.l.b16 %v275
      %v324 = vunpack.c.l.b16 %v276
      %v325 = vunpack.c.l.b16 %v277
      %v326 = vunpack.c.l.b16 %v278
      %v327 = vpack.c.b16 %v312, %v311
      %v328 = vpack.c.b16 %v314, %v313
      %v329 = vpack.c.b16 %v316, %v315
      %v330 = vpack.c.b16 %v318, %v317
      %v331 = vpack.c.b16 %v320, %v319
      %v332 = vpack.c.b16 %v322, %v321
      %v333 = vpack.c.b16 %v324, %v323
      %v334 = vpack.c.b16 %v326, %v325
      %343 = vmatpush.bf16.msra.mxu0 %v334
      %344 = vmatpush.bf16.msra.mxu0 %v333
      %345 = vmatpush.bf16.msra.mxu0 %v332
      %346 = vmatpush.bf16.msra.mxu0 %v331
      %347 = vmatpush.bf16.msra.mxu0 %v330
      %348 = vmatpush.bf16.msra.mxu0 %v329
      %349 = vmatpush.bf16.msra.mxu0 %v328
      %350 = vmatpush.bf16.msra.mxu0 %v327
      %351 = vmatmul.bf16.gmra.mxu0 %v291
      %v352 = vpop.f32.mrf.mxu0
      %v353 = vadd.f32 %v281, %v352
      %v354 = vpop.f32.mrf.mxu0
      %v355 = vadd.f32 %v281, %v354
      %356 = vmatmul.bf16.gmra.mxu0 %v292
      %v357 = vpop.f32.mrf.mxu0
      %v358 = vadd.f32 %v281, %v357
      %v359 = vpop.f32.mrf.mxu0
      %v360 = vadd.f32 %v281, %v359
      %361 = vdwg.mxu0
      %v362 = vld [vmem:[%s247] sm:$0xff]
      %v363 = vld [vmem:[%s247 + $0x8] sm:$0xff]
      %v364 = vld [vmem:[%s247 + $0x10] sm:$0xff]
      %v365 = vld [vmem:[%s247 + $0x18] sm:$0xff]
      %v366 = vadd.f32 %v353, %v362
      %v367 = vadd.f32 %v355, %v363
      %v368 = vadd.f32 %v358, %v364
      %v369 = vadd.f32 %v360, %v365
      %370 = vst [vmem:[%s257] sm:$0xff] %v366
      %371 = vst [vmem:[%s257 + $0x8] sm:$0xff] %v367
      %372 = vst [vmem:[%s257 + $0x10] sm:$0xff] %v368
      %373 = vst [vmem:[%s257 + $0x18] sm:$0xff] %v369
      %s374 = smul.u32 4, %s20
      %p375 = scmp.lt.s32.totalorder %s19, 1
      %s376 = scalar_select %p375, %s19, 1
      %p377 = scmp.lt.s32.totalorder %s374, 11
      %s378 = scalar_select %p377, %s374, 11
      %s379 = smul.addr %s376, 12
      %s380 = sadd.s32 %s378, %s379
      %s381 = smul.addr %s380, 8
      %s382 = scalar_lea.vmem %s4, %s381
      // Predicated region
      $region37: #{siglip_vision_transformer.8} parent=35 // pred_check
        %p383 = pneg %p143
      $region38: #{siglip_vision_transformer.8} parent=35 // pred_check_branch
        %385 = sbr.rel (%p383) target = $region40
      $region39: #{siglip_vision_transformer.8} parent=35 // pred_region
        %s386 = smul.u32 4, %s20
      $region40: #{siglip_vision_transformer.8} parent=35 // pred_fallthru
        _
    $region36: #{siglip_vision_transformer.8} parent=5 // pred_fallthru
      _
    %p387 = scmp.le.s32.totalorder 2, %s10
    // Predicated region
    $region41: #{siglip_vision_transformer.8} parent=5 // pred_check
      %p388 = pneg %p387
    $region42: #{siglip_vision_transformer.8} parent=5 // pred_check_branch
      %390 = sbr.rel (%p388) target = $region44
    $region43: #{siglip_vision_transformer.8} parent=5 // pred_region
      %s391 = ssub.s32 %s10, 2
      // Predicated region
      $region45: #{siglip_vision_transformer.8} parent=43 // pred_check
        %p392 = pneg %p149
      $region46: #{siglip_vision_transformer.8} parent=43 // pred_check_branch
        %394 = sbr.rel (%p392) target = $region48
      $region47: #{siglip_vision_transformer.8} parent=43 // pred_region
        %s395 = smul.u32 4, %s22
        %p396 = scmp.lt.s32.totalorder %s21, 1
        %s397 = scalar_select %p396, %s21, 1
        %p398 = scmp.lt.s32.totalorder %s395, 11
        %s399 = scalar_select %p398, %s395, 11
        %s400 = smul.addr %s397, 12
        %s401 = sadd.s32 %s399, %s400
        %s402 = smul.addr %s401, 8
        %s403 = scalar_lea.vmem %s4, %s402
      $region48: #{siglip_vision_transformer.8} parent=43 // pred_fallthru
        _
    $region44: #{siglip_vision_transformer.8} parent=5 // pred_fallthru
      _
  $region6: #{siglip_vision_transformer.8} parent=0 // loop_footer
    %s14 = sadd.s32 1, %s10
  $region7: #{siglip_vision_transformer.8} parent=0 // loop_footer_branch
    %9 = sbr.rel target = $region3
  $region8: #{siglip_vision_transformer.8} parent=0 // loop_exit
    _

// kernel: siglip_vision_transformer.9
$region0: #{siglip_vision_transformer.9}
  #allocation0 [shape = 'u32[]', space=smem, size = 0x4, offset = 0x4, fixed_abs, tag = 'smem constant byte address 0x4 - core index']
  #allocation1 [shape = 'u32[72,128]{1,0:T(1,128)}', space=vmem, size = 0x9000, scoped, tag = 'internal scratch']
  %s0 = inlined_call_operand.vmem [shape: f32[2,96,128], index: 0, kind: input, shape index: {}]
  %s1 = inlined_call_operand.vmem [shape: f32[1,128], index: 1, kind: input, shape index: {}]
  %s2 = inlined_call_operand.vmem [shape: f32[1,128], index: 2, kind: input, shape index: {}]
  %s3 = inlined_call_operand.vmem [shape: bf16[128,384], index: 3, kind: input, shape index: {}]
  %s4 = inlined_call_operand.vmem [shape: f32[1,384], index: 4, kind: input, shape index: {}]
  %s5 = inlined_call_operand.vmem [shape: bf16[2,2,96,64], index: 5, kind: output, shape index: {0}]
  %s6 = inlined_call_operand.vmem [shape: bf16[2,2,96,64], index: 6, kind: output, shape index: {1}]
  %s7 = inlined_call_operand.vmem [shape: bf16[2,2,96,64], index: 7, kind: output, shape index: {2}]
  %8 = xla_tuple %s5, %s6, %s7
  %s9 = sld [smem:[#allocation0]]
  $region180: #{siglip_vision_transformer.9} parent=0
    _
  %s11 = ssub.s32 1, %s9
  %s12 = scalar_select 0, %s11, %s9
  $region1: #{siglip_vision_transformer.9} parent=0
    #allocation2 [shape = 'u8[32768]{0}', space=vmem, size = 0x8000, scoped, tag = 'output window, operand 0']
    #allocation3 [shape = 'u8[32768]{0}', space=vmem, size = 0x8000, scoped, tag = 'output window, operand 1']
    #allocation4 [shape = 'u8[32768]{0}', space=vmem, size = 0x8000, scoped, tag = 'output window, operand 2']
    loop: start=0, step=1, limit=8
    $region2: #{siglip_vision_transformer.9} parent=1 // loop_pre_header
      _
    $region3: #{siglip_vision_transformer.9} parent=1 // loop_header
      %s14 = sphi 0, %s18
      %p15 = scmp.ge.s32.totalorder %s14, 8
      %s21 = sphi 0, %s33
      %s22 = sphi 0, %s29
      %s23 = sphi 0, %s21
      %s24 = sphi 0, %s22
      %s25 = sphi 0, %s23
      %s26 = sphi 0, %s24
      %s38 = sphi 0, %s40
      %s41 = sphi 0, %s38
      %s42 = sphi 0, %s41
      %s58 = sphi 0, %s42
      %s62 = sphi 0, %s62
      %s64 = sphi 0, %s62
      %s65 = sphi 0, %s64
      %s79 = sphi 0, %s65
      %s83 = sphi 0, %s83
      %s85 = sphi 0, %s83
      %s86 = sphi 0, %s85
      %s100 = sphi 0, %s86
      %s104 = sphi 0, %s104
      %s106 = sphi 0, %s104
      %s107 = sphi 0, %s106
      %s121 = sphi 0, %s107
      %s125 = sphi 0, %s125
      %s127 = sphi 0, %s125
      %s128 = sphi 0, %s127
      %s142 = sphi 0, %s128
      %s150 = sphi 0, %s152
      %s153 = sphi 0, %s150
      %s154 = sphi 0, %s153
      %s170 = sphi 0, %s154
      %s178 = sphi 0, %s180
      %s181 = sphi 0, %s178
      %s182 = sphi 0, %s181
      %s198 = sphi 0, %s182
      %s206 = sphi 0, %s208
      %s209 = sphi 0, %s206
      %s210 = sphi 0, %s209
      %s226 = sphi 0, %s210
    $region4: #{siglip_vision_transformer.9} parent=1 // loop_header_branch
      %17 = sbr.rel (%p15) target = $region8
    $region5: #{siglip_vision_transformer.9} parent=1 // loop_body
      %s19 = ssub.s32 %s14, 1
      %s20 = ssub.s32 %s14, 2
      %s27 = sadd.s32 1, %s22
      %p28 = scmp.ge.s32.totalorder %s27, 3
      %s29 = scalar_select %p28, 0, %s27
      %s30 = sadd.s32 1, %s21
      %s31 = scalar_select %p28, %s30, %s21
      %p32 = scmp.ge.s32.totalorder %s31, 2
      %s33 = scalar_select %p32, 0, %s31
      %s34 = ssub.s32 %s21, %s33
      %s35 = ssub.s32 %s22, %s29
      %s36 = sor.u32 %s34, %s35
      %p37 = scmp.eq.s32.totalorder %s36, 0
      %s39 = sadd.s32 %s38, 1
      %s40 = scalar_select %p37, %s38, %s39
      %p43 = pneg %p37
      %p44 = scmp.eq.s32.totalorder %s14, 5
      %p45 = por %p43, %p44
      %p46 = scmp.ne.s32.totalorder %s38, %s41
      %p47 = scmp.eq.s32.totalorder %s14, 0
      %p48 = por %p46, %p47
      %p49 = scmp.ne.s32.totalorder %s38, %s41
      %p50 = scmp.eq.s32.totalorder %s19, 5
      %p51 = por %p49, %p50
      %p52 = scmp.ne.s32.totalorder %s41, %s42
      %p53 = scmp.eq.s32.totalorder %s19, 0
      %p54 = por %p52, %p53
      %p55 = scmp.ne.s32.totalorder %s41, %s42
      %p56 = scmp.eq.s32.totalorder %s20, 5
      %p57 = por %p55, %p56
      %p59 = scmp.ne.s32.totalorder %s42, %s58
      %p60 = scmp.eq.s32.totalorder %s20, 0
      %p61 = por %p59, %p60
      %s63 = sadd.s32 %s62, 1
      %p66 = scmp.eq.s32.totalorder %s14, 5
      %p67 = scmp.ne.s32.totalorder %s62, %s64
      %p68 = scmp.eq.s32.totalorder %s14, 0
      %p69 = por %p67, %p68
      %p70 = scmp.ne.s32.totalorder %s62, %s64
      %p71 = scmp.eq.s32.totalorder %s19, 5
      %p72 = por %p70, %p71
      %p73 = scmp.ne.s32.totalorder %s64, %s65
      %p74 = scmp.eq.s32.totalorder %s19, 0
      %p75 = por %p73, %p74
      %p76 = scmp.ne.s32.totalorder %s64, %s65
      %p77 = scmp.eq.s32.totalorder %s20, 5
      %p78 = por %p76, %p77
      %p80 = scmp.ne.s32.totalorder %s65, %s79
      %p81 = scmp.eq.s32.totalorder %s20, 0
      %p82 = por %p80, %p81
      %s84 = sadd.s32 %s83, 1
      %p87 = scmp.eq.s32.totalorder %s14, 5
      %p88 = scmp.ne.s32.totalorder %s83, %s85
      %p89 = scmp.eq.s32.totalorder %s14, 0
      %p90 = por %p88, %p89
      %p91 = scmp.ne.s32.totalorder %s83, %s85
      %p92 = scmp.eq.s32.totalorder %s19, 5
      %p93 = por %p91, %p92
      %p94 = scmp.ne.s32.totalorder %s85, %s86
      %p95 = scmp.eq.s32.totalorder %s19, 0
      %p96 = por %p94, %p95
      %p97 = scmp.ne.s32.totalorder %s85, %s86
      %p98 = scmp.eq.s32.totalorder %s20, 5
      %p99 = por %p97, %p98
      %p101 = scmp.ne.s32.totalorder %s86, %s100
      %p102 = scmp.eq.s32.totalorder %s20, 0
      %p103 = por %p101, %p102
      %s105 = sadd.s32 %s104, 1
      %p108 = scmp.eq.s32.totalorder %s14, 5
      %p109 = scmp.ne.s32.totalorder %s104, %s106
      %p110 = scmp.eq.s32.totalorder %s14, 0
      %p111 = por %p109, %p110
      %p112 = scmp.ne.s32.totalorder %s104, %s106
      %p113 = scmp.eq.s32.totalorder %s19, 5
      %p114 = por %p112, %p113
      %p115 = scmp.ne.s32.totalorder %s106, %s107
      %p116 = scmp.eq.s32.totalorder %s19, 0
      %p117 = por %p115, %p116
      %p118 = scmp.ne.s32.totalorder %s106, %s107
      %p119 = scmp.eq.s32.totalorder %s20, 5
      %p120 = por %p118, %p119
      %p122 = scmp.ne.s32.totalorder %s107, %s121
      %p123 = scmp.eq.s32.totalorder %s20, 0
      %p124 = por %p122, %p123
      %s126 = sadd.s32 %s125, 1
      %p129 = scmp.eq.s32.totalorder %s14, 5
      %p130 = scmp.ne.s32.totalorder %s125, %s127
      %p131 = scmp.eq.s32.totalorder %s14, 0
      %p132 = por %p130, %p131
      %p133 = scmp.ne.s32.totalorder %s125, %s127
      %p134 = scmp.eq.s32.totalorder %s19, 5
      %p135 = por %p133, %p134
      %p136 = scmp.ne.s32.totalorder %s127, %s128
      %p137 = scmp.eq.s32.totalorder %s19, 0
      %p138 = por %p136, %p137
      %p139 = scmp.ne.s32.totalorder %s127, %s128
      %p140 = scmp.eq.s32.totalorder %s20, 5
      %p141 = por %p139, %p140
      %p143 = scmp.ne.s32.totalorder %s128, %s142
      %p144 = scmp.eq.s32.totalorder %s20, 0
      %p145 = por %p143, %p144
      %s146 = ssub.s32 %s21, %s33
      %s147 = ssub.s32 %s22, %s29
      %s148 = sor.u32 %s146, %s147
      %p149 = scmp.eq.s32.totalorder %s148, 0
      %s151 = sadd.s32 %s150, 1
      %s152 = scalar_select %p149, %s150, %s151
      %p155 = pneg %p149
      %p156 = scmp.eq.s32.totalorder %s14, 5
      %p157 = por %p155, %p156
      %p158 = scmp.ne.s32.totalorder %s150, %s153
      %p159 = scmp.eq.s32.totalorder %s14, 0
      %p160 = por %p158, %p159
      %p161 = scmp.ne.s32.totalorder %s150, %s153
      %p162 = scmp.eq.s32.totalorder %s19, 5
      %p163 = por %p161, %p162
      %p164 = scmp.ne.s32.totalorder %s153, %s154
      %p165 = scmp.eq.s32.totalorder %s19, 0
      %p166 = por %p164, %p165
      %p167 = scmp.ne.s32.totalorder %s153, %s154
      %p168 = scmp.eq.s32.totalorder %s20, 5
      %p169 = por %p167, %p168
      %p171 = scmp.ne.s32.totalorder %s154, %s170
      %p172 = scmp.eq.s32.totalorder %s20, 0
      %p173 = por %p171, %p172
      %s174 = ssub.s32 %s21, %s33
      %s175 = ssub.s32 %s22, %s29
      %s176 = sor.u32 %s174, %s175
      %p177 = scmp.eq.s32.totalorder %s176, 0
      %s179 = sadd.s32 %s178, 1
      %s180 = scalar_select %p177, %s178, %s179
      %p183 = pneg %p177
      %p184 = scmp.eq.s32.totalorder %s14, 5
      %p185 = por %p183, %p184
      %p186 = scmp.ne.s32.totalorder %s178, %s181
      %p187 = scmp.eq.s32.totalorder %s14, 0
      %p188 = por %p186, %p187
      %p189 = scmp.ne.s32.totalorder %s178, %s181
      %p190 = scmp.eq.s32.totalorder %s19, 5
      %p191 = por %p189, %p190
      %p192 = scmp.ne.s32.totalorder %s181, %s182
      %p193 = scmp.eq.s32.totalorder %s19, 0
      %p194 = por %p192, %p193
      %p195 = scmp.ne.s32.totalorder %s181, %s182
      %p196 = scmp.eq.s32.totalorder %s20, 5
      %p197 = por %p195, %p196
      %p199 = scmp.ne.s32.totalorder %s182, %s198
      %p200 = scmp.eq.s32.totalorder %s20, 0
      %p201 = por %p199, %p200
      %s202 = ssub.s32 %s21, %s33
      %s203 = ssub.s32 %s22, %s29
      %s204 = sor.u32 %s202, %s203
      %p205 = scmp.eq.s32.totalorder %s204, 0
      %s207 = sadd.s32 %s206, 1
      %s208 = scalar_select %p205, %s206, %s207
      %p211 = pneg %p205
      %p212 = scmp.eq.s32.totalorder %s14, 5
      %p213 = por %p211, %p212
      %p214 = scmp.ne.s32.totalorder %s206, %s209
      %p215 = scmp.eq.s32.totalorder %s14, 0
      %p216 = por %p214, %p215
      %p217 = scmp.ne.s32.totalorder %s206, %s209
      %p218 = scmp.eq.s32.totalorder %s19, 5
      %p219 = por %p217, %p218
      %p220 = scmp.ne.s32.totalorder %s209, %s210
      %p221 = scmp.eq.s32.totalorder %s19, 0
      %p222 = por %p220, %p221
      %p223 = scmp.ne.s32.totalorder %s209, %s210
      %p224 = scmp.eq.s32.totalorder %s20, 5
      %p225 = por %p223, %p224
      %p227 = scmp.ne.s32.totalorder %s210, %s226
      %p228 = scmp.eq.s32.totalorder %s20, 0
      %p229 = por %p227, %p228
      %p230 = scmp.le.s32.totalorder 1, %s14
      %p231 = scmp.lt.s32.totalorder %s14, 7
      %p232 = pnand %p230, %p231
      %p233 = pneg %p232
      // Predicated region
      $region9: #{siglip_vision_transformer.9} parent=5 // pred_check
        _
      $region10: #{siglip_vision_transformer.9} parent=5 // pred_check_branch
        %235 = sbr.rel (%p232) target = $region12
      $region11: #{siglip_vision_transformer.9} parent=5 // pred_region
        %s236 = ssub.s32 %s14, 1
        // Predicated region
        $region13: #{siglip_vision_transformer.9} parent=11 // pred_check
          %p237 = pneg %p75
        $region14: #{siglip_vision_transformer.9} parent=11 // pred_check_branch
          %239 = sbr.rel (%p237) target = $region16
        $region15: #{siglip_vision_transformer.9} parent=11 // pred_region
          _
        $region16: #{siglip_vision_transformer.9} parent=11 // pred_fallthru
          _
        // Predicated region
        $region17: #{siglip_vision_transformer.9} parent=11 // pred_check
          %p240 = pneg %p96
        $region18: #{siglip_vision_transformer.9} parent=11 // pred_check_branch
          %242 = sbr.rel (%p240) target = $region20
        $region19: #{siglip_vision_transformer.9} parent=11 // pred_region
          _
        $region20: #{siglip_vision_transformer.9} parent=11 // pred_fallthru
          _
        // Predicated region
        $region21: #{siglip_vision_transformer.9} parent=11 // pred_check
          %p243 = pneg %p117
        $region22: #{siglip_vision_transformer.9} parent=11 // pred_check_branch
          %245 = sbr.rel (%p243) target = $region24
        $region23: #{siglip_vision_transformer.9} parent=11 // pred_region
          _
        $region24: #{siglip_vision_transformer.9} parent=11 // pred_fallthru
          _
        // Predicated region
        $region25: #{siglip_vision_transformer.9} parent=11 // pred_check
          %p246 = pneg %p138
        $region26: #{siglip_vision_transformer.9} parent=11 // pred_check_branch
          %248 = sbr.rel (%p246) target = $region28
        $region27: #{siglip_vision_transformer.9} parent=11 // pred_region
          _
        $region28: #{siglip_vision_transformer.9} parent=11 // pred_fallthru
          _
      $region12: #{siglip_vision_transformer.9} parent=5 // pred_fallthru
        _
      %p249 = scmp.lt.s32.totalorder %s14, 6
      // Predicated region
      $region29: #{siglip_vision_transformer.9} parent=5 // pred_check
        %p250 = pneg %p249
      $region30: #{siglip_vision_transformer.9} parent=5 // pred_check_branch
        %252 = sbr.rel (%p250) target = $region32
      $region31: #{siglip_vision_transformer.9} parent=5 // pred_region
        // Predicated region
        $region33: #{siglip_vision_transformer.9} parent=31 // pred_check
          %p253 = pneg %p48
        $region34: #{siglip_vision_transformer.9} parent=31 // pred_check_branch
          %255 = sbr.rel (%p253) target = $region36
        $region35: #{siglip_vision_transformer.9} parent=31 // pred_region
          %s256 = smul.u32 4, %s22
          %p257 = scmp.lt.s32.totalorder %s21, 1
          %s258 = scalar_select %p257, %s21, 1
          %p259 = scmp.lt.s32.totalorder %s256, 11
          %s260 = scalar_select %p259, %s256, 11
          %s261 = smul.addr %s258, 12
          %s262 = sadd.s32 %s260, %s261
          %s263 = smul.addr %s262, 8
          %s264 = scalar_lea.vmem %s0, %s263
          %s265 = smul.u32 4, %s22
        $region36: #{siglip_vision_transformer.9} parent=31 // pred_fallthru
          _
      $region32: #{siglip_vision_transformer.9} parent=5 // pred_fallthru
        _
      %p266 = scmp.le.s32.totalorder 1, %s14
      %p267 = scmp.lt.s32.totalorder %s14, 7
      %p268 = pnand %p266, %p267
      %p269 = pneg %p268
      // Predicated region
      $region37: #{siglip_vision_transformer.9} parent=5 // pred_check
        _
      $region38: #{siglip_vision_transformer.9} parent=5 // pred_check_branch
        %271 = sbr.rel (%p268) target = $region40
      $region39: #{siglip_vision_transformer.9} parent=5 // pred_region
        %s272 = ssub.s32 %s14, 1
        %s273 = smul.u32 4, %s24
        %p274 = scmp.lt.s32.totalorder %s23, 1
        %s275 = scalar_select %p274, %s23, 1
        %p276 = scmp.lt.s32.totalorder %s273, 11
        %s277 = scalar_select %p276, %s273, 11
        %s278 = smul.addr %s275, 12
        %s279 = sadd.s32 %s277, %s278
        %s280 = smul.addr %s279, 8
        %s281 = scalar_lea.vmem %s0, %s280
        %p282 = pneg %p54
        %p283 = pneg %p51
        %p284 = pneg %p75
        %p285 = pneg %p72
        %p286 = pneg %p96
        %p287 = pneg %p93
        %p288 = pneg %p117
        %p289 = pneg %p114
        %p290 = pneg %p138
        %p291 = pneg %p135
        %p292 = pneg %p166
        %p293 = pneg %p163
        %s294 = sand.u32 %s153, 1
        %s295 = sand.u32 %s153, 1
        %s296 = smul.addr %s295, 32
        %s297 = scalar_lea.vmem [#allocation2], %s296
        %p298 = pneg %p194
        %p299 = pneg %p191
        %s300 = sand.u32 %s181, 1
        %s301 = sand.u32 %s181, 1
        %s302 = smul.addr %s301, 32
        %s303 = scalar_lea.vmem [#allocation3], %s302
        %p304 = pneg %p222
        %p305 = pneg %p219
        %s306 = sand.u32 %s209, 1
        %s307 = sand.u32 %s209, 1
        %s308 = smul.addr %s307, 32
        %s309 = scalar_lea.vmem [#allocation4], %s308
        %s310 = smul.u32 4, %s24
        %p311 = scmp.lt.s32.totalorder %s23, 1
        %s312 = scalar_select %p311, %s23, 1
        %p313 = scmp.lt.s32.totalorder %s310, 11
        %s314 = scalar_select %p313, %s310, 11
        %s315 = smul.addr %s312, 12
        %s316 = sadd.s32 %s314, %s315
        %s317 = smul.addr %s316, 8
        %s318 = scalar_lea.vmem %s0, %s317
        %s319 = smul.u32 4, %s24
        %s320 = smul.u32 4, %s24
        %s321 = smul.u32 4, %s24
        %s322 = smul.u32 4, %s24
        %v323 = vld [vmem:[%s318] sm:$0xff]
        %v324 = vld [vmem:[%s318 + $0x8] sm:$0xff]
        %v325 = vld [vmem:[%s318 + $0x10] sm:$0xff]
        %v326 = vld [vmem:[%s318 + $0x18] sm:$0xff]
        %v327 = vld [vmem:[%s1] sm:$0x1]
        %v328 = vld [vmem:[%s2] sm:$0x1]
        %329 = vadd.xlane.f32.xlu0 %v323
        %v330 = vpop.xlane.xlu0 %329
        %331 = vadd.xlane.f32.xlu0 %v324
        %v332 = vpop.xlane.xlu0 %331
        %333 = vadd.xlane.f32.xlu0 %v325
        %v334 = vpop.xlane.xlu0 %333
        %335 = vadd.xlane.f32.xlu0 %v326
        %v336 = vpop.xlane.xlu0 %335
        %v337 = vrcp.pop 128.0
        %v338 = vmul.f32 128.0, %v337
        %v339 = vsub.f32 1.0, %v338
        %v340 = vmul.f32 %v337, %v339
        %v341 = vadd.f32 %v337, %v340
        %vm342 = vweird.f32 %v337
        %v343 = vsel %vm342, %v337, %v341
        %v344 = vmul.f32 %v330, %v343
        %v345 = vmul.f32 %v332, %v343
        %v346 = vmul.f32 %v334, %v343
        %v347 = vmul.f32 %v336, %v343
        %v348 = vsub.f32 %v323, %v344
        %v349 = vsub.f32 %v324, %v345
        %v350 = vsub.f32 %v325, %v346
        %v351 = vsub.f32 %v326, %v347
        %v352 = vmul.f32 %v348, %v348
        %v353 = vmul.f32 %v349, %v349
        %v354 = vmul.f32 %v350, %v350
        %v355 = vmul.f32 %v351, %v351
        %356 = vadd.xlane.f32.xlu0 %v352
        %v357 = vpop.xlane.xlu0 %356
        %358 = vadd.xlane.f32.xlu0 %v353
        %v359 = vpop.xlane.xlu0 %358
        %360 = vadd.xlane.f32.xlu0 %v354
        %v361 = vpop.xlane.xlu0 %360
        %362 = vadd.xlane.f32.xlu0 %v355
        %v363 = vpop.xlane.xlu0 %362
        %v364 = vmul.f32 %v357, %v343
        %v365 = vmul.f32 %v359, %v343
        %v366 = vmul.f32 %v361, %v343
        %v367 = vmul.f32 %v363, %v343
        %v368 = vadd.f32 %v364, 1e-06
        %v369 = vadd.f32 %v365, 1e-06
        %v370 = vadd.f32 %v366, 1e-06
        %v371 = vadd.f32 %v367, 1e-06
        %v372 = vrsqrt.pop %v368
        %v373 = vmul.f32 %v372, %v368
        %v374 = vmul.f32 %v373, %v372
        %v375 = vmul.f32 0.5, %v374
        %v376 = vsub.f32 1.5, %v375
        %v377 = vmul.f32 %v372, %v376
        %vm378 = vweird.f32 %v368
        %vm379 = vweird.f32 %v372
        %vm380 = vmor %vm378, %vm379
        %v381 = vsel %vm380, %v372, %v377
        %v382 = vrsqrt.pop %v369
        %v383 = vmul.f32 %v382, %v369
        %v384 = vmul.f32 %v383, %v382
        %v385 = vmul.f32 0.5, %v384
        %v386 = vsub.f32 1.5, %v385
        %v387 = vmul.f32 %v382, %v386
        %vm388 = vweird.f32 %v369
        %vm389 = vweird.f32 %v382
        %vm390 = vmor %vm388, %vm389
        %v391 = vsel %vm390, %v382, %v387
        %v392 = vrsqrt.pop %v370
        %v393 = vmul.f32 %v392, %v370
        %v394 = vmul.f32 %v393, %v392
        %v395 = vmul.f32 0.5, %v394
        %v396 = vsub.f32 1.5, %v395
        %v397 = vmul.f32 %v392, %v396
        %vm398 = vweird.f32 %v370
        %vm399 = vweird.f32 %v392
        %vm400 = vmor %vm398, %vm399
        %v401 = vsel %vm400, %v392, %v397
        %v402 = vrsqrt.pop %v371
        %v403 = vmul.f32 %v402, %v371
        %v404 = vmul.f32 %v403, %v402
        %v405 = vmul.f32 0.5, %v404
        %v406 = vsub.f32 1.5, %v405
        %v407 = vmul.f32 %v402, %v406
        %vm408 = vweird.f32 %v371
        %vm409 = vweird.f32 %v402
        %vm410 = vmor %vm408, %vm409
        %v411 = vsel %vm410, %v402, %v407
        %v412 = vmul.f32 %v348, %v381
        %v413 = vmul.f32 %v349, %v391
        %v414 = vmul.f32 %v350, %v401
        %v415 = vmul.f32 %v351, %v411
        %v417 = vperm.slane %v327, 0
        %v419 = vmul.f32 %v412, %v417
        %v420 = vmul.f32 %v413, %v417
        %v421 = vmul.f32 %v414, %v417
        %v422 = vmul.f32 %v415, %v417
        %v424 = vperm.slane %v328, 0
        %v426 = vadd.f32 %v419, %v424
        %v427 = vadd.f32 %v420, %v424
        %v428 = vadd.f32 %v421, %v424
        %v429 = vadd.f32 %v422, %v424
        %v430 = vpack.c.bf16 %v427, %v426
        %v431 = vpack.c.bf16 %v429, %v428
        %v432 = vld [vmem:[%s3] sm:$0xff]
        %v433 = vld [vmem:[%s3 + $0x8] sm:$0xf]
        %v434 = vld [vmem:[%s3 + $0xc] sm:$0xff]
        %v435 = vld [vmem:[%s3 + $0x14] sm:$0xf]
        %v436 = vld [vmem:[%s3 + $0x18] sm:$0xff]
        %v437 = vld [vmem:[%s3 + $0x20] sm:$0xf]
        %v438 = vld [vmem:[%s3 + $0x24] sm:$0xff]
        %v439 = vld [vmem:[%s3 + $0x2c] sm:$0xf]
        %v440 = vld [vmem:[%s3 + $0x30] sm:$0xff]
        %v441 = vld [vmem:[%s3 + $0x38] sm:$0xf]
        %v442 = vld [vmem:[%s3 + $0x3c] sm:$0xff]
        %v443 = vld [vmem:[%s3 + $0x44] sm:$0xf]
        %v444 = vld [vmem:[%s3 + $0x48] sm:$0xff]
        %v445 = vld [vmem:[%s3 + $0x50] sm:$0xf]
        %v446 = vld [vmem:[%s3 + $0x54] sm:$0xff]
        %v447 = vld [vmem:[%s3 + $0x5c] sm:$0xf]
        %v448 = vld [vmem:[%s3 + $0x60] sm:$0xff]
        %v449 = vld [vmem:[%s3 + $0x68] sm:$0xf]
        %v450 = vld [vmem:[%s3 + $0x6c] sm:$0xff]
        %v451 = vld [vmem:[%s3 + $0x74] sm:$0xf]
        %v452 = vld [vmem:[%s3 + $0x78] sm:$0xff]
        %v453 = vld [vmem:[%s3 + $0x80] sm:$0xf]
        %v454 = vld [vmem:[%s3 + $0x84] sm:$0xff]
        %v455 = vld [vmem:[%s3 + $0x8c] sm:$0xf]
        %v456 = vld [vmem:[%s3 + $0x90] sm:$0xff]
        %v457 = vld [vmem:[%s3 + $0x98] sm:$0xf]
        %v458 = vld [vmem:[%s3 + $0x9c] sm:$0xff]
        %v459 = vld [vmem:[%s3 + $0xa4] sm:$0xf]
        %v460 = vld [vmem:[%s3 + $0xa8] sm:$0xff]
        %v461 = vld [vmem:[%s3 + $0xb0] sm:$0xf]
        %v462 = vld [vmem:[%s3 + $0xb4] sm:$0xff]
        %v463 = vld [vmem:[%s3 + $0xbc] sm:$0xf]
        %v464 = vld [vmem:[%s4] sm:$0x7]
        %v466 = vperm.slane %v464, 0
        %v467 = vperm.slane %v464, 1
        %v468 = vperm.slane %v464, 2
        %v504 = vunpack.c.l.b16 %v432
        %v505 = vunpack.c.h.b16 %v432
        %v506 = vunpack.c.l.b16 %v433
        %v507 = vunpack.c.l.b16 %v434
        %v508 = vunpack.c.h.b16 %v434
        %v509 = vunpack.c.l.b16 %v435
        %v510 = vunpack.c.l.b16 %v436
        %v511 = vunpack.c.h.b16 %v436
        %v512 = vunpack.c.l.b16 %v437
        %v513 = vunpack.c.l.b16 %v438
        %v514 = vunpack.c.h.b16 %v438
        %v515 = vunpack.c.l.b16 %v439
        %v516 = vunpack.c.l.b16 %v440
        %v517 = vunpack.c.h.b16 %v440
        %v518 = vunpack.c.l.b16 %v441
        %v519 = vunpack.c.l.b16 %v442
        %v520 = vunpack.c.h.b16 %v442
        %v521 = vunpack.c.l.b16 %v443
        %v522 = vunpack.c.l.b16 %v444
        %v523 = vunpack.c.h.b16 %v444
        %v524 = vunpack.c.l.b16 %v445
        %v525 = vunpack.c.l.b16 %v446
        %v526 = vunpack.c.h.b16 %v446
        %v527 = vunpack.c.l.b16 %v447
        %v528 = vunpack.c.l.b16 %v448
        %v529 = vunpack.c.h.b16 %v448
        %v530 = vunpack.c.l.b16 %v449
        %v531 = vunpack.c.l.b16 %v450
        %v532 = vunpack.c.h.b16 %v450
        %v533 = vunpack.c.l.b16 %v451
        %v534 = vunpack.c.l.b16 %v452
        %v535 = vunpack.c.h.b16 %v452
        %v536 = vunpack.c.l.b16 %v453
        %v537 = vunpack.c.l.b16 %v454
        %v538 = vunpack.c.h.b16 %v454
        %v539 = vunpack.c.l.b16 %v455
        %v540 = vunpack.c.l.b16 %v456
        %v541 = vunpack.c.h.b16 %v456
        %v542 = vunpack.c.l.b16 %v457
        %v543 = vunpack.c.l.b16 %v458
        %v544 = vunpack.c.h.b16 %v458
        %v545 = vunpack.c.l.b16 %v459
        %v546 = vunpack.c.l.b16 %v460
        %v547 = vunpack.c.h.b16 %v460
        %v548 = vunpack.c.l.b16 %v461
        %v549 = vunpack.c.l.b16 %v462
        %v550 = vunpack.c.h.b16 %v462
        %v551 = vunpack.c.l.b16 %v463
        %v552 = vpack.c.b16 %v507, %v504
        %v553 = vpack.c.b16 %v508, %v505
        %v554 = vpack.c.b16 %v509, %v506
        %v555 = vpack.c.b16 %v513, %v510
        %v556 = vpack.c.b16 %v514, %v511
        %v557 = vpack.c.b16 %v515, %v512
        %v558 = vpack.c.b16 %v519, %v516
        %v559 = vpack.c.b16 %v520, %v517
        %v560 = vpack.c.b16 %v521, %v518
        %v561 = vpack.c.b16 %v525, %v522
        %v562 = vpack.c.b16 %v526, %v523
        %v563 = vpack.c.b16 %v527, %v524
        %v564 = vpack.c.b16 %v531, %v528
        %v565 = vpack.c.b16 %v532, %v529
        %v566 = vpack.c.b16 %v533, %v530
        %v567 = vpack.c.b16 %v537, %v534
        %v568 = vpack.c.b16 %v538, %v535
        %v569 = vpack.c.b16 %v539, %v536
        %v570 = vpack.c.b16 %v543, %v540
        %v571 = vpack.c.b16 %v544, %v541
        %v572 = vpack.c.b16 %v545, %v542
        %v573 = vpack.c.b16 %v549, %v546
        %v574 = vpack.c.b16 %v550, %v547
        %v575 = vpack.c.b16 %v551, %v548
        %600 = vmatpush.bf16.msra.mxu0 %v573
        %601 = vmatpush.bf16.msra.mxu0 %v570
        %602 = vmatpush.bf16.msra.mxu0 %v567
        %603 = vmatpush.bf16.msra.mxu0 %v564
        %604 = vmatpush.bf16.msra.mxu0 %v561
        %605 = vmatpush.bf16.msra.mxu0 %v558
        %606 = vmatpush.bf16.msra.mxu0 %v555
        %607 = vmatpush.bf16.msra.mxu0 %v552
        %608 = vmatmul.bf16.gmra.mxu0 %v430
        %v609 = vpop.f32.mrf.mxu0
        %v610 = vadd.f32 %v466, %v609
        %v611 = vpop.f32.mrf.mxu0
        %v612 = vadd.f32 %v466, %v611
        %613 = vmatmul.bf16.gmra.mxu0 %v431
        %v614 = vpop.f32.mrf.mxu0
        %v615 = vadd.f32 %v466, %v614
        %v616 = vpop.f32.mrf.mxu0
        %v617 = vadd.f32 %v466, %v616
        %618 = vdwg.mxu0
        %619 = vmatpush.bf16.msra.mxu0 %v574
        %620 = vmatpush.bf16.msra.mxu0 %v571
        %621 = vmatpush.bf16.msra.mxu0 %v568
        %622 = vmatpush.bf16.msra.mxu0 %v565
        %623 = vmatpush.bf16.msra.mxu0 %v562
        %624 = vmatpush.bf16.msra.mxu0 %v559
        %625 = vmatpush.bf16.msra.mxu0 %v556
        %626 = vmatpush.bf16.msra.mxu0 %v553
        %627 = vmatmul.bf16.gmra.mxu0 %v430
        %v628 = vpop.f32.mrf.mxu0
        %v629 = vadd.f32 %v467, %v628
        %v630 = vpop.f32.mrf.mxu0
        %v631 = vadd.f32 %v467, %v630
        %632 = vmatmul.bf16.gmra.mxu0 %v431
        %v633 = vpop.f32.mrf.mxu0
        %v634 = vadd.f32 %v467, %v633
        %v635 = vpop.f32.mrf.mxu0
        %v636 = vadd.f32 %v467, %v635
        %637 = vdwg.mxu0
        %638 = vmatpush.bf16.msra.mxu0 %v575
        %639 = vmatpush.bf16.msra.mxu0 %v572
        %640 = vmatpush.bf16.msra.mxu0 %v569
        %641 = vmatpush.bf16.msra.mxu0 %v566
        %642 = vmatpush.bf16.msra.mxu0 %v563
        %643 = vmatpush.bf16.msra.mxu0 %v560
        %644 = vmatpush.bf16.msra.mxu0 %v557
        %645 = vmatpush.bf16.msra.mxu0 %v554
        %646 = vmatmul.bf16.gmra.mxu0 %v430
        %v647 = vpop.f32.mrf.mxu0
        %v648 = vadd.f32 %v468, %v647
        %v649 = vpop.f32.mrf.mxu0
        %v650 = vadd.f32 %v468, %v649
        %651 = vmatmul.bf16.gmra.mxu0 %v431
        %v652 = vpop.f32.mrf.mxu0
        %v653 = vadd.f32 %v468, %v652
        %v654 = vpop.f32.mrf.mxu0
        %v655 = vadd.f32 %v468, %v654
        %656 = vdwg.mxu0
        %v657 = vpack.c.bf16 %v629, %v610
        %v658 = vpack.c.bf16 %v648, %v648
        %v659 = vpack.c.bf16 %v631, %v612
        %v660 = vpack.c.bf16 %v650, %v650
        %v661 = vpack.c.bf16 %v634, %v615
        %v662 = vpack.c.bf16 %v653, %v653
        %v663 = vpack.c.bf16 %v636, %v617
        %v664 = vpack.c.bf16 %v655, %v655
        %vm665 = vcmask 519168
        %666 = vst.msk [vmem:[%s297] sm:$0xf] %vm665, %v657
        %667 = vst.msk [vmem:[%s297 + $0x4] sm:$0xf] %vm665, %v659
        %668 = vst.msk [vmem:[%s297 + $0x8] sm:$0xf] %vm665, %v661
        %669 = vst.msk [vmem:[%s297 + $0xc] sm:$0xf] %vm665, %v663
        %v674 = vrot.slane %v657, 4
        %v675 = vrot.slane %v659, 4
        %v676 = vrot.slane %v661, 4
        %v677 = vrot.slane %v663, 4
        %682 = vst.msk [vmem:[%s303] sm:$0xf] %vm665, %v674
        %683 = vst.msk [vmem:[%s303 + $0x4] sm:$0xf] %vm665, %v675
        %684 = vst.msk [vmem:[%s303 + $0x8] sm:$0xf] %vm665, %v676
        %685 = vst.msk [vmem:[%s303 + $0xc] sm:$0xf] %vm665, %v677
        %686 = vst.msk [vmem:[%s309] sm:$0xf] %vm665, %v658
        %687 = vst.msk [vmem:[%s309 + $0x4] sm:$0xf] %vm665, %v660
        %688 = vst.msk [vmem:[%s309 + $0x8] sm:$0xf] %vm665, %v662
        %689 = vst.msk [vmem:[%s309 + $0xc] sm:$0xf] %vm665, %v664
        %690 = vrot.lane.b32.xlu0 %v657, 64
        %v691 = vpop.permute.xlu0 %690
        %692 = vrot.lane.b32.xlu0 %v659, 64
        %v693 = vpop.permute.xlu0 %692
        %694 = vrot.lane.b32.xlu0 %v661, 64
        %v695 = vpop.permute.xlu0 %694
        %696 = vrot.lane.b32.xlu0 %v663, 64
        %v697 = vpop.permute.xlu0 %696
        %s702 = scalar_lea.vmem %s297, 16 [#allocation2]
        %703 = vst.msk [vmem:[%s702] sm:$0xf] %vm665, %v691
        %704 = vst.msk [vmem:[%s702 + $0x4] sm:$0xf] %vm665, %v693
        %705 = vst.msk [vmem:[%s702 + $0x8] sm:$0xf] %vm665, %v695
        %706 = vst.msk [vmem:[%s702 + $0xc] sm:$0xf] %vm665, %v697
        %v707 = vrot.slane %v691, 4
        %v708 = vrot.slane %v693, 4
        %v709 = vrot.slane %v695, 4
        %v710 = vrot.slane %v697, 4
        %s715 = scalar_lea.vmem %s303, 16 [#allocation3]
        %716 = vst.msk [vmem:[%s715] sm:$0xf] %vm665, %v707
        %717 = vst.msk [vmem:[%s715 + $0x4] sm:$0xf] %vm665, %v708
        %718 = vst.msk [vmem:[%s715 + $0x8] sm:$0xf] %vm665, %v709
        %719 = vst.msk [vmem:[%s715 + $0xc] sm:$0xf] %vm665, %v710
        %724 = vrot.lane.b32.xlu0 %v658, 64
        %v725 = vpop.permute.xlu0 %724
        %726 = vrot.lane.b32.xlu0 %v660, 64
        %v727 = vpop.permute.xlu0 %726
        %728 = vrot.lane.b32.xlu0 %v662, 64
        %v729 = vpop.permute.xlu0 %728
        %730 = vrot.lane.b32.xlu0 %v664, 64
        %v731 = vpop.permute.xlu0 %730
        %s736 = scalar_lea.vmem %s309, 16 [#allocation4]
        %737 = vst.msk [vmem:[%s736] sm:$0xf] %vm665, %v725
        %738 = vst.msk [vmem:[%s736 + $0x4] sm:$0xf] %vm665, %v727
        %739 = vst.msk [vmem:[%s736 + $0x8] sm:$0xf] %vm665, %v729
        %740 = vst.msk [vmem:[%s736 + $0xc] sm:$0xf] %vm665, %v731
        %s741 = sand.u32 %s153, 1
        %s742 = sand.u32 %s153, 1
        %s743 = smul.addr %s742, 32
        %s744 = scalar_lea.vmem [#allocation2], %s743
        %s745 = sand.u32 %s181, 1
        %s746 = sand.u32 %s181, 1
        %s747 = smul.addr %s746, 32
        %s748 = scalar_lea.vmem [#allocation3], %s747
        %s749 = sand.u32 %s209, 1
        %s750 = sand.u32 %s209, 1
        %s751 = smul.addr %s750, 32
        %s752 = scalar_lea.vmem [#allocation4], %s751
        // Predicated region
        $region41: #{siglip_vision_transformer.9} parent=39 // pred_check
          %p753 = pneg %p163
        $region42: #{siglip_vision_transformer.9} parent=39 // pred_check_branch
          %755 = sbr.rel (%p753) target = $region44
        $region43: #{siglip_vision_transformer.9} parent=39 // pred_region
          %s756 = smul.u32 4, %s24
          %s757 = smul.addr %s23, 24
          %s758 = sadd.s32 %s756, %s757
          %s759 = smul.addr %s758, 4
          %s760 = scalar_lea.vmem %s5, %s759
          // Predicated region
          $region45: #{siglip_vision_transformer.9} parent=43 // pred_check
            _
          $region46: #{siglip_vision_transformer.9} parent=43 // pred_check_branch
            %762 = sbr.rel (0) target = $region48
          $region47: #{siglip_vision_transformer.9} parent=43 // pred_region
            // Predicated region
            $region49: #{siglip_vision_transformer.9} parent=47 // pred_check
              _
            $region50: #{siglip_vision_transformer.9} parent=47 // pred_check_branch
              %764 = sbr.rel target = $region52
            $region51: #{siglip_vision_transformer.9} parent=47 // pred_region
              // Predicated region
              $region64: #{siglip_vision_transformer.9} parent=51 // pred_check
                _
              $region65: #{siglip_vision_transformer.9} parent=51 // pred_check_branch
                %794 = sbr.rel (0) target = $region67
              $region66: #{siglip_vision_transformer.9} parent=51 // pred_region
                loop: start=0, step=1, limit=1
                $region68: #{siglip_vision_transformer.9} parent=66 // loop_pre_header
                  _
                $region69: #{siglip_vision_transformer.9} parent=66 // loop_header
                  %s796 = sphi 0, %s800
                  %p797 = scmp.ge.s32.totalorder %s796, 1
                  %s801 = sphi %s744, %s744
                  %s802 = sphi %s760, %s760
                $region70: #{siglip_vision_transformer.9} parent=66 // loop_header_branch
                  %799 = sbr.rel (%p797) target = $region74
                $region71: #{siglip_vision_transformer.9} parent=66 // loop_body
                  _
                $region72: #{siglip_vision_transformer.9} parent=66 // loop_footer
                  %s800 = sadd.s32 1, %s796
                $region73: #{siglip_vision_transformer.9} parent=66 // loop_footer_branch
                  %795 = sbr.rel target = $region69
                $region74: #{siglip_vision_transformer.9} parent=66 // loop_exit
                  _
                %s804 = ssub.s32 16, 1
                loop: start=0, step=1, limit=1
                $region75: #{siglip_vision_transformer.9} parent=66 // loop_pre_header
                  _
                $region76: #{siglip_vision_transformer.9} parent=66 // loop_header
                  %s806 = sphi 0, %s810
                  %p807 = scmp.ge.s32.totalorder %s806, 1
                  %s811 = sphi %s744, %s744
                  %s812 = sphi %s760, %s760
                $region77: #{siglip_vision_transformer.9} parent=66 // loop_header_branch
                  %809 = sbr.rel (%p807) target = $region81
                $region78: #{siglip_vision_transformer.9} parent=66 // loop_body
                  %v813 = vld [vmem:[%s811] sm:%s804]
                  %814 = vst [vmem:[%s812] sm:%s804] %v813
                  %v815 = vld [vmem:[%s811 + $0x4] sm:%s804]
                  %816 = vst [vmem:[%s812 + $0x4] sm:%s804] %v815
                  %v817 = vld [vmem:[%s811 + $0x8] sm:%s804]
                  %818 = vst [vmem:[%s812 + $0x8] sm:%s804] %v817
                  %v819 = vld [vmem:[%s811 + $0xc] sm:%s804]
                  %820 = vst [vmem:[%s812 + $0xc] sm:%s804] %v819
                  %v821 = vld [vmem:[%s811 + $0x10] sm:%s804]
                  %822 = vst [vmem:[%s812 + $0x30] sm:%s804] %v821
                  %v823 = vld [vmem:[%s811 + $0x14] sm:%s804]
                  %824 = vst [vmem:[%s812 + $0x34] sm:%s804] %v823
                  %v825 = vld [vmem:[%s811 + $0x18] sm:%s804]
                  %826 = vst [vmem:[%s812 + $0x38] sm:%s804] %v825
                  %v827 = vld [vmem:[%s811 + $0x1c] sm:%s804]
                  %828 = vst [vmem:[%s812 + $0x3c] sm:%s804] %v827
                $region79: #{siglip_vision_transformer.9} parent=66 // loop_footer
                  %s810 = sadd.s32 1, %s806
                $region80: #{siglip_vision_transformer.9} parent=66 // loop_footer_branch
                  %805 = sbr.rel target = $region76
                $region81: #{siglip_vision_transformer.9} parent=66 // loop_exit
                  _
              $region67: #{siglip_vision_transformer.9} parent=51 // pred_fallthru
                _
            $region52: #{siglip_vision_transformer.9} parent=47 // pred_fallthru
              _
            // Predicated region
            $region53: #{siglip_vision_transformer.9} parent=47 // pred_check
              _
            $region54: #{siglip_vision_transformer.9} parent=47 // pred_check_branch
              %766 = sbr.rel (0) target = $region56
            $region55: #{siglip_vision_transformer.9} parent=47 // pred_region
              %s768 = ssub.s32 16, 1
              loop: start=0, step=1, limit=1
              $region57: #{siglip_vision_transformer.9} parent=55 // loop_pre_header
                _
              $region58: #{siglip_vision_transformer.9} parent=55 // loop_header
                %s770 = sphi 0, %s774
                %p771 = scmp.ge.s32.totalorder %s770, 1
                %s775 = sphi %s744, %s744
                %s776 = sphi %s760, %s760
              $region59: #{siglip_vision_transformer.9} parent=55 // loop_header_branch
                %773 = sbr.rel (%p771) target = $region63
              $region60: #{siglip_vision_transformer.9} parent=55 // loop_body
                %v777 = vld [vmem:[%s775] sm:%s768]
                %778 = vst [vmem:[%s776] sm:%s768] %v777
                %v779 = vld [vmem:[%s775 + $0x4] sm:%s768]
                %780 = vst [vmem:[%s776 + $0x4] sm:%s768] %v779
                %v781 = vld [vmem:[%s775 + $0x8] sm:%s768]
                %782 = vst [vmem:[%s776 + $0x8] sm:%s768] %v781
                %v783 = vld [vmem:[%s775 + $0xc] sm:%s768]
                %784 = vst [vmem:[%s776 + $0xc] sm:%s768] %v783
                %v785 = vld [vmem:[%s775 + $0x10] sm:%s768]
                %786 = vst [vmem:[%s776 + $0x30] sm:%s768] %v785
                %v787 = vld [vmem:[%s775 + $0x14] sm:%s768]
                %788 = vst [vmem:[%s776 + $0x34] sm:%s768] %v787
                %v789 = vld [vmem:[%s775 + $0x18] sm:%s768]
                %790 = vst [vmem:[%s776 + $0x38] sm:%s768] %v789
                %v791 = vld [vmem:[%s775 + $0x1c] sm:%s768]
                %792 = vst [vmem:[%s776 + $0x3c] sm:%s768] %v791
              $region61: #{siglip_vision_transformer.9} parent=55 // loop_footer
                %s774 = sadd.s32 1, %s770
              $region62: #{siglip_vision_transformer.9} parent=55 // loop_footer_branch
                %769 = sbr.rel target = $region58
              $region63: #{siglip_vision_transformer.9} parent=55 // loop_exit
                _
            $region56: #{siglip_vision_transformer.9} parent=47 // pred_fallthru
              _
          $region48: #{siglip_vision_transformer.9} parent=43 // pred_fallthru
            _
          %829 = vnop
        $region44: #{siglip_vision_transformer.9} parent=39 // pred_fallthru
          _
        // Predicated region
        $region82: #{siglip_vision_transformer.9} parent=39 // pred_check
          %p830 = pneg %p191
        $region83: #{siglip_vision_transformer.9} parent=39 // pred_check_branch
          %832 = sbr.rel (%p830) target = $region85
        $region84: #{siglip_vision_transformer.9} parent=39 // pred_region
          %s833 = smul.u32 4, %s24
          %s834 = smul.addr %s23, 24
          %s835 = sadd.s32 %s833, %s834
          %s836 = smul.addr %s835, 4
          %s837 = scalar_lea.vmem %s6, %s836
          // Predicated region
          $region86: #{siglip_vision_transformer.9} parent=84 // pred_check
            _
          $region87: #{siglip_vision_transformer.9} parent=84 // pred_check_branch
            %839 = sbr.rel (0) target = $region89
          $region88: #{siglip_vision_transformer.9} parent=84 // pred_region
            // Predicated region
            $region90: #{siglip_vision_transformer.9} parent=88 // pred_check
              _
            $region91: #{siglip_vision_transformer.9} parent=88 // pred_check_branch
              %841 = sbr.rel target = $region93
            $region92: #{siglip_vision_transformer.9} parent=88 // pred_region
              // Predicated region
              $region105: #{siglip_vision_transformer.9} parent=92 // pred_check
                _
              $region106: #{siglip_vision_transformer.9} parent=92 // pred_check_branch
                %871 = sbr.rel (0) target = $region108
              $region107: #{siglip_vision_transformer.9} parent=92 // pred_region
                loop: start=0, step=1, limit=1
                $region109: #{siglip_vision_transformer.9} parent=107 // loop_pre_header
                  _
                $region110: #{siglip_vision_transformer.9} parent=107 // loop_header
                  %s873 = sphi 0, %s877
                  %p874 = scmp.ge.s32.totalorder %s873, 1
                  %s878 = sphi %s748, %s748
                  %s879 = sphi %s837, %s837
                $region111: #{siglip_vision_transformer.9} parent=107 // loop_header_branch
                  %876 = sbr.rel (%p874) target = $region115
                $region112: #{siglip_vision_transformer.9} parent=107 // loop_body
                  _
                $region113: #{siglip_vision_transformer.9} parent=107 // loop_footer
                  %s877 = sadd.s32 1, %s873
                $region114: #{siglip_vision_transformer.9} parent=107 // loop_footer_branch
                  %872 = sbr.rel target = $region110
                $region115: #{siglip_vision_transformer.9} parent=107 // loop_exit
                  _
                %s881 = ssub.s32 16, 1
                loop: start=0, step=1, limit=1
                $region116: #{siglip_vision_transformer.9} parent=107 // loop_pre_header
                  _
                $region117: #{siglip_vision_transformer.9} parent=107 // loop_header
                  %s883 = sphi 0, %s887
                  %p884 = scmp.ge.s32.totalorder %s883, 1
                  %s888 = sphi %s748, %s748
                  %s889 = sphi %s837, %s837
                $region118: #{siglip_vision_transformer.9} parent=107 // loop_header_branch
                  %886 = sbr.rel (%p884) target = $region122
                $region119: #{siglip_vision_transformer.9} parent=107 // loop_body
                  %v890 = vld [vmem:[%s888] sm:%s881]
                  %891 = vst [vmem:[%s889] sm:%s881] %v890
                  %v892 = vld [vmem:[%s888 + $0x4] sm:%s881]
                  %893 = vst [vmem:[%s889 + $0x4] sm:%s881] %v892
                  %v894 = vld [vmem:[%s888 + $0x8] sm:%s881]
                  %895 = vst [vmem:[%s889 + $0x8] sm:%s881] %v894
                  %v896 = vld [vmem:[%s888 + $0xc] sm:%s881]
                  %897 = vst [vmem:[%s889 + $0xc] sm:%s881] %v896
                  %v898 = vld [vmem:[%s888 + $0x10] sm:%s881]
                  %899 = vst [vmem:[%s889 + $0x30] sm:%s881] %v898
                  %v900 = vld [vmem:[%s888 + $0x14] sm:%s881]
                  %901 = vst [vmem:[%s889 + $0x34] sm:%s881] %v900
                  %v902 = vld [vmem:[%s888 + $0x18] sm:%s881]
                  %903 = vst [vmem:[%s889 + $0x38] sm:%s881] %v902
                  %v904 = vld [vmem:[%s888 + $0x1c] sm:%s881]
                  %905 = vst [vmem:[%s889 + $0x3c] sm:%s881] %v904
                $region120: #{siglip_vision_transformer.9} parent=107 // loop_footer
                  %s887 = sadd.s32 1, %s883
                $region121: #{siglip_vision_transformer.9} parent=107 // loop_footer_branch
                  %882 = sbr.rel target = $region117
                $region122: #{siglip_vision_transformer.9} parent=107 // loop_exit
                  _
              $region108: #{siglip_vision_transformer.9} parent=92 // pred_fallthru
                _
            $region93: #{siglip_vision_transformer.9} parent=88 // pred_fallthru
              _
            // Predicated region
            $region94: #{siglip_vision_transformer.9} parent=88 // pred_check
              _
            $region95: #{siglip_vision_transformer.9} parent=88 // pred_check_branch
              %843 = sbr.rel (0) target = $region97
            $region96: #{siglip_vision_transformer.9} parent=88 // pred_region
              %s845 = ssub.s32 16, 1
              loop: start=0, step=1, limit=1
              $region98: #{siglip_vision_transformer.9} parent=96 // loop_pre_header
                _
              $region99: #{siglip_vision_transformer.9} parent=96 // loop_header
                %s847 = sphi 0, %s851
                %p848 = scmp.ge.s32.totalorder %s847, 1
                %s852 = sphi %s748, %s748
                %s853 = sphi %s837, %s837
              $region100: #{siglip_vision_transformer.9} parent=96 // loop_header_branch
                %850 = sbr.rel (%p848) target = $region104
              $region101: #{siglip_vision_transformer.9} parent=96 // loop_body
                %v854 = vld [vmem:[%s852] sm:%s845]
                %855 = vst [vmem:[%s853] sm:%s845] %v854
                %v856 = vld [vmem:[%s852 + $0x4] sm:%s845]
                %857 = vst [vmem:[%s853 + $0x4] sm:%s845] %v856
                %v858 = vld [vmem:[%s852 + $0x8] sm:%s845]
                %859 = vst [vmem:[%s853 + $0x8] sm:%s845] %v858
                %v860 = vld [vmem:[%s852 + $0xc] sm:%s845]
                %861 = vst [vmem:[%s853 + $0xc] sm:%s845] %v860
                %v862 = vld [vmem:[%s852 + $0x10] sm:%s845]
                %863 = vst [vmem:[%s853 + $0x30] sm:%s845] %v862
                %v864 = vld [vmem:[%s852 + $0x14] sm:%s845]
                %865 = vst [vmem:[%s853 + $0x34] sm:%s845] %v864
                %v866 = vld [vmem:[%s852 + $0x18] sm:%s845]
                %867 = vst [vmem:[%s853 + $0x38] sm:%s845] %v866
                %v868 = vld [vmem:[%s852 + $0x1c] sm:%s845]
                %869 = vst [vmem:[%s853 + $0x3c] sm:%s845] %v868
              $region102: #{siglip_vision_transformer.9} parent=96 // loop_footer
                %s851 = sadd.s32 1, %s847
              $region103: #{siglip_vision_transformer.9} parent=96 // loop_footer_branch
                %846 = sbr.rel target = $region99
              $region104: #{siglip_vision_transformer.9} parent=96 // loop_exit
                _
            $region97: #{siglip_vision_transformer.9} parent=88 // pred_fallthru
              _
          $region89: #{siglip_vision_transformer.9} parent=84 // pred_fallthru
            _
          %906 = vnop
        $region85: #{siglip_vision_transformer.9} parent=39 // pred_fallthru
          _
        // Predicated region
        $region123: #{siglip_vision_transformer.9} parent=39 // pred_check
          %p907 = pneg %p219
        $region124: #{siglip_vision_transformer.9} parent=39 // pred_check_branch
          %909 = sbr.rel (%p907) target = $region126
        $region125: #{siglip_vision_transformer.9} parent=39 // pred_region
          %s910 = smul.u32 4, %s24
          %s911 = smul.addr %s23, 24
          %s912 = sadd.s32 %s910, %s911
          %s913 = smul.addr %s912, 4
          %s914 = scalar_lea.vmem %s7, %s913
          // Predicated region
          $region127: #{siglip_vision_transformer.9} parent=125 // pred_check
            _
          $region128: #{siglip_vision_transformer.9} parent=125 // pred_check_branch
            %916 = sbr.rel (0) target = $region130
          $region129: #{siglip_vision_transformer.9} parent=125 // pred_region
            // Predicated region
            $region131: #{siglip_vision_transformer.9} parent=129 // pred_check
              _
            $region132: #{siglip_vision_transformer.9} parent=129 // pred_check_branch
              %918 = sbr.rel target = $region134
            $region133: #{siglip_vision_transformer.9} parent=129 // pred_region
              // Predicated region
              $region146: #{siglip_vision_transformer.9} parent=133 // pred_check
                _
              $region147: #{siglip_vision_transformer.9} parent=133 // pred_check_branch
                %948 = sbr.rel (0) target = $region149
              $region148: #{siglip_vision_transformer.9} parent=133 // pred_region
                loop: start=0, step=1, limit=1
                $region150: #{siglip_vision_transformer.9} parent=148 // loop_pre_header
                  _
                $region151: #{siglip_vision_transformer.9} parent=148 // loop_header
                  %s950 = sphi 0, %s954
                  %p951 = scmp.ge.s32.totalorder %s950, 1
                  %s955 = sphi %s752, %s752
                  %s956 = sphi %s914, %s914
                $region152: #{siglip_vision_transformer.9} parent=148 // loop_header_branch
                  %953 = sbr.rel (%p951) target = $region156
                $region153: #{siglip_vision_transformer.9} parent=148 // loop_body
                  _
                $region154: #{siglip_vision_transformer.9} parent=148 // loop_footer
                  %s954 = sadd.s32 1, %s950
                $region155: #{siglip_vision_transformer.9} parent=148 // loop_footer_branch
                  %949 = sbr.rel target = $region151
                $region156: #{siglip_vision_transformer.9} parent=148 // loop_exit
                  _
                %s958 = ssub.s32 16, 1
                loop: start=0, step=1, limit=1
                $region157: #{siglip_vision_transformer.9} parent=148 // loop_pre_header
                  _
                $region158: #{siglip_vision_transformer.9} parent=148 // loop_header
                  %s960 = sphi 0, %s964
                  %p961 = scmp.ge.s32.totalorder %s960, 1
                  %s965 = sphi %s752, %s752
                  %s966 = sphi %s914, %s914
                $region159: #{siglip_vision_transformer.9} parent=148 // loop_header_branch
                  %963 = sbr.rel (%p961) target = $region163
                $region160: #{siglip_vision_transformer.9} parent=148 // loop_body
                  %v967 = vld [vmem:[%s965] sm:%s958]
                  %968 = vst [vmem:[%s966] sm:%s958] %v967
                  %v969 = vld [vmem:[%s965 + $0x4] sm:%s958]
                  %970 = vst [vmem:[%s966 + $0x4] sm:%s958] %v969
                  %v971 = vld [vmem:[%s965 + $0x8] sm:%s958]
                  %972 = vst [vmem:[%s966 + $0x8] sm:%s958] %v971
                  %v973 = vld [vmem:[%s965 + $0xc] sm:%s958]
                  %974 = vst [vmem:[%s966 + $0xc] sm:%s958] %v973
                  %v975 = vld [vmem:[%s965 + $0x10] sm:%s958]
                  %976 = vst [vmem:[%s966 + $0x30] sm:%s958] %v975
                  %v977 = vld [vmem:[%s965 + $0x14] sm:%s958]
                  %978 = vst [vmem:[%s966 + $0x34] sm:%s958] %v977
                  %v979 = vld [vmem:[%s965 + $0x18] sm:%s958]
                  %980 = vst [vmem:[%s966 + $0x38] sm:%s958] %v979
                  %v981 = vld [vmem:[%s965 + $0x1c] sm:%s958]
                  %982 = vst [vmem:[%s966 + $0x3c] sm:%s958] %v981
                $region161: #{siglip_vision_transformer.9} parent=148 // loop_footer
                  %s964 = sadd.s32 1, %s960
                $region162: #{siglip_vision_transformer.9} parent=148 // loop_footer_branch
                  %959 = sbr.rel target = $region158
                $region163: #{siglip_vision_transformer.9} parent=148 // loop_exit
                  _
              $region149: #{siglip_vision_transformer.9} parent=133 // pred_fallthru
                _
            $region134: #{siglip_vision_transformer.9} parent=129 // pred_fallthru
              _
            // Predicated region
            $region135: #{siglip_vision_transformer.9} parent=129 // pred_check
              _
            $region136: #{siglip_vision_transformer.9} parent=129 // pred_check_branch
              %920 = sbr.rel (0) target = $region138
            $region137: #{siglip_vision_transformer.9} parent=129 // pred_region
              %s922 = ssub.s32 16, 1
              loop: start=0, step=1, limit=1
              $region139: #{siglip_vision_transformer.9} parent=137 // loop_pre_header
                _
              $region140: #{siglip_vision_transformer.9} parent=137 // loop_header
                %s924 = sphi 0, %s928
                %p925 = scmp.ge.s32.totalorder %s924, 1
                %s929 = sphi %s752, %s752
                %s930 = sphi %s914, %s914
              $region141: #{siglip_vision_transformer.9} parent=137 // loop_header_branch
                %927 = sbr.rel (%p925) target = $region145
              $region142: #{siglip_vision_transformer.9} parent=137 // loop_body
                %v931 = vld [vmem:[%s929] sm:%s922]
                %932 = vst [vmem:[%s930] sm:%s922] %v931
                %v933 = vld [vmem:[%s929 + $0x4] sm:%s922]
                %934 = vst [vmem:[%s930 + $0x4] sm:%s922] %v933
                %v935 = vld [vmem:[%s929 + $0x8] sm:%s922]
                %936 = vst [vmem:[%s930 + $0x8] sm:%s922] %v935
                %v937 = vld [vmem:[%s929 + $0xc] sm:%s922]
                %938 = vst [vmem:[%s930 + $0xc] sm:%s922] %v937
                %v939 = vld [vmem:[%s929 + $0x10] sm:%s922]
                %940 = vst [vmem:[%s930 + $0x30] sm:%s922] %v939
                %v941 = vld [vmem:[%s929 + $0x14] sm:%s922]
                %942 = vst [vmem:[%s930 + $0x34] sm:%s922] %v941
                %v943 = vld [vmem:[%s929 + $0x18] sm:%s922]
                %944 = vst [vmem:[%s930 + $0x38] sm:%s922] %v943
                %v945 = vld [vmem:[%s929 + $0x1c] sm:%s922]
                %946 = vst [vmem:[%s930 + $0x3c] sm:%s922] %v945
              $region143: #{siglip_vision_transformer.9} parent=137 // loop_footer
                %s928 = sadd.s32 1, %s924
              $region144: #{siglip_vision_transformer.9} parent=137 // loop_footer_branch
                %923 = sbr.rel target = $region140
              $region145: #{siglip_vision_transformer.9} parent=137 // loop_exit
                _
            $region138: #{siglip_vision_transformer.9} parent=129 // pred_fallthru
              _
          $region130: #{siglip_vision_transformer.9} parent=125 // pred_fallthru
            _
          %983 = vnop
        $region126: #{siglip_vision_transformer.9} parent=39 // pred_fallthru
          _
      $region40: #{siglip_vision_transformer.9} parent=5 // pred_fallthru
        _
      %p984 = scmp.le.s32.totalorder 2, %s14
      // Predicated region
      $region164: #{siglip_vision_transformer.9} parent=5 // pred_check
        %p985 = pneg %p984
      $region165: #{siglip_vision_transformer.9} parent=5 // pred_check_branch
        %987 = sbr.rel (%p985) target = $region167
      $region166: #{siglip_vision_transformer.9} parent=5 // pred_region
        %s988 = ssub.s32 %s14, 2
        // Predicated region
        $region168: #{siglip_vision_transformer.9} parent=166 // pred_check
          %p989 = pneg %p169
        $region169: #{siglip_vision_transformer.9} parent=166 // pred_check_branch
          %991 = sbr.rel (%p989) target = $region171
        $region170: #{siglip_vision_transformer.9} parent=166 // pred_region
          %s992 = sand.u32 %s154, 1
          %s993 = sand.u32 %s154, 1
          %s994 = smul.addr %s993, 32
          %s995 = scalar_lea.vmem [#allocation2], %s994
        $region171: #{siglip_vision_transformer.9} parent=166 // pred_fallthru
          _
        // Predicated region
        $region172: #{siglip_vision_transformer.9} parent=166 // pred_check
          %p996 = pneg %p197
        $region173: #{siglip_vision_transformer.9} parent=166 // pred_check_branch
          %998 = sbr.rel (%p996) target = $region175
        $region174: #{siglip_vision_transformer.9} parent=166 // pred_region
          %s999 = sand.u32 %s182, 1
          %s1000 = sand.u32 %s182, 1
          %s1001 = smul.addr %s1000, 32
          %s1002 = scalar_lea.vmem [#allocation3], %s1001
        $region175: #{siglip_vision_transformer.9} parent=166 // pred_fallthru
          _
        // Predicated region
        $region176: #{siglip_vision_transformer.9} parent=166 // pred_check
          %p1003 = pneg %p225
        $region177: #{siglip_vision_transformer.9} parent=166 // pred_check_branch
          %1005 = sbr.rel (%p1003) target = $region179
        $region178: #{siglip_vision_transformer.9} parent=166 // pred_region
          %s1006 = sand.u32 %s210, 1
          %s1007 = sand.u32 %s210, 1
          %s1008 = smul.addr %s1007, 32
          %s1009 = scalar_lea.vmem [#allocation4], %s1008
        $region179: #{siglip_vision_transformer.9} parent=166 // pred_fallthru
          _
      $region167: #{siglip_vision_transformer.9} parent=5 // pred_fallthru
        _
    $region6: #{siglip_vision_transformer.9} parent=1 // loop_footer
      %s18 = sadd.s32 1, %s14
    $region7: #{siglip_vision_transformer.9} parent=1 // loop_footer_branch
      %13 = sbr.rel target = $region3
    $region8: #{siglip_vision_transformer.9} parent=1 // loop_exit
      _

// kernel: siglip_vision_transformer.15
$region0: #{siglip_vision_transformer.15}
  #allocation0 [shape = 'u32[]', space=smem, size = 0x4, offset = 0x4, fixed_abs, tag = 'smem constant byte address 0x4 - core index']
  #allocation1 [shape = 'u32[72,128]{1,0:T(1,128)}', space=vmem, size = 0x9000, scoped, tag = 'internal scratch']
  %s0 = inlined_call_operand.vmem [shape: f32[2,96,128], index: 0, kind: input, shape index: {}, may-alias: {0,3}]
  %s1 = inlined_call_operand.vmem [shape: f32[1,128], index: 1, kind: input, shape index: {}]
  %s2 = inlined_call_operand.vmem [shape: f32[1,128], index: 2, kind: input, shape index: {}]
  %s3 = inlined_call_operand.vmem [shape: f32[2,96,128], index: 3, kind: output, shape index: {}, may-alias: {0,3}]
  %s4 = sld [smem:[#allocation0]]
  $region45: #{siglip_vision_transformer.15} parent=0
    _
  %s6 = ssub.s32 1, %s4
  %s7 = scalar_select 0, %s6, %s4
  loop: start=0, step=1, limit=8
  $region2: #{siglip_vision_transformer.15} parent=0 // loop_pre_header
    _
  $region3: #{siglip_vision_transformer.15} parent=0 // loop_header
    %s9 = sphi 0, %s13
    %p10 = scmp.ge.s32.totalorder %s9, 8
    %s16 = sphi 0, %s28
    %s17 = sphi 0, %s24
    %s18 = sphi 0, %s16
    %s19 = sphi 0, %s17
    %s20 = sphi 0, %s18
    %s21 = sphi 0, %s19
    %s33 = sphi 0, %s35
    %s36 = sphi 0, %s33
    %s37 = sphi 0, %s36
    %s53 = sphi 0, %s37
    %s57 = sphi 0, %s57
    %s59 = sphi 0, %s57
    %s60 = sphi 0, %s59
    %s74 = sphi 0, %s60
    %s78 = sphi 0, %s78
    %s80 = sphi 0, %s78
    %s81 = sphi 0, %s80
    %s95 = sphi 0, %s81
    %s103 = sphi 0, %s105
    %s106 = sphi 0, %s103
    %s107 = sphi 0, %s106
    %s123 = sphi 0, %s107
  $region4: #{siglip_vision_transformer.15} parent=0 // loop_header_branch
    %12 = sbr.rel (%p10) target = $region8
  $region5: #{siglip_vision_transformer.15} parent=0 // loop_body
    %s14 = ssub.s32 %s9, 1
    %s15 = ssub.s32 %s9, 2
    %s22 = sadd.s32 1, %s17
    %p23 = scmp.ge.s32.totalorder %s22, 3
    %s24 = scalar_select %p23, 0, %s22
    %s25 = sadd.s32 1, %s16
    %s26 = scalar_select %p23, %s25, %s16
    %p27 = scmp.ge.s32.totalorder %s26, 2
    %s28 = scalar_select %p27, 0, %s26
    %s29 = ssub.s32 %s16, %s28
    %s30 = ssub.s32 %s17, %s24
    %s31 = sor.u32 %s29, %s30
    %p32 = scmp.eq.s32.totalorder %s31, 0
    %s34 = sadd.s32 %s33, 1
    %s35 = scalar_select %p32, %s33, %s34
    %p38 = pneg %p32
    %p39 = scmp.eq.s32.totalorder %s9, 5
    %p40 = por %p38, %p39
    %p41 = scmp.ne.s32.totalorder %s33, %s36
    %p42 = scmp.eq.s32.totalorder %s9, 0
    %p43 = por %p41, %p42
    %p44 = scmp.ne.s32.totalorder %s33, %s36
    %p45 = scmp.eq.s32.totalorder %s14, 5
    %p46 = por %p44, %p45
    %p47 = scmp.ne.s32.totalorder %s36, %s37
    %p48 = scmp.eq.s32.totalorder %s14, 0
    %p49 = por %p47, %p48
    %p50 = scmp.ne.s32.totalorder %s36, %s37
    %p51 = scmp.eq.s32.totalorder %s15, 5
    %p52 = por %p50, %p51
    %p54 = scmp.ne.s32.totalorder %s37, %s53
    %p55 = scmp.eq.s32.totalorder %s15, 0
    %p56 = por %p54, %p55
    %s58 = sadd.s32 %s57, 1
    %p61 = scmp.eq.s32.totalorder %s9, 5
    %p62 = scmp.ne.s32.totalorder %s57, %s59
    %p63 = scmp.eq.s32.totalorder %s9, 0
    %p64 = por %p62, %p63
    %p65 = scmp.ne.s32.totalorder %s57, %s59
    %p66 = scmp.eq.s32.totalorder %s14, 5
    %p67 = por %p65, %p66
    %p68 = scmp.ne.s32.totalorder %s59, %s60
    %p69 = scmp.eq.s32.totalorder %s14, 0
    %p70 = por %p68, %p69
    %p71 = scmp.ne.s32.totalorder %s59, %s60
    %p72 = scmp.eq.s32.totalorder %s15, 5
    %p73 = por %p71, %p72
    %p75 = scmp.ne.s32.totalorder %s60, %s74
    %p76 = scmp.eq.s32.totalorder %s15, 0
    %p77 = por %p75, %p76
    %s79 = sadd.s32 %s78, 1
    %p82 = scmp.eq.s32.totalorder %s9, 5
    %p83 = scmp.ne.s32.totalorder %s78, %s80
    %p84 = scmp.eq.s32.totalorder %s9, 0
    %p85 = por %p83, %p84
    %p86 = scmp.ne.s32.totalorder %s78, %s80
    %p87 = scmp.eq.s32.totalorder %s14, 5
    %p88 = por %p86, %p87
    %p89 = scmp.ne.s32.totalorder %s80, %s81
    %p90 = scmp.eq.s32.totalorder %s14, 0
    %p91 = por %p89, %p90
    %p92 = scmp.ne.s32.totalorder %s80, %s81
    %p93 = scmp.eq.s32.totalorder %s15, 5
    %p94 = por %p92, %p93
    %p96 = scmp.ne.s32.totalorder %s81, %s95
    %p97 = scmp.eq.s32.totalorder %s15, 0
    %p98 = por %p96, %p97
    %s99 = ssub.s32 %s16, %s28
    %s100 = ssub.s32 %s17, %s24
    %s101 = sor.u32 %s99, %s100
    %p102 = scmp.eq.s32.totalorder %s101, 0
    %s104 = sadd.s32 %s103, 1
    %s105 = scalar_select %p102, %s103, %s104
    %p108 = pneg %p102
    %p109 = scmp.eq.s32.totalorder %s9, 5
    %p110 = por %p108, %p109
    %p111 = scmp.ne.s32.totalorder %s103, %s106
    %p112 = scmp.eq.s32.totalorder %s9, 0
    %p113 = por %p111, %p112
    %p114 = scmp.ne.s32.totalorder %s103, %s106
    %p115 = scmp.eq.s32.totalorder %s14, 5
    %p116 = por %p114, %p115
    %p117 = scmp.ne.s32.totalorder %s106, %s107
    %p118 = scmp.eq.s32.totalorder %s14, 0
    %p119 = por %p117, %p118
    %p120 = scmp.ne.s32.totalorder %s106, %s107
    %p121 = scmp.eq.s32.totalorder %s15, 5
    %p122 = por %p120, %p121
    %p124 = scmp.ne.s32.totalorder %s107, %s123
    %p125 = scmp.eq.s32.totalorder %s15, 0
    %p126 = por %p124, %p125
    %p127 = scmp.le.s32.totalorder 1, %s9
    %p128 = scmp.lt.s32.totalorder %s9, 7
    %p129 = pnand %p127, %p128
    %p130 = pneg %p129
    // Predicated region
    $region9: #{siglip_vision_transformer.15} parent=5 // pred_check
      _
    $region10: #{siglip_vision_transformer.15} parent=5 // pred_check_branch
      %132 = sbr.rel (%p129) target = $region12
    $region11: #{siglip_vision_transformer.15} parent=5 // pred_region
      %s133 = ssub.s32 %s9, 1
      // Predicated region
      $region13: #{siglip_vision_transformer.15} parent=11 // pred_check
        %p134 = pneg %p70
      $region14: #{siglip_vision_transformer.15} parent=11 // pred_check_branch
        %136 = sbr.rel (%p134) target = $region16
      $region15: #{siglip_vision_transformer.15} parent=11 // pred_region
        _
      $region16: #{siglip_vision_transformer.15} parent=11 // pred_fallthru
        _
      // Predicated region
      $region17: #{siglip_vision_transformer.15} parent=11 // pred_check
        %p137 = pneg %p91
      $region18: #{siglip_vision_transformer.15} parent=11 // pred_check_branch
        %139 = sbr.rel (%p137) target = $region20
      $region19: #{siglip_vision_transformer.15} parent=11 // pred_region
        _
      $region20: #{siglip_vision_transformer.15} parent=11 // pred_fallthru
        _
    $region12: #{siglip_vision_transformer.15} parent=5 // pred_fallthru
      _
    %p140 = scmp.lt.s32.totalorder %s9, 6
    // Predicated region
    $region21: #{siglip_vision_transformer.15} parent=5 // pred_check
      %p141 = pneg %p140
    $region22: #{siglip_vision_transformer.15} parent=5 // pred_check_branch
      %143 = sbr.rel (%p141) target = $region24
    $region23: #{siglip_vision_transformer.15} parent=5 // pred_region
      // Predicated region
      $region25: #{siglip_vision_transformer.15} parent=23 // pred_check
        %p144 = pneg %p43
      $region26: #{siglip_vision_transformer.15} parent=23 // pred_check_branch
        %146 = sbr.rel (%p144) target = $region28
      $region27: #{siglip_vision_transformer.15} parent=23 // pred_region
        %s147 = smul.u32 4, %s17
        %p148 = scmp.lt.s32.totalorder %s16, 1
        %s149 = scalar_select %p148, %s16, 1
        %p150 = scmp.lt.s32.totalorder %s147, 11
        %s151 = scalar_select %p150, %s147, 11
        %s152 = smul.addr %s149, 12
        %s153 = sadd.s32 %s151, %s152
        %s154 = smul.addr %s153, 8
        %s155 = scalar_lea.vmem %s0, %s154
        %s156 = smul.u32 4, %s17
      $region28: #{siglip_vision_transformer.15} parent=23 // pred_fallthru
        _
    $region24: #{siglip_vision_transformer.15} parent=5 // pred_fallthru
      _
    %p157 = scmp.le.s32.totalorder 1, %s9
    %p158 = scmp.lt.s32.totalorder %s9, 7
    %p159 = pnand %p157, %p158
    %p160 = pneg %p159
    // Predicated region
    $region29: #{siglip_vision_transformer.15} parent=5 // pred_check
      _
    $region30: #{siglip_vision_transformer.15} parent=5 // pred_check_branch
      %162 = sbr.rel (%p159) target = $region32
    $region31: #{siglip_vision_transformer.15} parent=5 // pred_region
      %s163 = ssub.s32 %s9, 1
      %s164 = smul.u32 4, %s19
      %p165 = scmp.lt.s32.totalorder %s18, 1
      %s166 = scalar_select %p165, %s18, 1
      %p167 = scmp.lt.s32.totalorder %s164, 11
      %s168 = scalar_select %p167, %s164, 11
      %s169 = smul.addr %s166, 12
      %s170 = sadd.s32 %s168, %s169
      %s171 = smul.addr %s170, 8
      %s172 = scalar_lea.vmem %s0, %s171
      %p173 = pneg %p49
      %p174 = pneg %p46
      %p175 = pneg %p70
      %p176 = pneg %p67
      %p177 = pneg %p91
      %p178 = pneg %p88
      %p179 = pneg %p119
      %p180 = pneg %p116
      %s181 = smul.u32 4, %s19
      %p182 = scmp.lt.s32.totalorder %s18, 1
      %s183 = scalar_select %p182, %s18, 1
      %p184 = scmp.lt.s32.totalorder %s181, 11
      %s185 = scalar_select %p184, %s181, 11
      %s186 = smul.addr %s183, 12
      %s187 = sadd.s32 %s185, %s186
      %s188 = smul.addr %s187, 8
      %s189 = scalar_lea.vmem %s3, %s188
      %s190 = smul.u32 4, %s19
      %p191 = scmp.lt.s32.totalorder %s18, 1
      %s192 = scalar_select %p191, %s18, 1
      %p193 = scmp.lt.s32.totalorder %s190, 11
      %s194 = scalar_select %p193, %s190, 11
      %s195 = smul.addr %s192, 12
      %s196 = sadd.s32 %s194, %s195
      %s197 = smul.addr %s196, 8
      %s198 = scalar_lea.vmem %s0, %s197
      %s199 = smul.u32 4, %s19
      %s200 = smul.u32 4, %s19
      %p201 = scmp.lt.s32.totalorder %s18, 1
      %s202 = scalar_select %p201, %s18, 1
      %p203 = scmp.lt.s32.totalorder %s200, 11
      %s204 = scalar_select %p203, %s200, 11
      %s205 = smul.addr %s202, 12
      %s206 = sadd.s32 %s204, %s205
      %s207 = smul.addr %s206, 8
      %s208 = scalar_lea.vmem %s3, %s207
      %s209 = smul.u32 4, %s19
      %v210 = vld [vmem:[%s198] sm:$0xff]
      %v211 = vld [vmem:[%s198 + $0x8] sm:$0xff]
      %v212 = vld [vmem:[%s198 + $0x10] sm:$0xff]
      %v213 = vld [vmem:[%s198 + $0x18] sm:$0xff]
      %v214 = vld [vmem:[%s1] sm:$0x1]
      %v215 = vld [vmem:[%s2] sm:$0x1]
      %216 = vadd.xlane.f32.xlu0 %v210
      %v217 = vpop.xlane.xlu0 %216
      %218 = vadd.xlane.f32.xlu0 %v211
      %v219 = vpop.xlane.xlu0 %218
      %220 = vadd.xlane.f32.xlu0 %v212
      %v221 = vpop.xlane.xlu0 %220
      %222 = vadd.xlane.f32.xlu0 %v213
      %v223 = vpop.xlane.xlu0 %222
      %v224 = vrcp.pop 128.0
      %v225 = vmul.f32 128.0, %v224
      %v226 = vsub.f32 1.0, %v225
      %v227 = vmul.f32 %v224, %v226
      %v228 = vadd.f32 %v224, %v227
      %vm229 = vweird.f32 %v224
      %v230 = vsel %vm229, %v224, %v228
      %v231 = vmul.f32 %v217, %v230
      %v232 = vmul.f32 %v219, %v230
      %v233 = vmul.f32 %v221, %v230
      %v234 = vmul.f32 %v223, %v230
      %v235 = vsub.f32 %v210, %v231
      %v236 = vsub.f32 %v211, %v232
      %v237 = vsub.f32 %v212, %v233
      %v238 = vsub.f32 %v213, %v234
      %v239 = vmul.f32 %v235, %v235
      %v240 = vmul.f32 %v236, %v236
      %v241 = vmul.f32 %v237, %v237
      %v242 = vmul.f32 %v238, %v238
      %243 = vadd.xlane.f32.xlu0 %v239
      %v244 = vpop.xlane.xlu0 %243
      %245 = vadd.xlane.f32.xlu0 %v240
      %v246 = vpop.xlane.xlu0 %245
      %247 = vadd.xlane.f32.xlu0 %v241
      %v248 = vpop.xlane.xlu0 %247
      %249 = vadd.xlane.f32.xlu0 %v242
      %v250 = vpop.xlane.xlu0 %249
      %v251 = vmul.f32 %v244, %v230
      %v252 = vmul.f32 %v246, %v230
      %v253 = vmul.f32 %v248, %v230
      %v254 = vmul.f32 %v250, %v230
      %v255 = vadd.f32 %v251, 1e-06
      %v256 = vadd.f32 %v252, 1e-06
      %v257 = vadd.f32 %v253, 1e-06
      %v258 = vadd.f32 %v254, 1e-06
      %v259 = vrsqrt.pop %v255
      %v260 = vmul.f32 %v259, %v255
      %v261 = vmul.f32 %v260, %v259
      %v262 = vmul.f32 0.5, %v261
      %v263 = vsub.f32 1.5, %v262
      %v264 = vmul.f32 %v259, %v263
      %vm265 = vweird.f32 %v255
      %vm266 = vweird.f32 %v259
      %vm267 = vmor %vm265, %vm266
      %v268 = vsel %vm267, %v259, %v264
      %v269 = vrsqrt.pop %v256
      %v270 = vmul.f32 %v269, %v256
      %v271 = vmul.f32 %v270, %v269
      %v272 = vmul.f32 0.5, %v271
      %v273 = vsub.f32 1.5, %v272
      %v274 = vmul.f32 %v269, %v273
      %vm275 = vweird.f32 %v256
      %vm276 = vweird.f32 %v269
      %vm277 = vmor %vm275, %vm276
      %v278 = vsel %vm277, %v269, %v274
      %v279 = vrsqrt.pop %v257
      %v280 = vmul.f32 %v279, %v257
      %v281 = vmul.f32 %v280, %v279
      %v282 = vmul.f32 0.5, %v281
      %v283 = vsub.f32 1.5, %v282
      %v284 = vmul.f32 %v279, %v283
      %vm285 = vweird.f32 %v257
      %vm286 = vweird.f32 %v279
      %vm287 = vmor %vm285, %vm286
      %v288 = vsel %vm287, %v279, %v284
      %v289 = vrsqrt.pop %v258
      %v290 = vmul.f32 %v289, %v258
      %v291 = vmul.f32 %v290, %v289
      %v292 = vmul.f32 0.5, %v291
      %v293 = vsub.f32 1.5, %v292
      %v294 = vmul.f32 %v289, %v293
      %vm295 = vweird.f32 %v258
      %vm296 = vweird.f32 %v289
      %vm297 = vmor %vm295, %vm296
      %v298 = vsel %vm297, %v289, %v294
      %v299 = vmul.f32 %v235, %v268
      %v300 = vmul.f32 %v236, %v278
      %v301 = vmul.f32 %v237, %v288
      %v302 = vmul.f32 %v238, %v298
      %v304 = vperm.slane %v214, 0
      %v306 = vmul.f32 %v299, %v304
      %v307 = vmul.f32 %v300, %v304
      %v308 = vmul.f32 %v301, %v304
      %v309 = vmul.f32 %v302, %v304
      %v311 = vperm.slane %v215, 0
      %v313 = vadd.f32 %v306, %v311
      %v314 = vadd.f32 %v307, %v311
      %v315 = vadd.f32 %v308, %v311
      %v316 = vadd.f32 %v309, %v311
      %317 = vst [vmem:[%s208] sm:$0xff] %v313
      %318 = vst [vmem:[%s208 + $0x8] sm:$0xff] %v314
      %319 = vst [vmem:[%s208 + $0x10] sm:$0xff] %v315
      %320 = vst [vmem:[%s208 + $0x18] sm:$0xff] %v316
      %s321 = smul.u32 4, %s19
      %p322 = scmp.lt.s32.totalorder %s18, 1
      %s323 = scalar_select %p322, %s18, 1
      %p324 = scmp.lt.s32.totalorder %s321, 11
      %s325 = scalar_select %p324, %s321, 11
      %s326 = smul.addr %s323, 12
      %s327 = sadd.s32 %s325, %s326
      %s328 = smul.addr %s327, 8
      %s329 = scalar_lea.vmem %s3, %s328
      // Predicated region
      $region33: #{siglip_vision_transformer.15} parent=31 // pred_check
        %p330 = pneg %p116
      $region34: #{siglip_vision_transformer.15} parent=31 // pred_check_branch
        %332 = sbr.rel (%p330) target = $region36
      $region35: #{siglip_vision_transformer.15} parent=31 // pred_region
        %s333 = smul.u32 4, %s19
      $region36: #{siglip_vision_transformer.15} parent=31 // pred_fallthru
        _
    $region32: #{siglip_vision_transformer.15} parent=5 // pred_fallthru
      _
    %p334 = scmp.le.s32.totalorder 2, %s9
    // Predicated region
    $region37: #{siglip_vision_transformer.15} parent=5 // pred_check
      %p335 = pneg %p334
    $region38: #{siglip_vision_transformer.15} parent=5 // pred_check_branch
      %337 = sbr.rel (%p335) target = $region40
    $region39: #{siglip_vision_transformer.15} parent=5 // pred_region
      %s338 = ssub.s32 %s9, 2
      // Predicated region
      $region41: #{siglip_vision_transformer.15} parent=39 // pred_check
        %p339 = pneg %p122
      $region42: #{siglip_vision_transformer.15} parent=39 // pred_check_branch
        %341 = sbr.rel (%p339) target = $region44
      $region43: #{siglip_vision_transformer.15} parent=39 // pred_region
        %s342 = smul.u32 4, %s21
        %p343 = scmp.lt.s32.totalorder %s20, 1
        %s344 = scalar_select %p343, %s20, 1
        %p345 = scmp.lt.s32.totalorder %s342, 11
        %s346 = scalar_select %p345, %s342, 11
        %s347 = smul.addr %s344, 12
        %s348 = sadd.s32 %s346, %s347
        %s349 = smul.addr %s348, 8
        %s350 = scalar_lea.vmem %s3, %s349
      $region44: #{siglip_vision_transformer.15} parent=39 // pred_fallthru
        _
    $region40: #{siglip_vision_transformer.15} parent=5 // pred_fallthru
      _
  $region6: #{siglip_vision_transformer.15} parent=0 // loop_footer
    %s13 = sadd.s32 1, %s9
  $region7: #{siglip_vision_transformer.15} parent=0 // loop_footer_branch
    %8 = sbr.rel target = $region3
  $region8: #{siglip_vision_transformer.15} parent=0 // loop_exit
    _

// kernel: siglip_vision_transformer.10
$region0: #{siglip_vision_transformer.10}
  #allocation0 [shape = 'u32[]', space=smem, size = 0x4, offset = 0x4, fixed_abs, tag = 'smem constant byte address 0x4 - core index']
  #allocation1 [shape = 'u32[72,128]{1,0:T(1,128)}', space=vmem, size = 0x9000, scoped, tag = 'internal scratch']
  #allocation2 [shape = 'f32[32,128]{1,0:T(8,128)}', space=vmem, size = 0x4000, scoped, tag = 'scratch operand']
  #allocation3 [shape = 'bf16[32,64]{1,0:T(8,128)(2,1)}', space=vmem, size = 0x2000, scoped, tag = 'scratch operand']
  %s0 = inlined_call_operand.vmem [shape: f32[2,96,128], index: 0, kind: input, shape index: {}, may-alias: {0,6}]
  %s1 = inlined_call_operand.vmem [shape: bf16[2,2,96,64], index: 1, kind: input, shape index: {}]
  %s2 = inlined_call_operand.vmem [shape: bf16[2,2,96,64], index: 2, kind: input, shape index: {}]
  %s3 = inlined_call_operand.vmem [shape: bf16[2,2,96,64], index: 3, kind: input, shape index: {}]
  %s4 = inlined_call_operand.vmem [shape: bf16[2,64,128], index: 4, kind: input, shape index: {}]
  %s5 = inlined_call_operand.vmem [shape: f32[1,128], index: 5, kind: input, shape index: {}]
  %s6 = inlined_call_operand.vmem [shape: f32[2,96,128], index: 6, kind: output, shape index: {}, may-alias: {0,6}]
  %s7 = sld [smem:[#allocation0]]
  $region65: #{siglip_vision_transformer.10} parent=0
    _
  %s9 = ssub.s32 1, %s7
  %s10 = scalar_select 0, %s9, %s7
  loop: start=0, step=1, limit=14
  $region2: #{siglip_vision_transformer.10} parent=0 // loop_pre_header
    _
  $region3: #{siglip_vision_transformer.10} parent=0 // loop_header
    %s12 = sphi 0, %s16
    %p13 = scmp.ge.s32.totalorder %s12, 14
    %s19 = sphi 0, %s38
    %s20 = sphi 0, %s34
    %s21 = sphi 0, %s30
    %s22 = sphi 0, %s19
    %s23 = sphi 0, %s20
    %s24 = sphi 0, %s21
    %s25 = sphi 0, %s22
    %s26 = sphi 0, %s23
    %s27 = sphi 0, %s24
    %s43 = sphi 0, %s45
    %s46 = sphi 0, %s43
    %s47 = sphi 0, %s46
    %s63 = sphi 0, %s47
    %s73 = sphi 0, %s75
    %s76 = sphi 0, %s73
    %s77 = sphi 0, %s76
    %s93 = sphi 0, %s77
    %s101 = sphi 0, %s103
    %s104 = sphi 0, %s101
    %s105 = sphi 0, %s104
    %s121 = sphi 0, %s105
    %s129 = sphi 0, %s131
    %s132 = sphi 0, %s129
    %s133 = sphi 0, %s132
    %s149 = sphi 0, %s133
    %s155 = sphi 0, %s157
    %s158 = sphi 0, %s155
    %s159 = sphi 0, %s158
    %s175 = sphi 0, %s159
    %s179 = sphi 0, %s179
    %s181 = sphi 0, %s179
    %s182 = sphi 0, %s181
    %s196 = sphi 0, %s182
    %s204 = sphi 0, %s206
    %s207 = sphi 0, %s204
    %s208 = sphi 0, %s207
    %s224 = sphi 0, %s208
  $region4: #{siglip_vision_transformer.10} parent=0 // loop_header_branch
    %15 = sbr.rel (%p13) target = $region8
  $region5: #{siglip_vision_transformer.10} parent=0 // loop_body
    %s17 = ssub.s32 %s12, 1
    %s18 = ssub.s32 %s12, 2
    %s28 = sadd.s32 1, %s21
    %p29 = scmp.ge.s32.totalorder %s28, 2
    %s30 = scalar_select %p29, 0, %s28
    %s31 = sadd.s32 1, %s20
    %s32 = scalar_select %p29, %s31, %s20
    %p33 = scmp.ge.s32.totalorder %s32, 3
    %s34 = scalar_select %p33, 0, %s32
    %s35 = sadd.s32 1, %s19
    %s36 = scalar_select %p33, %s35, %s19
    %p37 = scmp.ge.s32.totalorder %s36, 2
    %s38 = scalar_select %p37, 0, %s36
    %s39 = ssub.s32 %s19, %s38
    %s40 = ssub.s32 %s20, %s34
    %s41 = sor.u32 %s39, %s40
    %p42 = scmp.eq.s32.totalorder %s41, 0
    %s44 = sadd.s32 %s43, 1
    %s45 = scalar_select %p42, %s43, %s44
    %p48 = pneg %p42
    %p49 = scmp.eq.s32.totalorder %s12, 11
    %p50 = por %p48, %p49
    %p51 = scmp.ne.s32.totalorder %s43, %s46
    %p52 = scmp.eq.s32.totalorder %s12, 0
    %p53 = por %p51, %p52
    %p54 = scmp.ne.s32.totalorder %s43, %s46
    %p55 = scmp.eq.s32.totalorder %s17, 11
    %p56 = por %p54, %p55
    %p57 = scmp.ne.s32.totalorder %s46, %s47
    %p58 = scmp.eq.s32.totalorder %s17, 0
    %p59 = por %p57, %p58
    %p60 = scmp.ne.s32.totalorder %s46, %s47
    %p61 = scmp.eq.s32.totalorder %s18, 11
    %p62 = por %p60, %p61
    %p64 = scmp.ne.s32.totalorder %s47, %s63
    %p65 = scmp.eq.s32.totalorder %s18, 0
    %p66 = por %p64, %p65
    %s67 = ssub.s32 %s19, %s38
    %s68 = ssub.s32 %s21, %s30
    %s69 = sor.u32 %s67, %s68
    %s70 = ssub.s32 %s20, %s34
    %s71 = sor.u32 %s69, %s70
    %p72 = scmp.eq.s32.totalorder %s71, 0
    %s74 = sadd.s32 %s73, 1
    %s75 = scalar_select %p72, %s73, %s74
    %p78 = pneg %p72
    %p79 = scmp.eq.s32.totalorder %s12, 11
    %p80 = por %p78, %p79
    %p81 = scmp.ne.s32.totalorder %s73, %s76
    %p82 = scmp.eq.s32.totalorder %s12, 0
    %p83 = por %p81, %p82
    %p84 = scmp.ne.s32.totalorder %s73, %s76
    %p85 = scmp.eq.s32.totalorder %s17, 11
    %p86 = por %p84, %p85
    %p87 = scmp.ne.s32.totalorder %s76, %s77
    %p88 = scmp.eq.s32.totalorder %s17, 0
    %p89 = por %p87, %p88
    %p90 = scmp.ne.s32.totalorder %s76, %s77
    %p91 = scmp.eq.s32.totalorder %s18, 11
    %p92 = por %p90, %p91
    %p94 = scmp.ne.s32.totalorder %s77, %s93
    %p95 = scmp.eq.s32.totalorder %s18, 0
    %p96 = por %p94, %p95
    %s97 = ssub.s32 %s19, %s38
    %s98 = ssub.s32 %s21, %s30
    %s99 = sor.u32 %s97, %s98
    %p100 = scmp.eq.s32.totalorder %s99, 0
    %s102 = sadd.s32 %s101, 1
    %s103 = scalar_select %p100, %s101, %s102
    %p106 = pneg %p100
    %p107 = scmp.eq.s32.totalorder %s12, 11
    %p108 = por %p106, %p107
    %p109 = scmp.ne.s32.totalorder %s101, %s104
    %p110 = scmp.eq.s32.totalorder %s12, 0
    %p111 = por %p109, %p110
    %p112 = scmp.ne.s32.totalorder %s101, %s104
    %p113 = scmp.eq.s32.totalorder %s17, 11
    %p114 = por %p112, %p113
    %p115 = scmp.ne.s32.totalorder %s104, %s105
    %p116 = scmp.eq.s32.totalorder %s17, 0
    %p117 = por %p115, %p116
    %p118 = scmp.ne.s32.totalorder %s104, %s105
    %p119 = scmp.eq.s32.totalorder %s18, 11
    %p120 = por %p118, %p119
    %p122 = scmp.ne.s32.totalorder %s105, %s121
    %p123 = scmp.eq.s32.totalorder %s18, 0
    %p124 = por %p122, %p123
    %s125 = ssub.s32 %s19, %s38
    %s126 = ssub.s32 %s21, %s30
    %s127 = sor.u32 %s125, %s126
    %p128 = scmp.eq.s32.totalorder %s127, 0
    %s130 = sadd.s32 %s129, 1
    %s131 = scalar_select %p128, %s129, %s130
    %p134 = pneg %p128
    %p135 = scmp.eq.s32.totalorder %s12, 11
    %p136 = por %p134, %p135
    %p137 = scmp.ne.s32.totalorder %s129, %s132
    %p138 = scmp.eq.s32.totalorder %s12, 0
    %p139 = por %p137, %p138
    %p140 = scmp.ne.s32.totalorder %s129, %s132
    %p141 = scmp.eq.s32.totalorder %s17, 11
    %p142 = por %p140, %p141
    %p143 = scmp.ne.s32.totalorder %s132, %s133
    %p144 = scmp.eq.s32.totalorder %s17, 0
    %p145 = por %p143, %p144
    %p146 = scmp.ne.s32.totalorder %s132, %s133
    %p147 = scmp.eq.s32.totalorder %s18, 11
    %p148 = por %p146, %p147
    %p150 = scmp.ne.s32.totalorder %s133, %s149
    %p151 = scmp.eq.s32.totalorder %s18, 0
    %p152 = por %p150, %p151
    %s153 = ssub.s32 %s21, %s30
    %p154 = scmp.eq.s32.totalorder %s153, 0
    %s156 = sadd.s32 %s155, 1
    %s157 = scalar_select %p154, %s155, %s156
    %p160 = pneg %p154
    %p161 = scmp.eq.s32.totalorder %s12, 11
    %p162 = por %p160, %p161
    %p163 = scmp.ne.s32.totalorder %s155, %s158
    %p164 = scmp.eq.s32.totalorder %s12, 0
    %p165 = por %p163, %p164
    %p166 = scmp.ne.s32.totalorder %s155, %s158
    %p167 = scmp.eq.s32.totalorder %s17, 11
    %p168 = por %p166, %p167
    %p169 = scmp.ne.s32.totalorder %s158, %s159
    %p170 = scmp.eq.s32.totalorder %s17, 0
    %p171 = por %p169, %p170
    %p172 = scmp.ne.s32.totalorder %s158, %s159
    %p173 = scmp.eq.s32.totalorder %s18, 11
    %p174 = por %p172, %p173
    %p176 = scmp.ne.s32.totalorder %s159, %s175
    %p177 = scmp.eq.s32.totalorder %s18, 0
    %p178 = por %p176, %p177
    %s180 = sadd.s32 %s179, 1
    %p183 = scmp.eq.s32.totalorder %s12, 11
    %p184 = scmp.ne.s32.totalorder %s179, %s181
    %p185 = scmp.eq.s32.totalorder %s12, 0
    %p186 = por %p184, %p185
    %p187 = scmp.ne.s32.totalorder %s179, %s181
    %p188 = scmp.eq.s32.totalorder %s17, 11
    %p189 = por %p187, %p188
    %p190 = scmp.ne.s32.totalorder %s181, %s182
    %p191 = scmp.eq.s32.totalorder %s17, 0
    %p192 = por %p190, %p191
    %p193 = scmp.ne.s32.totalorder %s181, %s182
    %p194 = scmp.eq.s32.totalorder %s18, 11
    %p195 = por %p193, %p194
    %p197 = scmp.ne.s32.totalorder %s182, %s196
    %p198 = scmp.eq.s32.totalorder %s18, 0
    %p199 = por %p197, %p198
    %s200 = ssub.s32 %s19, %s38
    %s201 = ssub.s32 %s20, %s34
    %s202 = sor.u32 %s200, %s201
    %p203 = scmp.eq.s32.totalorder %s202, 0
    %s205 = sadd.s32 %s204, 1
    %s206 = scalar_select %p203, %s204, %s205
    %p209 = pneg %p203
    %p210 = scmp.eq.s32.totalorder %s12, 11
    %p211 = por %p209, %p210
    %p212 = scmp.ne.s32.totalorder %s204, %s207
    %p213 = scmp.eq.s32.totalorder %s12, 0
    %p214 = por %p212, %p213
    %p215 = scmp.ne.s32.totalorder %s204, %s207
    %p216 = scmp.eq.s32.totalorder %s17, 11
    %p217 = por %p215, %p216
    %p218 = scmp.ne.s32.totalorder %s207, %s208
    %p219 = scmp.eq.s32.totalorder %s17, 0
    %p220 = por %p218, %p219
    %p221 = scmp.ne.s32.totalorder %s207, %s208
    %p222 = scmp.eq.s32.totalorder %s18, 11
    %p223 = por %p221, %p222
    %p225 = scmp.ne.s32.totalorder %s208, %s224
    %p226 = scmp.eq.s32.totalorder %s18, 0
    %p227 = por %p225, %p226
    %p228 = scmp.le.s32.totalorder 1, %s12
    %p229 = scmp.lt.s32.totalorder %s12, 13
    %p230 = pnand %p228, %p229
    %p231 = pneg %p230
    // Predicated region
    $region9: #{siglip_vision_transformer.10} parent=5 // pred_check
      _
    $region10: #{siglip_vision_transformer.10} parent=5 // pred_check_branch
      %233 = sbr.rel (%p230) target = $region12
    $region11: #{siglip_vision_transformer.10} parent=5 // pred_region
      %s234 = ssub.s32 %s12, 1
      // Predicated region
      $region13: #{siglip_vision_transformer.10} parent=11 // pred_check
        %p235 = pneg %p192
      $region14: #{siglip_vision_transformer.10} parent=11 // pred_check_branch
        %237 = sbr.rel (%p235) target = $region16
      $region15: #{siglip_vision_transformer.10} parent=11 // pred_region
        _
      $region16: #{siglip_vision_transformer.10} parent=11 // pred_fallthru
        _
    $region12: #{siglip_vision_transformer.10} parent=5 // pred_fallthru
      _
    %p238 = scmp.lt.s32.totalorder %s12, 12
    // Predicated region
    $region17: #{siglip_vision_transformer.10} parent=5 // pred_check
      %p239 = pneg %p238
    $region18: #{siglip_vision_transformer.10} parent=5 // pred_check_branch
      %241 = sbr.rel (%p239) target = $region20
    $region19: #{siglip_vision_transformer.10} parent=5 // pred_region
      // Predicated region
      $region21: #{siglip_vision_transformer.10} parent=19 // pred_check
        %p242 = pneg %p53
      $region22: #{siglip_vision_transformer.10} parent=19 // pred_check_branch
        %244 = sbr.rel (%p242) target = $region24
      $region23: #{siglip_vision_transformer.10} parent=19 // pred_region
        %s245 = smul.u32 4, %s20
        %p246 = scmp.lt.s32.totalorder %s19, 1
        %s247 = scalar_select %p246, %s19, 1
        %p248 = scmp.lt.s32.totalorder %s245, 11
        %s249 = scalar_select %p248, %s245, 11
        %s250 = smul.addr %s247, 12
        %s251 = sadd.s32 %s249, %s250
        %s252 = smul.addr %s251, 8
        %s253 = scalar_lea.vmem %s0, %s252
        %s254 = smul.u32 4, %s20
      $region24: #{siglip_vision_transformer.10} parent=19 // pred_fallthru
        _
      // Predicated region
      $region25: #{siglip_vision_transformer.10} parent=19 // pred_check
        %p255 = pneg %p83
      $region26: #{siglip_vision_transformer.10} parent=19 // pred_check_branch
        %257 = sbr.rel (%p255) target = $region28
      $region27: #{siglip_vision_transformer.10} parent=19 // pred_region
        %s258 = smul.u32 4, %s20
        %p259 = scmp.lt.s32.totalorder %s19, 1
        %s260 = scalar_select %p259, %s19, 1
        %p261 = scmp.lt.s32.totalorder %s21, 1
        %s262 = scalar_select %p261, %s21, 1
        %p263 = scmp.lt.s32.totalorder %s258, 11
        %s264 = scalar_select %p263, %s258, 11
        %s265 = smul.addr %s262, 12
        %s266 = sadd.s32 %s264, %s265
        %s267 = smul.addr %s260, 24
        %s268 = sadd.s32 %s266, %s267
        %s269 = smul.addr %s268, 4
        %s270 = scalar_lea.vmem %s1, %s269
        %s271 = smul.u32 4, %s20
      $region28: #{siglip_vision_transformer.10} parent=19 // pred_fallthru
        _
      // Predicated region
      $region29: #{siglip_vision_transformer.10} parent=19 // pred_check
        %p272 = pneg %p111
      $region30: #{siglip_vision_transformer.10} parent=19 // pred_check_branch
        %274 = sbr.rel (%p272) target = $region32
      $region31: #{siglip_vision_transformer.10} parent=19 // pred_region
        %p275 = scmp.lt.s32.totalorder %s19, 1
        %s276 = scalar_select %p275, %s19, 1
        %p277 = scmp.lt.s32.totalorder %s21, 1
        %s278 = scalar_select %p277, %s21, 1
        %s279 = smul.addr %s278, 12
        %s280 = smul.addr %s276, 24
        %s281 = sadd.s32 %s279, %s280
        %s282 = smul.addr %s281, 4
        %s283 = scalar_lea.vmem %s2, %s282
      $region32: #{siglip_vision_transformer.10} parent=19 // pred_fallthru
        _
      // Predicated region
      $region33: #{siglip_vision_transformer.10} parent=19 // pred_check
        %p284 = pneg %p139
      $region34: #{siglip_vision_transformer.10} parent=19 // pred_check_branch
        %286 = sbr.rel (%p284) target = $region36
      $region35: #{siglip_vision_transformer.10} parent=19 // pred_region
        %p287 = scmp.lt.s32.totalorder %s19, 1
        %s288 = scalar_select %p287, %s19, 1
        %p289 = scmp.lt.s32.totalorder %s21, 1
        %s290 = scalar_select %p289, %s21, 1
        %s291 = smul.addr %s290, 12
        %s292 = smul.addr %s288, 24
        %s293 = sadd.s32 %s291, %s292
        %s294 = smul.addr %s293, 4
        %s295 = scalar_lea.vmem %s3, %s294
      $region36: #{siglip_vision_transformer.10} parent=19 // pred_fallthru
        _
      // Predicated region
      $region37: #{siglip_vision_transformer.10} parent=19 // pred_check
        %p296 = pneg %p165
      $region38: #{siglip_vision_transformer.10} parent=19 // pred_check_branch
        %298 = sbr.rel (%p296) target = $region40
      $region39: #{siglip_vision_transformer.10} parent=19 // pred_region
        %p299 = scmp.lt.s32.totalorder %s21, 1
        %s300 = scalar_select %p299, %s21, 1
        %s301 = smul.addr %s300, 8
        %s302 = smul.addr %s301, 4
        %s303 = scalar_lea.vmem %s4, %s302
      $region40: #{siglip_vision_transformer.10} parent=19 // pred_fallthru
        _
    $region20: #{siglip_vision_transformer.10} parent=5 // pred_fallthru
      _
    %p304 = scmp.le.s32.totalorder 1, %s12
    %p305 = scmp.lt.s32.totalorder %s12, 13
    %p306 = pnand %p304, %p305
    %p307 = pneg %p306
    // Predicated region
    $region41: #{siglip_vision_transformer.10} parent=5 // pred_check
      _
    $region42: #{siglip_vision_transformer.10} parent=5 // pred_check_branch
      %309 = sbr.rel (%p306) target = $region44
    $region43: #{siglip_vision_transformer.10} parent=5 // pred_region
      %s310 = ssub.s32 %s12, 1
      %s311 = smul.u32 4, %s23
      %p312 = scmp.lt.s32.totalorder %s22, 1
      %s313 = scalar_select %p312, %s22, 1
      %p314 = scmp.lt.s32.totalorder %s311, 11
      %s315 = scalar_select %p314, %s311, 11
      %s316 = smul.addr %s313, 12
      %s317 = sadd.s32 %s315, %s316
      %s318 = smul.addr %s317, 8
      %s319 = scalar_lea.vmem %s0, %s318
      %p320 = pneg %p59
      %p321 = pneg %p56
      %s322 = smul.u32 4, %s23
      %p323 = scmp.lt.s32.totalorder %s22, 1
      %s324 = scalar_select %p323, %s22, 1
      %p325 = scmp.lt.s32.totalorder %s24, 1
      %s326 = scalar_select %p325, %s24, 1
      %p327 = scmp.lt.s32.totalorder %s322, 11
      %s328 = scalar_select %p327, %s322, 11
      %s329 = smul.addr %s326, 12
      %s330 = sadd.s32 %s328, %s329
      %s331 = smul.addr %s324, 24
      %s332 = sadd.s32 %s330, %s331
      %s333 = smul.addr %s332, 4
      %s334 = scalar_lea.vmem %s1, %s333
      %p335 = pneg %p89
      %p336 = pneg %p86
      %p337 = scmp.lt.s32.totalorder %s22, 1
      %s338 = scalar_select %p337, %s22, 1
      %p339 = scmp.lt.s32.totalorder %s24, 1
      %s340 = scalar_select %p339, %s24, 1
      %s341 = smul.addr %s340, 12
      %s342 = smul.addr %s338, 24
      %s343 = sadd.s32 %s341, %s342
      %s344 = smul.addr %s343, 4
      %s345 = scalar_lea.vmem %s2, %s344
      %p346 = pneg %p117
      %p347 = pneg %p114
      %p348 = scmp.lt.s32.totalorder %s22, 1
      %s349 = scalar_select %p348, %s22, 1
      %p350 = scmp.lt.s32.totalorder %s24, 1
      %s351 = scalar_select %p350, %s24, 1
      %s352 = smul.addr %s351, 12
      %s353 = smul.addr %s349, 24
      %s354 = sadd.s32 %s352, %s353
      %s355 = smul.addr %s354, 4
      %s356 = scalar_lea.vmem %s3, %s355
      %p357 = pneg %p145
      %p358 = pneg %p142
      %p359 = scmp.lt.s32.totalorder %s24, 1
      %s360 = scalar_select %p359, %s24, 1
      %s361 = smul.addr %s360, 8
      %s362 = smul.addr %s361, 4
      %s363 = scalar_lea.vmem %s4, %s362
      %p364 = pneg %p171
      %p365 = pneg %p168
      %p366 = pneg %p192
      %p367 = pneg %p189
      %p368 = pneg %p220
      %p369 = pneg %p217
      %s370 = smul.u32 4, %s23
      %p371 = scmp.lt.s32.totalorder %s22, 1
      %s372 = scalar_select %p371, %s22, 1
      %p373 = scmp.lt.s32.totalorder %s370, 11
      %s374 = scalar_select %p373, %s370, 11
      %s375 = smul.addr %s372, 12
      %s376 = sadd.s32 %s374, %s375
      %s377 = smul.addr %s376, 8
      %s378 = scalar_lea.vmem %s6, %s377
      %s379 = smul.u32 4, %s23
      %p380 = scmp.lt.s32.totalorder %s22, 1
      %s381 = scalar_select %p380, %s22, 1
      %p382 = scmp.lt.s32.totalorder %s379, 11
      %s383 = scalar_select %p382, %s379, 11
      %s384 = smul.addr %s381, 12
      %s385 = sadd.s32 %s383, %s384
      %s386 = smul.addr %s385, 8
      %s387 = scalar_lea.vmem %s0, %s386
      %s388 = smul.u32 4, %s23
      %s389 = smul.u32 4, %s23
      %p390 = scmp.lt.s32.totalorder %s22, 1
      %s391 = scalar_select %p390, %s22, 1
      %p392 = scmp.lt.s32.totalorder %s24, 1
      %s393 = scalar_select %p392, %s24, 1
      %p394 = scmp.lt.s32.totalorder %s389, 11
      %s395 = scalar_select %p394, %s389, 11
      %s396 = smul.addr %s393, 12
      %s397 = sadd.s32 %s395, %s396
      %s398 = smul.addr %s391, 24
      %s399 = sadd.s32 %s397, %s398
      %s400 = smul.addr %s399, 4
      %s401 = scalar_lea.vmem %s1, %s400
      %s402 = smul.u32 4, %s23
      %p403 = scmp.lt.s32.totalorder %s22, 1
      %s404 = scalar_select %p403, %s22, 1
      %p405 = scmp.lt.s32.totalorder %s24, 1
      %s406 = scalar_select %p405, %s24, 1
      %s407 = smul.addr %s406, 12
      %s408 = smul.addr %s404, 24
      %s409 = sadd.s32 %s407, %s408
      %s410 = smul.addr %s409, 4
      %s411 = scalar_lea.vmem %s2, %s410
      %p412 = scmp.lt.s32.totalorder %s22, 1
      %s413 = scalar_select %p412, %s22, 1
      %p414 = scmp.lt.s32.totalorder %s24, 1
      %s415 = scalar_select %p414, %s24, 1
      %s416 = smul.addr %s415, 12
      %s417 = smul.addr %s413, 24
      %s418 = sadd.s32 %s416, %s417
      %s419 = smul.addr %s418, 4
      %s420 = scalar_lea.vmem %s3, %s419
      %p421 = scmp.lt.s32.totalorder %s24, 1
      %s422 = scalar_select %p421, %s24, 1
      %s423 = smul.addr %s422, 8
      %s424 = smul.addr %s423, 4
      %s425 = scalar_lea.vmem %s4, %s424
      %s426 = smul.u32 4, %s23
      %p427 = scmp.lt.s32.totalorder %s22, 1
      %s428 = scalar_select %p427, %s22, 1
      %p429 = scmp.lt.s32.totalorder %s426, 11
      %s430 = scalar_select %p429, %s426, 11
      %s431 = smul.addr %s428, 12
      %s432 = sadd.s32 %s430, %s431
      %s433 = smul.addr %s432, 8
      %s434 = scalar_lea.vmem %s6, %s433
      %s435 = smul.u32 4, %s23
      %p437 = scmp.eq.s32.totalorder %s24, 0
      // Predicated region
      $region45: #{siglip_vision_transformer.10} parent=43 // pred_check
        %p438 = pneg %p437
      $region46: #{siglip_vision_transformer.10} parent=43 // pred_check_branch
        %440 = sbr.rel (%p438) target = $region48
      $region47: #{siglip_vision_transformer.10} parent=43 // pred_region
        %v441 = vld [vmem:[%s387] sm:$0xff]
        %v442 = vld [vmem:[%s387 + $0x8] sm:$0xff]
        %v443 = vld [vmem:[%s387 + $0x10] sm:$0xff]
        %v444 = vld [vmem:[%s387 + $0x18] sm:$0xff]
        %v445 = vld [vmem:[%s5] sm:$0x1]
        %v447 = vperm.slane %v445, 0
        %v449 = vadd.f32 %v441, %v447
        %v450 = vadd.f32 %v442, %v447
        %v451 = vadd.f32 %v443, %v447
        %v452 = vadd.f32 %v444, %v447
        %453 = vst [vmem:[#allocation2] sm:$0xff] %v449
        %454 = vst [vmem:[#allocation2 + $0x8] sm:$0xff] %v450
        %455 = vst [vmem:[#allocation2 + $0x10] sm:$0xff] %v451
        %456 = vst [vmem:[#allocation2 + $0x18] sm:$0xff] %v452
      $region48: #{siglip_vision_transformer.10} parent=43 // pred_fallthru
        _
      %v457 = vld [vmem:[%s401] sm:$0xf]
      %v458 = vld [vmem:[%s401 + $0x4] sm:$0xf]
      %v459 = vld [vmem:[%s401 + $0x8] sm:$0xf]
      %v460 = vld [vmem:[%s401 + $0xc] sm:$0xf]
      %v461 = vld [vmem:[%s411] sm:$0xf]
      %v462 = vld [vmem:[%s411 + $0x4] sm:$0xf]
      %v463 = vld [vmem:[%s411 + $0x8] sm:$0xf]
      %v464 = vld [vmem:[%s411 + $0xc] sm:$0xf]
      %v465 = vld [vmem:[%s411 + $0x10] sm:$0xf]
      %v466 = vld [vmem:[%s411 + $0x14] sm:$0xf]
      %v467 = vld [vmem:[%s411 + $0x18] sm:$0xf]
      %v468 = vld [vmem:[%s411 + $0x1c] sm:$0xf]
      %v469 = vld [vmem:[%s411 + $0x20] sm:$0xf]
      %v470 = vld [vmem:[%s411 + $0x24] sm:$0xf]
      %v471 = vld [vmem:[%s411 + $0x28] sm:$0xf]
      %v472 = vld [vmem:[%s411 + $0x2c] sm:$0xf]
      %v473 = vld [vmem:[%s420] sm:$0xf]
      %v474 = vld [vmem:[%s420 + $0x4] sm:$0xf]
      %v475 = vld [vmem:[%s420 + $0x8] sm:$0xf]
      %v476 = vld [vmem:[%s420 + $0xc] sm:$0xf]
      %v477 = vld [vmem:[%s420 + $0x10] sm:$0xf]
      %v478 = vld [vmem:[%s420 + $0x14] sm:$0xf]
      %v479 = vld [vmem:[%s420 + $0x18] sm:$0xf]
      %v480 = vld [vmem:[%s420 + $0x1c] sm:$0xf]
      %v481 = vld [vmem:[%s420 + $0x20] sm:$0xf]
      %v482 = vld [vmem:[%s420 + $0x24] sm:$0xf]
      %v483 = vld [vmem:[%s420 + $0x28] sm:$0xf]
      %v484 = vld [vmem:[%s420 + $0x2c] sm:$0xf]
      %v485 = vlaneseq
      %v486 = vand.u32 %v485, 127
      %vm487 = vcmp.lt.s32.totalorder %v486, 81
      %v492 = vunpack.c.l.b16 %v457
      %v493 = vunpack.c.l.b16 %v458
      %v494 = vunpack.c.l.b16 %v459
      %v495 = vunpack.c.l.b16 %v460
      %v496 = vpack.c.b16 %v493, %v492
      %v497 = vpack.c.b16 %v495, %v494
      %v510 = vunpack.c.l.b16 %v461
      %v511 = vunpack.c.l.b16 %v462
      %v512 = vunpack.c.l.b16 %v463
      %v513 = vunpack.c.l.b16 %v464
      %v514 = vunpack.c.l.b16 %v465
      %v515 = vunpack.c.l.b16 %v466
      %v516 = vunpack.c.l.b16 %v467
      %v517 = vunpack.c.l.b16 %v468
      %v518 = vunpack.c.l.b16 %v469
      %v519 = vunpack.c.l.b16 %v470
      %v520 = vunpack.c.l.b16 %v471
      %v521 = vunpack.c.l.b16 %v472
      %v522 = vpack.c.b16 %v511, %v510
      %v523 = vpack.c.b16 %v513, %v512
      %v524 = vpack.c.b16 %v515, %v514
      %v525 = vpack.c.b16 %v517, %v516
      %v526 = vpack.c.b16 %v519, %v518
      %v527 = vpack.c.b16 %v521, %v520
      %vm528 = vcmask 130048
      %v530 = vsel %vm528, %v496, 0
      %v533 = vsel %vm528, %v497, 0
      %v536 = vsel %vm528, %v522, 0
      %v539 = vsel %vm528, %v523, 0
      %v542 = vsel %vm528, %v524, 0
      %v545 = vsel %vm528, %v525, 0
      %v548 = vsel %vm528, %v526, 0
      %v551 = vsel %vm528, %v527, 0
      %553 = vmatpush.bf16.xpose.msra.mxu0 0
      %554 = vmatpush.bf16.xpose.msra.mxu0 0
      %555 = vmatpush.bf16.xpose.msra.mxu0 %v551
      %556 = vmatpush.bf16.xpose.msra.mxu0 %v548
      %557 = vmatpush.bf16.xpose.msra.mxu0 %v545
      %558 = vmatpush.bf16.xpose.msra.mxu0 %v542
      %559 = vmatpush.bf16.xpose.msra.mxu0 %v539
      %560 = vmatpush.bf16.xpose.msra.mxu0 %v536
      %561 = vmatmul.bf16.gmra.mxu0 %v530
      %v562 = vpop.f32.mrf.mxu0
      %v563 = vadd.f32 0.0, %v562
      %v564 = vpop.f32.mrf.mxu0
      %v565 = vadd.f32 0.0, %v564
      %566 = vmatmul.bf16.gmra.mxu0 %v533
      %v567 = vpop.f32.mrf.mxu0
      %v568 = vadd.f32 0.0, %v567
      %v569 = vpop.f32.mrf.mxu0
      %v570 = vadd.f32 0.0, %v569
      %571 = vdwg.mxu0
      %v572 = vsel %vm487, %v563, -1e+30
      %v573 = vsel %vm487, %v565, -1e+30
      %v574 = vsel %vm487, %v568, -1e+30
      %v575 = vsel %vm487, %v570, -1e+30
      %vm576 = vcmask 785408
      %v577 = vsel %vm576, %v572, -inf
      %578 = vmax.xlane.f32.xlu0 %v577
      %v579 = vpop.xlane.xlu0 %578
      %v580 = vsel %vm576, %v573, -inf
      %581 = vmax.xlane.f32.xlu0 %v580
      %v582 = vpop.xlane.xlu0 %581
      %v583 = vsel %vm576, %v574, -inf
      %584 = vmax.xlane.f32.xlu0 %v583
      %v585 = vpop.xlane.xlu0 %584
      %v586 = vsel %vm576, %v575, -inf
      %587 = vmax.xlane.f32.xlu0 %v586
      %v588 = vpop.xlane.xlu0 %587
      %v589 = vsub.f32 %v572, %v579
      %v590 = vsub.f32 %v573, %v582
      %v591 = vsub.f32 %v574, %v585
      %v592 = vsub.f32 %v575, %v588
      %v593 = vmul.f32 %v589, 1.442695
      %v594 = vpow.pop %v593
      %v595 = vmul.f32 %v590, 1.442695
      %v596 = vpow.pop %v595
      %v597 = vmul.f32 %v591, 1.442695
      %v598 = vpow.pop %v597
      %v599 = vmul.f32 %v592, 1.442695
      %v600 = vpow.pop %v599
      %v601 = vsel %vm576, %v594, 0.0
      %602 = vadd.xlane.f32.xlu0 %v601
      %v603 = vpop.xlane.xlu0 %602
      %v604 = vsel %vm576, %v596, 0.0
      %605 = vadd.xlane.f32.xlu0 %v604
      %v606 = vpop.xlane.xlu0 %605
      %v607 = vsel %vm576, %v598, 0.0
      %608 = vadd.xlane.f32.xlu0 %v607
      %v609 = vpop.xlane.xlu0 %608
      %v610 = vsel %vm576, %v600, 0.0
      %611 = vadd.xlane.f32.xlu0 %v610
      %v612 = vpop.xlane.xlu0 %611
      %v613 = vrcp.pop %v603
      %v614 = vmul.f32 %v603, %v613
      %v615 = vsub.f32 1.0, %v614
      %v616 = vmul.f32 %v613, %v615
      %v617 = vadd.f32 %v613, %v616
      %vm618 = vweird.f32 %v603
      %vm619 = vweird.f32 %v613
      %vm620 = vmor %vm618, %vm619
      %v621 = vsel %vm620, %v613, %v617
      %v622 = vand.u32 2147483647, %v603
      %vm623 = vcmp.eq.f32.partialorder %v622, 8.507059e+37
      %v624 = vand.u32 %v603, 2147483648
      %v625 = vor.u32 1.1754944e-38, %v624
      %v626 = vsel %vm623, %v625, %v621
      %v627 = vmul.f32 %v594, %v626
      %v628 = vrcp.pop %v606
      %v629 = vmul.f32 %v606, %v628
      %v630 = vsub.f32 1.0, %v629
      %v631 = vmul.f32 %v628, %v630
      %v632 = vadd.f32 %v628, %v631
      %vm633 = vweird.f32 %v606
      %vm634 = vweird.f32 %v628
      %vm635 = vmor %vm633, %vm634
      %v636 = vsel %vm635, %v628, %v632
      %v637 = vand.u32 2147483647, %v606
      %vm638 = vcmp.eq.f32.partialorder %v637, 8.507059e+37
      %v639 = vand.u32 %v606, 2147483648
      %v640 = vor.u32 1.1754944e-38, %v639
      %v641 = vsel %vm638, %v640, %v636
      %v642 = vmul.f32 %v596, %v641
      %v643 = vrcp.pop %v609
      %v644 = vmul.f32 %v609, %v643
      %v645 = vsub.f32 1.0, %v644
      %v646 = vmul.f32 %v643, %v645
      %v647 = vadd.f32 %v643, %v646
      %vm648 = vweird.f32 %v609
      %vm649 = vweird.f32 %v643
      %vm650 = vmor %vm648, %vm649
      %v651 = vsel %vm650, %v643, %v647
      %v652 = vand.u32 2147483647, %v609
      %vm653 = vcmp.eq.f32.partialorder %v652, 8.507059e+37
      %v654 = vand.u32 %v609, 2147483648
      %v655 = vor.u32 1.1754944e-38, %v654
      %v656 = vsel %vm653, %v655, %v651
      %v657 = vmul.f32 %v598, %v656
      %v658 = vrcp.pop %v612
      %v659 = vmul.f32 %v612, %v658
      %v660 = vsub.f32 1.0, %v659
      %v661 = vmul.f32 %v658, %v660
      %v662 = vadd.f32 %v658, %v661
      %vm663 = vweird.f32 %v612
      %vm664 = vweird.f32 %v658
      %vm665 = vmor %vm663, %vm664
      %v666 = vsel %vm665, %v658, %v662
      %v667 = vand.u32 2147483647, %v612
      %vm668 = vcmp.eq.f32.partialorder %v667, 8.507059e+37
      %v669 = vand.u32 %v612, 2147483648
      %v670 = vor.u32 1.1754944e-38, %v669
      %v671 = vsel %vm668, %v670, %v666
      %v672 = vmul.f32 %v600, %v671
      %v673 = vpack.c.bf16 %v642, %v627
      %v674 = vpack.c.bf16 %v672, %v657
      %v687 = vunpack.c.l.b16 %v473
      %v688 = vunpack.c.l.b16 %v474
      %v689 = vunpack.c.l.b16 %v475
      %v690 = vunpack.c.l.b16 %v476
      %v691 = vunpack.c.l.b16 %v477
      %v692 = vunpack.c.l.b16 %v478
      %v693 = vunpack.c.l.b16 %v479
      %v694 = vunpack.c.l.b16 %v480
      %v695 = vunpack.c.l.b16 %v481
      %v696 = vunpack.c.l.b16 %v482
      %v697 = vunpack.c.l.b16 %v483
      %v698 = vunpack.c.l.b16 %v484
      %v699 = vpack.c.b16 %v688, %v687
      %v700 = vpack.c.b16 %v690, %v689
      %v701 = vpack.c.b16 %v692, %v691
      %v702 = vpack.c.b16 %v694, %v693
      %v703 = vpack.c.b16 %v696, %v695
      %v704 = vpack.c.b16 %v698, %v697
      %v712 = vsel %vm576, %v673, 0
      %v715 = vsel %vm576, %v674, 0
      %717 = vmatpush.bf16.msra.mxu0 0
      %718 = vmatpush.bf16.msra.mxu0 0
      %719 = vmatpush.bf16.msra.mxu0 %v704
      %720 = vmatpush.bf16.msra.mxu0 %v703
      %721 = vmatpush.bf16.msra.mxu0 %v702
      %722 = vmatpush.bf16.msra.mxu0 %v701
      %723 = vmatpush.bf16.msra.mxu0 %v700
      %724 = vmatpush.bf16.msra.mxu0 %v699
      %725 = vmatmul.bf16.gmra.mxu0 %v712
      %v726 = vpop.f32.mrf.mxu0
      %v727 = vadd.f32 0.0, %v726
      %v728 = vpop.f32.mrf.mxu0
      %v729 = vadd.f32 0.0, %v728
      %730 = vmatmul.bf16.gmra.mxu0 %v715
      %v731 = vpop.f32.mrf.mxu0
      %v732 = vadd.f32 0.0, %v731
      %v733 = vpop.f32.mrf.mxu0
      %v734 = vadd.f32 0.0, %v733
      %735 = vdwg.mxu0
      %v736 = vpack.c.bf16 %v727, %v727
      %v737 = vpack.c.bf16 %v729, %v729
      %v738 = vpack.c.bf16 %v732, %v732
      %v739 = vpack.c.bf16 %v734, %v734
      %vm740 = vcmask 125952
      %741 = vst.msk [vmem:[#allocation3] sm:$0xf] %vm740, %v736
      %742 = vst.msk [vmem:[#allocation3 + $0x4] sm:$0xf] %vm740, %v737
      %743 = vst.msk [vmem:[#allocation3 + $0x8] sm:$0xf] %vm740, %v738
      %744 = vst.msk [vmem:[#allocation3 + $0xc] sm:$0xf] %vm740, %v739
      %745 = vrot.lane.b32.xlu0 %v496, 112
      %v746 = vpop.permute.xlu0 %745
      %747 = vrot.lane.b32.xlu0 %v497, 112
      %v748 = vpop.permute.xlu0 %747
      %749 = vrot.lane.b32.xlu0 %v522, 112
      %v750 = vpop.permute.xlu0 %749
      %751 = vrot.lane.b32.xlu0 %v523, 112
      %v752 = vpop.permute.xlu0 %751
      %753 = vrot.lane.b32.xlu0 %v524, 112
      %v754 = vpop.permute.xlu0 %753
      %755 = vrot.lane.b32.xlu0 %v525, 112
      %v756 = vpop.permute.xlu0 %755
      %757 = vrot.lane.b32.xlu0 %v526, 112
      %v758 = vpop.permute.xlu0 %757
      %759 = vrot.lane.b32.xlu0 %v527, 112
      %v760 = vpop.permute.xlu0 %759
      %v762 = vsel %vm528, %v746, 0
      %v765 = vsel %vm528, %v748, 0
      %v768 = vsel %vm528, %v750, 0
      %v771 = vsel %vm528, %v752, 0
      %v774 = vsel %vm528, %v754, 0
      %v777 = vsel %vm528, %v756, 0
      %v780 = vsel %vm528, %v758, 0
      %v783 = vsel %vm528, %v760, 0
      %785 = vmatpush.bf16.xpose.msra.mxu0 0
      %786 = vmatpush.bf16.xpose.msra.mxu0 0
      %787 = vmatpush.bf16.xpose.msra.mxu0 %v783
      %788 = vmatpush.bf16.xpose.msra.mxu0 %v780
      %789 = vmatpush.bf16.xpose.msra.mxu0 %v777
      %790 = vmatpush.bf16.xpose.msra.mxu0 %v774
      %791 = vmatpush.bf16.xpose.msra.mxu0 %v771
      %792 = vmatpush.bf16.xpose.msra.mxu0 %v768
      %793 = vmatmul.bf16.gmra.mxu0 %v762
      %v794 = vpop.f32.mrf.mxu0
      %v795 = vadd.f32 0.0, %v794
      %v796 = vpop.f32.mrf.mxu0
      %v797 = vadd.f32 0.0, %v796
      %798 = vmatmul.bf16.gmra.mxu0 %v765
      %v799 = vpop.f32.mrf.mxu0
      %v800 = vadd.f32 0.0, %v799
      %v801 = vpop.f32.mrf.mxu0
      %v802 = vadd.f32 0.0, %v801
      %803 = vdwg.mxu0
      %v804 = vsel %vm487, %v795, -1e+30
      %v805 = vsel %vm487, %v797, -1e+30
      %v806 = vsel %vm487, %v800, -1e+30
      %v807 = vsel %vm487, %v802, -1e+30
      %v808 = vsel %vm576, %v804, -inf
      %809 = vmax.xlane.f32.xlu0 %v808
      %v810 = vpop.xlane.xlu0 %809
      %v811 = vsel %vm576, %v805, -inf
      %812 = vmax.xlane.f32.xlu0 %v811
      %v813 = vpop.xlane.xlu0 %812
      %v814 = vsel %vm576, %v806, -inf
      %815 = vmax.xlane.f32.xlu0 %v814
      %v816 = vpop.xlane.xlu0 %815
      %v817 = vsel %vm576, %v807, -inf
      %818 = vmax.xlane.f32.xlu0 %v817
      %v819 = vpop.xlane.xlu0 %818
      %v820 = vsub.f32 %v804, %v810
      %v821 = vsub.f32 %v805, %v813
      %v822 = vsub.f32 %v806, %v816
      %v823 = vsub.f32 %v807, %v819
      %v824 = vmul.f32 %v820, 1.442695
      %v825 = vpow.pop %v824
      %v826 = vmul.f32 %v821, 1.442695
      %v827 = vpow.pop %v826
      %v828 = vmul.f32 %v822, 1.442695
      %v829 = vpow.pop %v828
      %v830 = vmul.f32 %v823, 1.442695
      %v831 = vpow.pop %v830
      %v832 = vsel %vm576, %v825, 0.0
      %833 = vadd.xlane.f32.xlu0 %v832
      %v834 = vpop.xlane.xlu0 %833
      %v835 = vsel %vm576, %v827, 0.0
      %836 = vadd.xlane.f32.xlu0 %v835
      %v837 = vpop.xlane.xlu0 %836
      %v838 = vsel %vm576, %v829, 0.0
      %839 = vadd.xlane.f32.xlu0 %v838
      %v840 = vpop.xlane.xlu0 %839
      %v841 = vsel %vm576, %v831, 0.0
      %842 = vadd.xlane.f32.xlu0 %v841
      %v843 = vpop.xlane.xlu0 %842
      %v844 = vrcp.pop %v834
      %v845 = vmul.f32 %v834, %v844
      %v846 = vsub.f32 1.0, %v845
      %v847 = vmul.f32 %v844, %v846
      %v848 = vadd.f32 %v844, %v847
      %vm849 = vweird.f32 %v834
      %vm850 = vweird.f32 %v844
      %vm851 = vmor %vm849, %vm850
      %v852 = vsel %vm851, %v844, %v848
      %v853 = vand.u32 2147483647, %v834
      %vm854 = vcmp.eq.f32.partialorder %v853, 8.507059e+37
      %v855 = vand.u32 %v834, 2147483648
      %v856 = vor.u32 1.1754944e-38, %v855
      %v857 = vsel %vm854, %v856, %v852
      %v858 = vmul.f32 %v825, %v857
      %v859 = vrcp.pop %v837
      %v860 = vmul.f32 %v837, %v859
      %v861 = vsub.f32 1.0, %v860
      %v862 = vmul.f32 %v859, %v861
      %v863 = vadd.f32 %v859, %v862
      %vm864 = vweird.f32 %v837
      %vm865 = vweird.f32 %v859
      %vm866 = vmor %vm864, %vm865
      %v867 = vsel %vm866, %v859, %v863
      %v868 = vand.u32 2147483647, %v837
      %vm869 = vcmp.eq.f32.partialorder %v868, 8.507059e+37
      %v870 = vand.u32 %v837, 2147483648
      %v871 = vor.u32 1.1754944e-38, %v870
      %v872 = vsel %vm869, %v871, %v867
      %v873 = vmul.f32 %v827, %v872
      %v874 = vrcp.pop %v840
      %v875 = vmul.f32 %v840, %v874
      %v876 = vsub.f32 1.0, %v875
      %v877 = vmul.f32 %v874, %v876
      %v878 = vadd.f32 %v874, %v877
      %vm879 = vweird.f32 %v840
      %vm880 = vweird.f32 %v874
      %vm881 = vmor %vm879, %vm880
      %v882 = vsel %vm881, %v874, %v878
      %v883 = vand.u32 2147483647, %v840
      %vm884 = vcmp.eq.f32.partialorder %v883, 8.507059e+37
      %v885 = vand.u32 %v840, 2147483648
      %v886 = vor.u32 1.1754944e-38, %v885
      %v887 = vsel %vm884, %v886, %v882
      %v888 = vmul.f32 %v829, %v887
      %v889 = vrcp.pop %v843
      %v890 = vmul.f32 %v843, %v889
      %v891 = vsub.f32 1.0, %v890
      %v892 = vmul.f32 %v889, %v891
      %v893 = vadd.f32 %v889, %v892
      %vm894 = vweird.f32 %v843
      %vm895 = vweird.f32 %v889
      %vm896 = vmor %vm894, %vm895
      %v897 = vsel %vm896, %v889, %v893
      %v898 = vand.u32 2147483647, %v843
      %vm899 = vcmp.eq.f32.partialorder %v898, 8.507059e+37
      %v900 = vand.u32 %v843, 2147483648
      %v901 = vor.u32 1.1754944e-38, %v900
      %v902 = vsel %vm899, %v901, %v897
      %v903 = vmul.f32 %v831, %v902
      %v904 = vpack.c.bf16 %v873, %v858
      %v905 = vpack.c.bf16 %v903, %v888
      %906 = vrot.lane.b32.xlu0 %v699, 112
      %v907 = vpop.permute.xlu0 %906
      %908 = vrot.lane.b32.xlu0 %v700, 112
      %v909 = vpop.permute.xlu0 %908
      %910 = vrot.lane.b32.xlu0 %v701, 112
      %v911 = vpop.permute.xlu0 %910
      %912 = vrot.lane.b32.xlu0 %v702, 112
      %v913 = vpop.permute.xlu0 %912
      %914 = vrot.lane.b32.xlu0 %v703, 112
      %v915 = vpop.permute.xlu0 %914
      %916 = vrot.lane.b32.xlu0 %v704, 112
      %v917 = vpop.permute.xlu0 %916
      %v925 = vsel %vm576, %v904, 0
      %v928 = vsel %vm576, %v905, 0
      %930 = vmatpush.bf16.msra.mxu0 0
      %931 = vmatpush.bf16.msra.mxu0 0
      %932 = vmatpush.bf16.msra.mxu0 %v917
      %933 = vmatpush.bf16.msra.mxu0 %v915
      %934 = vmatpush.bf16.msra.mxu0 %v913
      %935 = vmatpush.bf16.msra.mxu0 %v911
      %936 = vmatpush.bf16.msra.mxu0 %v909
      %937 = vmatpush.bf16.msra.mxu0 %v907
      %938 = vmatmul.bf16.gmra.mxu0 %v925
      %v939 = vpop.f32.mrf.mxu0
      %v940 = vadd.f32 0.0, %v939
      %v941 = vpop.f32.mrf.mxu0
      %v942 = vadd.f32 0.0, %v941
      %943 = vmatmul.bf16.gmra.mxu0 %v928
      %v944 = vpop.f32.mrf.mxu0
      %v945 = vadd.f32 0.0, %v944
      %v946 = vpop.f32.mrf.mxu0
      %v947 = vadd.f32 0.0, %v946
      %948 = vdwg.mxu0
      %v949 = vpack.c.bf16 %v940, %v940
      %v950 = vpack.c.bf16 %v942, %v942
      %v951 = vpack.c.bf16 %v945, %v945
      %v952 = vpack.c.bf16 %v947, %v947
      %957 = vrot.lane.b32.xlu0 %v949, 16
      %v958 = vpop.permute.xlu0 %957
      %959 = vrot.lane.b32.xlu0 %v950, 16
      %v960 = vpop.permute.xlu0 %959
      %961 = vrot.lane.b32.xlu0 %v951, 16
      %v962 = vpop.permute.xlu0 %961
      %963 = vrot.lane.b32.xlu0 %v952, 16
      %v964 = vpop.permute.xlu0 %963
      %vm969 = vcmask 257152
      %970 = vst.msk [vmem:[#allocation3] sm:$0xf] %vm969, %v958
      %971 = vst.msk [vmem:[#allocation3 + $0x4] sm:$0xf] %vm969, %v960
      %972 = vst.msk [vmem:[#allocation3 + $0x8] sm:$0xf] %vm969, %v962
      %973 = vst.msk [vmem:[#allocation3 + $0xc] sm:$0xf] %vm969, %v964
      %974 = vrot.lane.b32.xlu0 %v496, 96
      %v975 = vpop.permute.xlu0 %974
      %976 = vrot.lane.b32.xlu0 %v497, 96
      %v977 = vpop.permute.xlu0 %976
      %978 = vrot.lane.b32.xlu0 %v522, 96
      %v979 = vpop.permute.xlu0 %978
      %980 = vrot.lane.b32.xlu0 %v523, 96
      %v981 = vpop.permute.xlu0 %980
      %982 = vrot.lane.b32.xlu0 %v524, 96
      %v983 = vpop.permute.xlu0 %982
      %984 = vrot.lane.b32.xlu0 %v525, 96
      %v985 = vpop.permute.xlu0 %984
      %986 = vrot.lane.b32.xlu0 %v526, 96
      %v987 = vpop.permute.xlu0 %986
      %988 = vrot.lane.b32.xlu0 %v527, 96
      %v989 = vpop.permute.xlu0 %988
      %v991 = vsel %vm528, %v975, 0
      %v994 = vsel %vm528, %v977, 0
      %v997 = vsel %vm528, %v979, 0
      %v1000 = vsel %vm528, %v981, 0
      %v1003 = vsel %vm528, %v983, 0
      %v1006 = vsel %vm528, %v985, 0
      %v1009 = vsel %vm528, %v987, 0
      %v1012 = vsel %vm528, %v989, 0
      %1014 = vmatpush.bf16.xpose.msra.mxu0 0
      %1015 = vmatpush.bf16.xpose.msra.mxu0 0
      %1016 = vmatpush.bf16.xpose.msra.mxu0 %v1012
      %1017 = vmatpush.bf16.xpose.msra.mxu0 %v1009
      %1018 = vmatpush.bf16.xpose.msra.mxu0 %v1006
      %1019 = vmatpush.bf16.xpose.msra.mxu0 %v1003
      %1020 = vmatpush.bf16.xpose.msra.mxu0 %v1000
      %1021 = vmatpush.bf16.xpose.msra.mxu0 %v997
      %1022 = vmatmul.bf16.gmra.mxu0 %v991
      %v1023 = vpop.f32.mrf.mxu0
      %v1024 = vadd.f32 0.0, %v1023
      %v1025 = vpop.f32.mrf.mxu0
      %v1026 = vadd.f32 0.0, %v1025
      %1027 = vmatmul.bf16.gmra.mxu0 %v994
      %v1028 = vpop.f32.mrf.mxu0
      %v1029 = vadd.f32 0.0, %v1028
      %v1030 = vpop.f32.mrf.mxu0
      %v1031 = vadd.f32 0.0, %v1030
      %1032 = vdwg.mxu0
      %v1033 = vsel %vm487, %v1024, -1e+30
      %v1034 = vsel %vm487, %v1026, -1e+30
      %v1035 = vsel %vm487, %v1029, -1e+30
      %v1036 = vsel %vm487, %v1031, -1e+30
      %v1037 = vsel %vm576, %v1033, -inf
      %1038 = vmax.xlane.f32.xlu0 %v1037
      %v1039 = vpop.xlane.xlu0 %1038
      %v1040 = vsel %vm576, %v1034, -inf
      %1041 = vmax.xlane.f32.xlu0 %v1040
      %v1042 = vpop.xlane.xlu0 %1041
      %v1043 = vsel %vm576, %v1035, -inf
      %1044 = vmax.xlane.f32.xlu0 %v1043
      %v1045 = vpop.xlane.xlu0 %1044
      %v1046 = vsel %vm576, %v1036, -inf
      %1047 = vmax.xlane.f32.xlu0 %v1046
      %v1048 = vpop.xlane.xlu0 %1047
      %v1049 = vsub.f32 %v1033, %v1039
      %v1050 = vsub.f32 %v1034, %v1042
      %v1051 = vsub.f32 %v1035, %v1045
      %v1052 = vsub.f32 %v1036, %v1048
      %v1053 = vmul.f32 %v1049, 1.442695
      %v1054 = vpow.pop %v1053
      %v1055 = vmul.f32 %v1050, 1.442695
      %v1056 = vpow.pop %v1055
      %v1057 = vmul.f32 %v1051, 1.442695
      %v1058 = vpow.pop %v1057
      %v1059 = vmul.f32 %v1052, 1.442695
      %v1060 = vpow.pop %v1059
      %v1061 = vsel %vm576, %v1054, 0.0
      %1062 = vadd.xlane.f32.xlu0 %v1061
      %v1063 = vpop.xlane.xlu0 %1062
      %v1064 = vsel %vm576, %v1056, 0.0
      %1065 = vadd.xlane.f32.xlu0 %v1064
      %v1066 = vpop.xlane.xlu0 %1065
      %v1067 = vsel %vm576, %v1058, 0.0
      %1068 = vadd.xlane.f32.xlu0 %v1067
      %v1069 = vpop.xlane.xlu0 %1068
      %v1070 = vsel %vm576, %v1060, 0.0
      %1071 = vadd.xlane.f32.xlu0 %v1070
      %v1072 = vpop.xlane.xlu0 %1071
      %v1073 = vrcp.pop %v1063
      %v1074 = vmul.f32 %v1063, %v1073
      %v1075 = vsub.f32 1.0, %v1074
      %v1076 = vmul.f32 %v1073, %v1075
      %v1077 = vadd.f32 %v1073, %v1076
      %vm1078 = vweird.f32 %v1063
      %vm1079 = vweird.f32 %v1073
      %vm1080 = vmor %vm1078, %vm1079
      %v1081 = vsel %vm1080, %v1073, %v1077
      %v1082 = vand.u32 2147483647, %v1063
      %vm1083 = vcmp.eq.f32.partialorder %v1082, 8.507059e+37
      %v1084 = vand.u32 %v1063, 2147483648
      %v1085 = vor.u32 1.1754944e-38, %v1084
      %v1086 = vsel %vm1083, %v1085, %v1081
      %v1087 = vmul.f32 %v1054, %v1086
      %v1088 = vrcp.pop %v1066
      %v1089 = vmul.f32 %v1066, %v1088
      %v1090 = vsub.f32 1.0, %v1089
      %v1091 = vmul.f32 %v1088, %v1090
      %v1092 = vadd.f32 %v1088, %v1091
      %vm1093 = vweird.f32 %v1066
      %vm1094 = vweird.f32 %v1088
      %vm1095 = vmor %vm1093, %vm1094
      %v1096 = vsel %vm1095, %v1088, %v1092
      %v1097 = vand.u32 2147483647, %v1066
      %vm1098 = vcmp.eq.f32.partialorder %v1097, 8.507059e+37
      %v1099 = vand.u32 %v1066, 2147483648
      %v1100 = vor.u32 1.1754944e-38, %v1099
      %v1101 = vsel %vm1098, %v1100, %v1096
      %v1102 = vmul.f32 %v1056, %v1101
      %v1103 = vrcp.pop %v1069
      %v1104 = vmul.f32 %v1069, %v1103
      %v1105 = vsub.f32 1.0, %v1104
      %v1106 = vmul.f32 %v1103, %v1105
      %v1107 = vadd.f32 %v1103, %v1106
      %vm1108 = vweird.f32 %v1069
      %vm1109 = vweird.f32 %v1103
      %vm1110 = vmor %vm1108, %vm1109
      %v1111 = vsel %vm1110, %v1103, %v1107
      %v1112 = vand.u32 2147483647, %v1069
      %vm1113 = vcmp.eq.f32.partialorder %v1112, 8.507059e+37
      %v1114 = vand.u32 %v1069, 2147483648
      %v1115 = vor.u32 1.1754944e-38, %v1114
      %v1116 = vsel %vm1113, %v1115, %v1111
      %v1117 = vmul.f32 %v1058, %v1116
      %v1118 = vrcp.pop %v1072
      %v1119 = vmul.f32 %v1072, %v1118
      %v1120 = vsub.f32 1.0, %v1119
      %v1121 = vmul.f32 %v1118, %v1120
      %v1122 = vadd.f32 %v1118, %v1121
      %vm1123 = vweird.f32 %v1072
      %vm1124 = vweird.f32 %v1118
      %vm1125 = vmor %vm1123, %vm1124
      %v1126 = vsel %vm1125, %v1118, %v1122
      %v1127 = vand.u32 2147483647, %v1072
      %vm1128 = vcmp.eq.f32.partialorder %v1127, 8.507059e+37
      %v1129 = vand.u32 %v1072, 2147483648
      %v1130 = vor.u32 1.1754944e-38, %v1129
      %v1131 = vsel %vm1128, %v1130, %v1126
      %v1132 = vmul.f32 %v1060, %v1131
      %v1133 = vpack.c.bf16 %v1102, %v1087
      %v1134 = vpack.c.bf16 %v1132, %v1117
      %1135 = vrot.lane.b32.xlu0 %v699, 96
      %v1136 = vpop.permute.xlu0 %1135
      %1137 = vrot.lane.b32.xlu0 %v700, 96
      %v1138 = vpop.permute.xlu0 %1137
      %1139 = vrot.lane.b32.xlu0 %v701, 96
      %v1140 = vpop.permute.xlu0 %1139
      %1141 = vrot.lane.b32.xlu0 %v702, 96
      %v1142 = vpop.permute.xlu0 %1141
      %1143 = vrot.lane.b32.xlu0 %v703, 96
      %v1144 = vpop.permute.xlu0 %1143
      %1145 = vrot.lane.b32.xlu0 %v704, 96
      %v1146 = vpop.permute.xlu0 %1145
      %v1154 = vsel %vm576, %v1133, 0
      %v1157 = vsel %vm576, %v1134, 0
      %1159 = vmatpush.bf16.msra.mxu0 0
      %1160 = vmatpush.bf16.msra.mxu0 0
      %1161 = vmatpush.bf16.msra.mxu0 %v1146
      %1162 = vmatpush.bf16.msra.mxu0 %v1144
      %1163 = vmatpush.bf16.msra.mxu0 %v1142
      %1164 = vmatpush.bf16.msra.mxu0 %v1140
      %1165 = vmatpush.bf16.msra.mxu0 %v1138
      %1166 = vmatpush.bf16.msra.mxu0 %v1136
      %1167 = vmatmul.bf16.gmra.mxu0 %v1154
      %v1168 = vpop.f32.mrf.mxu0
      %v1169 = vadd.f32 0.0, %v1168
      %v1170 = vpop.f32.mrf.mxu0
      %v1171 = vadd.f32 0.0, %v1170
      %1172 = vmatmul.bf16.gmra.mxu0 %v1157
      %v1173 = vpop.f32.mrf.mxu0
      %v1174 = vadd.f32 0.0, %v1173
      %v1175 = vpop.f32.mrf.mxu0
      %v1176 = vadd.f32 0.0, %v1175
      %1177 = vdwg.mxu0
      %v1178 = vpack.c.bf16 %v1169, %v1169
      %v1179 = vpack.c.bf16 %v1171, %v1171
      %v1180 = vpack.c.bf16 %v1174, %v1174
      %v1181 = vpack.c.bf16 %v1176, %v1176
      %1186 = vrot.lane.b32.xlu0 %v1178, 32
      %v1187 = vpop.permute.xlu0 %1186
      %1188 = vrot.lane.b32.xlu0 %v1179, 32
      %v1189 = vpop.permute.xlu0 %1188
      %1190 = vrot.lane.b32.xlu0 %v1180, 32
      %v1191 = vpop.permute.xlu0 %1190
      %1192 = vrot.lane.b32.xlu0 %v1181, 32
      %v1193 = vpop.permute.xlu0 %1192
      %vm1198 = vcmask 388352
      %1199 = vst.msk [vmem:[#allocation3] sm:$0xf] %vm1198, %v1187
      %1200 = vst.msk [vmem:[#allocation3 + $0x4] sm:$0xf] %vm1198, %v1189
      %1201 = vst.msk [vmem:[#allocation3 + $0x8] sm:$0xf] %vm1198, %v1191
      %1202 = vst.msk [vmem:[#allocation3 + $0xc] sm:$0xf] %vm1198, %v1193
      %1203 = vrot.lane.b32.xlu0 %v496, 80
      %v1204 = vpop.permute.xlu0 %1203
      %1205 = vrot.lane.b32.xlu0 %v497, 80
      %v1206 = vpop.permute.xlu0 %1205
      %1207 = vrot.lane.b32.xlu0 %v522, 80
      %v1208 = vpop.permute.xlu0 %1207
      %1209 = vrot.lane.b32.xlu0 %v523, 80
      %v1210 = vpop.permute.xlu0 %1209
      %1211 = vrot.lane.b32.xlu0 %v524, 80
      %v1212 = vpop.permute.xlu0 %1211
      %1213 = vrot.lane.b32.xlu0 %v525, 80
      %v1214 = vpop.permute.xlu0 %1213
      %1215 = vrot.lane.b32.xlu0 %v526, 80
      %v1216 = vpop.permute.xlu0 %1215
      %1217 = vrot.lane.b32.xlu0 %v527, 80
      %v1218 = vpop.permute.xlu0 %1217
      %v1220 = vsel %vm528, %v1204, 0
      %v1223 = vsel %vm528, %v1206, 0
      %v1226 = vsel %vm528, %v1208, 0
      %v1229 = vsel %vm528, %v1210, 0
      %v1232 = vsel %vm528, %v1212, 0
      %v1235 = vsel %vm528, %v1214, 0
      %v1238 = vsel %vm528, %v1216, 0
      %v1241 = vsel %vm528, %v1218, 0
      %1243 = vmatpush.bf16.xpose.msra.mxu0 0
      %1244 = vmatpush.bf16.xpose.msra.mxu0 0
      %1245 = vmatpush.bf16.xpose.msra.mxu0 %v1241
      %1246 = vmatpush.bf16.xpose.msra.mxu0 %v1238
      %1247 = vmatpush.bf16.xpose.msra.mxu0 %v1235
      %1248 = vmatpush.bf16.xpose.msra.mxu0 %v1232
      %1249 = vmatpush.bf16.xpose.msra.mxu0 %v1229
      %1250 = vmatpush.bf16.xpose.msra.mxu0 %v1226
      %1251 = vmatmul.bf16.gmra.mxu0 %v1220
      %v1252 = vpop.f32.mrf.mxu0
      %v1253 = vadd.f32 0.0, %v1252
      %v1254 = vpop.f32.mrf.mxu0
      %v1255 = vadd.f32 0.0, %v1254
      %1256 = vmatmul.bf16.gmra.mxu0 %v1223
      %v1257 = vpop.f32.mrf.mxu0
      %v1258 = vadd.f32 0.0, %v1257
      %v1259 = vpop.f32.mrf.mxu0
      %v1260 = vadd.f32 0.0, %v1259
      %1261 = vdwg.mxu0
      %v1262 = vsel %vm487, %v1253, -1e+30
      %v1263 = vsel %vm487, %v1255, -1e+30
      %v1264 = vsel %vm487, %v1258, -1e+30
      %v1265 = vsel %vm487, %v1260, -1e+30
      %v1266 = vsel %vm576, %v1262, -inf
      %1267 = vmax.xlane.f32.xlu0 %v1266
      %v1268 = vpop.xlane.xlu0 %1267
      %v1269 = vsel %vm576, %v1263, -inf
      %1270 = vmax.xlane.f32.xlu0 %v1269
      %v1271 = vpop.xlane.xlu0 %1270
      %v1272 = vsel %vm576, %v1264, -inf
      %1273 = vmax.xlane.f32.xlu0 %v1272
      %v1274 = vpop.xlane.xlu0 %1273
      %v1275 = vsel %vm576, %v1265, -inf
      %1276 = vmax.xlane.f32.xlu0 %v1275
      %v1277 = vpop.xlane.xlu0 %1276
      %v1278 = vsub.f32 %v1262, %v1268
      %v1279 = vsub.f32 %v1263, %v1271
      %v1280 = vsub.f32 %v1264, %v1274
      %v1281 = vsub.f32 %v1265, %v1277
      %v1282 = vmul.f32 %v1278, 1.442695
      %v1283 = vpow.pop %v1282
      %v1284 = vmul.f32 %v1279, 1.442695
      %v1285 = vpow.pop %v1284
      %v1286 = vmul.f32 %v1280, 1.442695
      %v1287 = vpow.pop %v1286
      %v1288 = vmul.f32 %v1281, 1.442695
      %v1289 = vpow.pop %v1288
      %v1290 = vsel %vm576, %v1283, 0.0
      %1291 = vadd.xlane.f32.xlu0 %v1290
      %v1292 = vpop.xlane.xlu0 %1291
      %v1293 = vsel %vm576, %v1285, 0.0
      %1294 = vadd.xlane.f32.xlu0 %v1293
      %v1295 = vpop.xlane.xlu0 %1294
      %v1296 = vsel %vm576, %v1287, 0.0
      %1297 = vadd.xlane.f32.xlu0 %v1296
      %v1298 = vpop.xlane.xlu0 %1297
      %v1299 = vsel %vm576, %v1289, 0.0
      %1300 = vadd.xlane.f32.xlu0 %v1299
      %v1301 = vpop.xlane.xlu0 %1300
      %v1302 = vrcp.pop %v1292
      %v1303 = vmul.f32 %v1292, %v1302
      %v1304 = vsub.f32 1.0, %v1303
      %v1305 = vmul.f32 %v1302, %v1304
      %v1306 = vadd.f32 %v1302, %v1305
      %vm1307 = vweird.f32 %v1292
      %vm1308 = vweird.f32 %v1302
      %vm1309 = vmor %vm1307, %vm1308
      %v1310 = vsel %vm1309, %v1302, %v1306
      %v1311 = vand.u32 2147483647, %v1292
      %vm1312 = vcmp.eq.f32.partialorder %v1311, 8.507059e+37
      %v1313 = vand.u32 %v1292, 2147483648
      %v1314 = vor.u32 1.1754944e-38, %v1313
      %v1315 = vsel %vm1312, %v1314, %v1310
      %v1316 = vmul.f32 %v1283, %v1315
      %v1317 = vrcp.pop %v1295
      %v1318 = vmul.f32 %v1295, %v1317
      %v1319 = vsub.f32 1.0, %v1318
      %v1320 = vmul.f32 %v1317, %v1319
      %v1321 = vadd.f32 %v1317, %v1320
      %vm1322 = vweird.f32 %v1295
      %vm1323 = vweird.f32 %v1317
      %vm1324 = vmor %vm1322, %vm1323
      %v1325 = vsel %vm1324, %v1317, %v1321
      %v1326 = vand.u32 2147483647, %v1295
      %vm1327 = vcmp.eq.f32.partialorder %v1326, 8.507059e+37
      %v1328 = vand.u32 %v1295, 2147483648
      %v1329 = vor.u32 1.1754944e-38, %v1328
      %v1330 = vsel %vm1327, %v1329, %v1325
      %v1331 = vmul.f32 %v1285, %v1330
      %v1332 = vrcp.pop %v1298
      %v1333 = vmul.f32 %v1298, %v1332
      %v1334 = vsub.f32 1.0, %v1333
      %v1335 = vmul.f32 %v1332, %v1334
      %v1336 = vadd.f32 %v1332, %v1335
      %vm1337 = vweird.f32 %v1298
      %vm1338 = vweird.f32 %v1332
      %vm1339 = vmor %vm1337, %vm1338
      %v1340 = vsel %vm1339, %v1332, %v1336
      %v1341 = vand.u32 2147483647, %v1298
      %vm1342 = vcmp.eq.f32.partialorder %v1341, 8.507059e+37
      %v1343 = vand.u32 %v1298, 2147483648
      %v1344 = vor.u32 1.1754944e-38, %v1343
      %v1345 = vsel %vm1342, %v1344, %v1340
      %v1346 = vmul.f32 %v1287, %v1345
      %v1347 = vrcp.pop %v1301
      %v1348 = vmul.f32 %v1301, %v1347
      %v1349 = vsub.f32 1.0, %v1348
      %v1350 = vmul.f32 %v1347, %v1349
      %v1351 = vadd.f32 %v1347, %v1350
      %vm1352 = vweird.f32 %v1301
      %vm1353 = vweird.f32 %v1347
      %vm1354 = vmor %vm1352, %vm1353
      %v1355 = vsel %vm1354, %v1347, %v1351
      %v1356 = vand.u32 2147483647, %v1301
      %vm1357 = vcmp.eq.f32.partialorder %v1356, 8.507059e+37
      %v1358 = vand.u32 %v1301, 2147483648
      %v1359 = vor.u32 1.1754944e-38, %v1358
      %v1360 = vsel %vm1357, %v1359, %v1355
      %v1361 = vmul.f32 %v1289, %v1360
      %v1362 = vpack.c.bf16 %v1331, %v1316
      %v1363 = vpack.c.bf16 %v1361, %v1346
      %1364 = vrot.lane.b32.xlu0 %v699, 80
      %v1365 = vpop.permute.xlu0 %1364
      %1366 = vrot.lane.b32.xlu0 %v700, 80
      %v1367 = vpop.permute.xlu0 %1366
      %1368 = vrot.lane.b32.xlu0 %v701, 80
      %v1369 = vpop.permute.xlu0 %1368
      %1370 = vrot.lane.b32.xlu0 %v702, 80
      %v1371 = vpop.permute.xlu0 %1370
      %1372 = vrot.lane.b32.xlu0 %v703, 80
      %v1373 = vpop.permute.xlu0 %1372
      %1374 = vrot.lane.b32.xlu0 %v704, 80
      %v1375 = vpop.permute.xlu0 %1374
      %v1383 = vsel %vm576, %v1362, 0
      %v1386 = vsel %vm576, %v1363, 0
      %1388 = vmatpush.bf16.msra.mxu0 0
      %1389 = vmatpush.bf16.msra.mxu0 0
      %1390 = vmatpush.bf16.msra.mxu0 %v1375
      %1391 = vmatpush.bf16.msra.mxu0 %v1373
      %1392 = vmatpush.bf16.msra.mxu0 %v1371
      %1393 = vmatpush.bf16.msra.mxu0 %v1369
      %1394 = vmatpush.bf16.msra.mxu0 %v1367
      %1395 = vmatpush.bf16.msra.mxu0 %v1365
      %1396 = vmatmul.bf16.gmra.mxu0 %v1383
      %v1397 = vpop.f32.mrf.mxu0
      %v1398 = vadd.f32 0.0, %v1397
      %v1399 = vpop.f32.mrf.mxu0
      %v1400 = vadd.f32 0.0, %v1399
      %1401 = vmatmul.bf16.gmra.mxu0 %v1386
      %v1402 = vpop.f32.mrf.mxu0
      %v1403 = vadd.f32 0.0, %v1402
      %v1404 = vpop.f32.mrf.mxu0
      %v1405 = vadd.f32 0.0, %v1404
      %1406 = vdwg.mxu0
      %v1407 = vpack.c.bf16 %v1398, %v1398
      %v1408 = vpack.c.bf16 %v1400, %v1400
      %v1409 = vpack.c.bf16 %v1403, %v1403
      %v1410 = vpack.c.bf16 %v1405, %v1405
      %1415 = vrot.lane.b32.xlu0 %v1407, 48
      %v1416 = vpop.permute.xlu0 %1415
      %1417 = vrot.lane.b32.xlu0 %v1408, 48
      %v1418 = vpop.permute.xlu0 %1417
      %1419 = vrot.lane.b32.xlu0 %v1409, 48
      %v1420 = vpop.permute.xlu0 %1419
      %1421 = vrot.lane.b32.xlu0 %v1410, 48
      %v1422 = vpop.permute.xlu0 %1421
      %vm1427 = vcmask 519552
      %1428 = vst.msk [vmem:[#allocation3] sm:$0xf] %vm1427, %v1416
      %1429 = vst.msk [vmem:[#allocation3 + $0x4] sm:$0xf] %vm1427, %v1418
      %1430 = vst.msk [vmem:[#allocation3 + $0x8] sm:$0xf] %vm1427, %v1420
      %1431 = vst.msk [vmem:[#allocation3 + $0xc] sm:$0xf] %vm1427, %v1422
      %v1432 = vld [vmem:[#allocation2] sm:$0xff]
      %v1433 = vld [vmem:[#allocation2 + $0x8] sm:$0xff]
      %v1434 = vld [vmem:[#allocation2 + $0x10] sm:$0xff]
      %v1435 = vld [vmem:[#allocation2 + $0x18] sm:$0xff]
      %v1436 = vld [vmem:[#allocation3] sm:$0xf]
      %v1437 = vld [vmem:[#allocation3 + $0x4] sm:$0xf]
      %v1438 = vld [vmem:[#allocation3 + $0x8] sm:$0xf]
      %v1439 = vld [vmem:[#allocation3 + $0xc] sm:$0xf]
      %v1440 = vld [vmem:[%s425] sm:$0xf]
      %v1441 = vld [vmem:[%s425 + $0x4] sm:$0xf]
      %v1442 = vld [vmem:[%s425 + $0x8] sm:$0xf]
      %v1443 = vld [vmem:[%s425 + $0xc] sm:$0xf]
      %v1444 = vld [vmem:[%s425 + $0x10] sm:$0xf]
      %v1445 = vld [vmem:[%s425 + $0x14] sm:$0xf]
      %v1446 = vld [vmem:[%s425 + $0x18] sm:$0xf]
      %v1447 = vld [vmem:[%s425 + $0x1c] sm:$0xf]
      %v1452 = vunpack.c.l.b16 %v1436
      %v1453 = vunpack.c.l.b16 %v1437
      %v1454 = vunpack.c.l.b16 %v1438
      %v1455 = vunpack.c.l.b16 %v1439
      %v1456 = vpack.c.b16 %v1453, %v1452
      %v1457 = vpack.c.b16 %v1455, %v1454
      %v1466 = vunpack.c.l.b16 %v1440
      %v1467 = vunpack.c.l.b16 %v1441
      %v1468 = vunpack.c.l.b16 %v1442
      %v1469 = vunpack.c.l.b16 %v1443
      %v1470 = vunpack.c.l.b16 %v1444
      %v1471 = vunpack.c.l.b16 %v1445
      %v1472 = vunpack.c.l.b16 %v1446
      %v1473 = vunpack.c.l.b16 %v1447
      %v1474 = vpack.c.b16 %v1467, %v1466
      %v1475 = vpack.c.b16 %v1469, %v1468
      %v1476 = vpack.c.b16 %v1471, %v1470
      %v1477 = vpack.c.b16 %v1473, %v1472
      %vm1482 = vcmask 523264
      %v1484 = vsel %vm1482, %v1456, 0
      %v1487 = vsel %vm1482, %v1457, 0
      %1489 = vmatpush.bf16.msra.mxu0 0
      %1490 = vmatpush.bf16.msra.mxu0 0
      %1491 = vmatpush.bf16.msra.mxu0 0
      %1492 = vmatpush.bf16.msra.mxu0 0
      %1493 = vmatpush.bf16.msra.mxu0 %v1477
      %1494 = vmatpush.bf16.msra.mxu0 %v1476
      %1495 = vmatpush.bf16.msra.mxu0 %v1475
      %1496 = vmatpush.bf16.msra.mxu0 %v1474
      %1497 = vmatmul.bf16.gmra.mxu0 %v1484
      %v1498 = vpop.f32.mrf.mxu0
      %v1499 = vadd.f32 0.0, %v1498
      %v1500 = vpop.f32.mrf.mxu0
      %v1501 = vadd.f32 0.0, %v1500
      %1502 = vmatmul.bf16.gmra.mxu0 %v1487
      %v1503 = vpop.f32.mrf.mxu0
      %v1504 = vadd.f32 0.0, %v1503
      %v1505 = vpop.f32.mrf.mxu0
      %v1506 = vadd.f32 0.0, %v1505
      %1507 = vdwg.mxu0
      %v1508 = vadd.f32 %v1432, %v1499
      %v1509 = vadd.f32 %v1433, %v1501
      %v1510 = vadd.f32 %v1434, %v1504
      %v1511 = vadd.f32 %v1435, %v1506
      %1512 = vst [vmem:[#allocation2] sm:$0xff] %v1508
      %1513 = vst [vmem:[#allocation2 + $0x8] sm:$0xff] %v1509
      %1514 = vst [vmem:[#allocation2 + $0x10] sm:$0xff] %v1510
      %1515 = vst [vmem:[#allocation2 + $0x18] sm:$0xff] %v1511
      %p1516 = scmp.eq.s32.totalorder %s24, 1
      // Predicated region
      $region49: #{siglip_vision_transformer.10} parent=43 // pred_check
        %p1517 = pneg %p1516
      $region50: #{siglip_vision_transformer.10} parent=43 // pred_check_branch
        %1519 = sbr.rel (%p1517) target = $region52
      $region51: #{siglip_vision_transformer.10} parent=43 // pred_region
        %v1520 = vld [vmem:[#allocation2] sm:$0xff]
        %v1521 = vld [vmem:[#allocation2 + $0x8] sm:$0xff]
        %v1522 = vld [vmem:[#allocation2 + $0x10] sm:$0xff]
        %v1523 = vld [vmem:[#allocation2 + $0x18] sm:$0xff]
        %1524 = vst [vmem:[%s434] sm:$0xff] %v1520
        %1525 = vst [vmem:[%s434 + $0x8] sm:$0xff] %v1521
        %1526 = vst [vmem:[%s434 + $0x10] sm:$0xff] %v1522
        %1527 = vst [vmem:[%s434 + $0x18] sm:$0xff] %v1523
      $region52: #{siglip_vision_transformer.10} parent=43 // pred_fallthru
        _
      %s1528 = smul.u32 4, %s23
      %p1529 = scmp.lt.s32.totalorder %s22, 1
      %s1530 = scalar_select %p1529, %s22, 1
      %p1531 = scmp.lt.s32.totalorder %s1528, 11
      %s1532 = scalar_select %p1531, %s1528, 11
      %s1533 = smul.addr %s1530, 12
      %s1534 = sadd.s32 %s1532, %s1533
      %s1535 = smul.addr %s1534, 8
      %s1536 = scalar_lea.vmem %s6, %s1535
      // Predicated region
      $region53: #{siglip_vision_transformer.10} parent=43 // pred_check
        %p1537 = pneg %p217
      $region54: #{siglip_vision_transformer.10} parent=43 // pred_check_branch
        %1539 = sbr.rel (%p1537) target = $region56
      $region55: #{siglip_vision_transformer.10} parent=43 // pred_region
        %s1540 = smul.u32 4, %s23
      $region56: #{siglip_vision_transformer.10} parent=43 // pred_fallthru
        _
    $region44: #{siglip_vision_transformer.10} parent=5 // pred_fallthru
      _
    %p1541 = scmp.le.s32.totalorder 2, %s12
    // Predicated region
    $region57: #{siglip_vision_transformer.10} parent=5 // pred_check
      %p1542 = pneg %p1541
    $region58: #{siglip_vision_transformer.10} parent=5 // pred_check_branch
      %1544 = sbr.rel (%p1542) target = $region60
    $region59: #{siglip_vision_transformer.10} parent=5 // pred_region
      %s1545 = ssub.s32 %s12, 2
      // Predicated region
      $region61: #{siglip_vision_transformer.10} parent=59 // pred_check
        %p1546 = pneg %p223
      $region62: #{siglip_vision_transformer.10} parent=59 // pred_check_branch
        %1548 = sbr.rel (%p1546) target = $region64
      $region63: #{siglip_vision_transformer.10} parent=59 // pred_region
        %s1549 = smul.u32 4, %s26
        %p1550 = scmp.lt.s32.totalorder %s25, 1
        %s1551 = scalar_select %p1550, %s25, 1
        %p1552 = scmp.lt.s32.totalorder %s1549, 11
        %s1553 = scalar_select %p1552, %s1549, 11
        %s1554 = smul.addr %s1551, 12
        %s1555 = sadd.s32 %s1553, %s1554
        %s1556 = smul.addr %s1555, 8
        %s1557 = scalar_lea.vmem %s6, %s1556
      $region64: #{siglip_vision_transformer.10} parent=59 // pred_fallthru
        _
    $region60: #{siglip_vision_transformer.10} parent=5 // pred_fallthru
      _
  $region6: #{siglip_vision_transformer.10} parent=0 // loop_footer
    %s16 = sadd.s32 1, %s12
  $region7: #{siglip_vision_transformer.10} parent=0 // loop_footer_branch
    %11 = sbr.rel target = $region3
  $region8: #{siglip_vision_transformer.10} parent=0 // loop_exit
    _

// kernel: siglip_vision_transformer.11
$region0: #{siglip_vision_transformer.11}
  #allocation0 [shape = 'u32[]', space=smem, size = 0x4, offset = 0x4, fixed_abs, tag = 'smem constant byte address 0x4 - core index']
  #allocation1 [shape = 'u32[72,128]{1,0:T(1,128)}', space=vmem, size = 0x9000, scoped, tag = 'internal scratch']
  #allocation2 [shape = 'f32[32,128]{1,0:T(8,128)}', space=vmem, size = 0x4000, scoped, tag = 'scratch operand']
  #allocation3 [shape = 'bf16[32,128]{1,0:T(8,128)(2,1)}', space=vmem, size = 0x2000, scoped, tag = 'scratch operand']
  %s0 = inlined_call_operand.vmem [shape: f32[2,96,128], index: 0, kind: input, shape index: {}, may-alias: {0,7}]
  %s1 = inlined_call_operand.vmem [shape: f32[1,128], index: 1, kind: input, shape index: {}]
  %s2 = inlined_call_operand.vmem [shape: f32[1,128], index: 2, kind: input, shape index: {}]
  %s3 = inlined_call_operand.vmem [shape: bf16[128,256], index: 3, kind: input, shape index: {}]
  %s4 = inlined_call_operand.vmem [shape: f32[1,256], index: 4, kind: input, shape index: {}]
  %s5 = inlined_call_operand.vmem [shape: bf16[256,128], index: 5, kind: input, shape index: {}]
  %s6 = inlined_call_operand.vmem [shape: f32[1,128], index: 6, kind: input, shape index: {}]
  %s7 = inlined_call_operand.vmem [shape: f32[2,96,128], index: 7, kind: output, shape index: {}, may-alias: {0,7}]
  %s8 = sld [smem:[#allocation0]]
  $region110: #{siglip_vision_transformer.11} parent=0
    _
  %s10 = ssub.s32 1, %s8
  %s11 = scalar_select 0, %s10, %s8
  $region1: #{siglip_vision_transformer.11} parent=0
    #allocation4 [shape = 'u8[65536]{0}', space=vmem, size = 0x10000, scoped, tag = 'input window, operand 3']
    loop: start=0, step=1, limit=14
    $region2: #{siglip_vision_transformer.11} parent=1 // loop_pre_header
      _
    $region3: #{siglip_vision_transformer.11} parent=1 // loop_header
      %s13 = sphi 0, %s17
      %p14 = scmp.ge.s32.totalorder %s13, 14
      %s20 = sphi 0, %s39
      %s21 = sphi 0, %s35
      %s22 = sphi 0, %s31
      %s23 = sphi 0, %s20
      %s24 = sphi 0, %s21
      %s25 = sphi 0, %s22
      %s26 = sphi 0, %s23
      %s27 = sphi 0, %s24
      %s28 = sphi 0, %s25
      %s44 = sphi 0, %s46
      %s47 = sphi 0, %s44
      %s48 = sphi 0, %s47
      %s64 = sphi 0, %s48
      %s68 = sphi 0, %s68
      %s70 = sphi 0, %s68
      %s71 = sphi 0, %s70
      %s85 = sphi 0, %s71
      %s89 = sphi 0, %s89
      %s91 = sphi 0, %s89
      %s92 = sphi 0, %s91
      %s106 = sphi 0, %s92
      %s112 = sphi 0, %s114
      %s115 = sphi 0, %s112
      %s116 = sphi 0, %s115
      %s132 = sphi 0, %s116
      %s138 = sphi 0, %s140
      %s141 = sphi 0, %s138
      %s142 = sphi 0, %s141
      %s158 = sphi 0, %s142
      %s164 = sphi 0, %s166
      %s167 = sphi 0, %s164
      %s168 = sphi 0, %s167
      %s184 = sphi 0, %s168
      %s188 = sphi 0, %s188
      %s190 = sphi 0, %s188
      %s191 = sphi 0, %s190
      %s205 = sphi 0, %s191
      %s213 = sphi 0, %s215
      %s216 = sphi 0, %s213
      %s217 = sphi 0, %s216
      %s233 = sphi 0, %s217
    $region4: #{siglip_vision_transformer.11} parent=1 // loop_header_branch
      %16 = sbr.rel (%p14) target = $region8
    $region5: #{siglip_vision_transformer.11} parent=1 // loop_body
      %s18 = ssub.s32 %s13, 1
      %s19 = ssub.s32 %s13, 2
      %s29 = sadd.s32 1, %s22
      %p30 = scmp.ge.s32.totalorder %s29, 2
      %s31 = scalar_select %p30, 0, %s29
      %s32 = sadd.s32 1, %s21
      %s33 = scalar_select %p30, %s32, %s21
      %p34 = scmp.ge.s32.totalorder %s33, 3
      %s35 = scalar_select %p34, 0, %s33
      %s36 = sadd.s32 1, %s20
      %s37 = scalar_select %p34, %s36, %s20
      %p38 = scmp.ge.s32.totalorder %s37, 2
      %s39 = scalar_select %p38, 0, %s37
      %s40 = ssub.s32 %s20, %s39
      %s41 = ssub.s32 %s21, %s35
      %s42 = sor.u32 %s40, %s41
      %p43 = scmp.eq.s32.totalorder %s42, 0
      %s45 = sadd.s32 %s44, 1
      %s46 = scalar_select %p43, %s44, %s45
      %p49 = pneg %p43
      %p50 = scmp.eq.s32.totalorder %s13, 11
      %p51 = por %p49, %p50
      %p52 = scmp.ne.s32.totalorder %s44, %s47
      %p53 = scmp.eq.s32.totalorder %s13, 0
      %p54 = por %p52, %p53
      %p55 = scmp.ne.s32.totalorder %s44, %s47
      %p56 = scmp.eq.s32.totalorder %s18, 11
      %p57 = por %p55, %p56
      %p58 = scmp.ne.s32.totalorder %s47, %s48
      %p59 = scmp.eq.s32.totalorder %s18, 0
      %p60 = por %p58, %p59
      %p61 = scmp.ne.s32.totalorder %s47, %s48
      %p62 = scmp.eq.s32.totalorder %s19, 11
      %p63 = por %p61, %p62
      %p65 = scmp.ne.s32.totalorder %s48, %s64
      %p66 = scmp.eq.s32.totalorder %s19, 0
      %p67 = por %p65, %p66
      %s69 = sadd.s32 %s68, 1
      %p72 = scmp.eq.s32.totalorder %s13, 11
      %p73 = scmp.ne.s32.totalorder %s68, %s70
      %p74 = scmp.eq.s32.totalorder %s13, 0
      %p75 = por %p73, %p74
      %p76 = scmp.ne.s32.totalorder %s68, %s70
      %p77 = scmp.eq.s32.totalorder %s18, 11
      %p78 = por %p76, %p77
      %p79 = scmp.ne.s32.totalorder %s70, %s71
      %p80 = scmp.eq.s32.totalorder %s18, 0
      %p81 = por %p79, %p80
      %p82 = scmp.ne.s32.totalorder %s70, %s71
      %p83 = scmp.eq.s32.totalorder %s19, 11
      %p84 = por %p82, %p83
      %p86 = scmp.ne.s32.totalorder %s71, %s85
      %p87 = scmp.eq.s32.totalorder %s19, 0
      %p88 = por %p86, %p87
      %s90 = sadd.s32 %s89, 1
      %p93 = scmp.eq.s32.totalorder %s13, 11
      %p94 = scmp.ne.s32.totalorder %s89, %s91
      %p95 = scmp.eq.s32.totalorder %s13, 0
      %p96 = por %p94, %p95
      %p97 = scmp.ne.s32.totalorder %s89, %s91
      %p98 = scmp.eq.s32.totalorder %s18, 11
      %p99 = por %p97, %p98
      %p100 = scmp.ne.s32.totalorder %s91, %s92
      %p101 = scmp.eq.s32.totalorder %s18, 0
      %p102 = por %p100, %p101
      %p103 = scmp.ne.s32.totalorder %s91, %s92
      %p104 = scmp.eq.s32.totalorder %s19, 11
      %p105 = por %p103, %p104
      %p107 = scmp.ne.s32.totalorder %s92, %s106
      %p108 = scmp.eq.s32.totalorder %s19, 0
      %p109 = por %p107, %p108
      %s110 = ssub.s32 %s22, %s31
      %p111 = scmp.eq.s32.totalorder %s110, 0
      %s113 = sadd.s32 %s112, 1
      %s114 = scalar_select %p111, %s112, %s113
      %p117 = pneg %p111
      %p118 = scmp.eq.s32.totalorder %s13, 11
      %p119 = por %p117, %p118
      %p120 = scmp.ne.s32.totalorder %s112, %s115
      %p121 = scmp.eq.s32.totalorder %s13, 0
      %p122 = por %p120, %p121
      %p123 = scmp.ne.s32.totalorder %s112, %s115
      %p124 = scmp.eq.s32.totalorder %s18, 11
      %p125 = por %p123, %p124
      %p126 = scmp.ne.s32.totalorder %s115, %s116
      %p127 = scmp.eq.s32.totalorder %s18, 0
      %p128 = por %p126, %p127
      %p129 = scmp.ne.s32.totalorder %s115, %s116
      %p130 = scmp.eq.s32.totalorder %s19, 11
      %p131 = por %p129, %p130
      %p133 = scmp.ne.s32.totalorder %s116, %s132
      %p134 = scmp.eq.s32.totalorder %s19, 0
      %p135 = por %p133, %p134
      %s136 = ssub.s32 %s22, %s31
      %p137 = scmp.eq.s32.totalorder %s136, 0
      %s139 = sadd.s32 %s138, 1
      %s140 = scalar_select %p137, %s138, %s139
      %p143 = pneg %p137
      %p144 = scmp.eq.s32.totalorder %s13, 11
      %p145 = por %p143, %p144
      %p146 = scmp.ne.s32.totalorder %s138, %s141
      %p147 = scmp.eq.s32.totalorder %s13, 0
      %p148 = por %p146, %p147
      %p149 = scmp.ne.s32.totalorder %s138, %s141
      %p150 = scmp.eq.s32.totalorder %s18, 11
      %p151 = por %p149, %p150
      %p152 = scmp.ne.s32.totalorder %s141, %s142
      %p153 = scmp.eq.s32.totalorder %s18, 0
      %p154 = por %p152, %p153
      %p155 = scmp.ne.s32.totalorder %s141, %s142
      %p156 = scmp.eq.s32.totalorder %s19, 11
      %p157 = por %p155, %p156
      %p159 = scmp.ne.s32.totalorder %s142, %s158
      %p160 = scmp.eq.s32.totalorder %s19, 0
      %p161 = por %p159, %p160
      %s162 = ssub.s32 %s22, %s31
      %p163 = scmp.eq.s32.totalorder %s162, 0
      %s165 = sadd.s32 %s164, 1
      %s166 = scalar_select %p163, %s164, %s165
      %p169 = pneg %p163
      %p170 = scmp.eq.s32.totalorder %s13, 11
      %p171 = por %p169, %p170
      %p172 = scmp.ne.s32.totalorder %s164, %s167
      %p173 = scmp.eq.s32.totalorder %s13, 0
      %p174 = por %p172, %p173
      %p175 = scmp.ne.s32.totalorder %s164, %s167
      %p176 = scmp.eq.s32.totalorder %s18, 11
      %p177 = por %p175, %p176
      %p178 = scmp.ne.s32.totalorder %s167, %s168
      %p179 = scmp.eq.s32.totalorder %s18, 0
      %p180 = por %p178, %p179
      %p181 = scmp.ne.s32.totalorder %s167, %s168
      %p182 = scmp.eq.s32.totalorder %s19, 11
      %p183 = por %p181, %p182
      %p185 = scmp.ne.s32.totalorder %s168, %s184
      %p186 = scmp.eq.s32.totalorder %s19, 0
      %p187 = por %p185, %p186
      %s189 = sadd.s32 %s188, 1
      %p192 = scmp.eq.s32.totalorder %s13, 11
      %p193 = scmp.ne.s32.totalorder %s188, %s190
      %p194 = scmp.eq.s32.totalorder %s13, 0
      %p195 = por %p193, %p194
      %p196 = scmp.ne.s32.totalorder %s188, %s190
      %p197 = scmp.eq.s32.totalorder %s18, 11
      %p198 = por %p196, %p197
      %p199 = scmp.ne.s32.totalorder %s190, %s191
      %p200 = scmp.eq.s32.totalorder %s18, 0
      %p201 = por %p199, %p200
      %p202 = scmp.ne.s32.totalorder %s190, %s191
      %p203 = scmp.eq.s32.totalorder %s19, 11
      %p204 = por %p202, %p203
      %p206 = scmp.ne.s32.totalorder %s191, %s205
      %p207 = scmp.eq.s32.totalorder %s19, 0
      %p208 = por %p206, %p207
      %s209 = ssub.s32 %s20, %s39
      %s210 = ssub.s32 %s21, %s35
      %s211 = sor.u32 %s209, %s210
      %p212 = scmp.eq.s32.totalorder %s211, 0
      %s214 = sadd.s32 %s213, 1
      %s215 = scalar_select %p212, %s213, %s214
      %p218 = pneg %p212
      %p219 = scmp.eq.s32.totalorder %s13, 11
      %p220 = por %p218, %p219
      %p221 = scmp.ne.s32.totalorder %s213, %s216
      %p222 = scmp.eq.s32.totalorder %s13, 0
      %p223 = por %p221, %p222
      %p224 = scmp.ne.s32.totalorder %s213, %s216
      %p225 = scmp.eq.s32.totalorder %s18, 11
      %p226 = por %p224, %p225
      %p227 = scmp.ne.s32.totalorder %s216, %s217
      %p228 = scmp.eq.s32.totalorder %s18, 0
      %p229 = por %p227, %p228
      %p230 = scmp.ne.s32.totalorder %s216, %s217
      %p231 = scmp.eq.s32.totalorder %s19, 11
      %p232 = por %p230, %p231
      %p234 = scmp.ne.s32.totalorder %s217, %s233
      %p235 = scmp.eq.s32.totalorder %s19, 0
      %p236 = por %p234, %p235
      %p237 = scmp.le.s32.totalorder 1, %s13
      %p238 = scmp.lt.s32.totalorder %s13, 13
      %p239 = pnand %p237, %p238
      %p240 = pneg %p239
      // Predicated region
      $region9: #{siglip_vision_transformer.11} parent=5 // pred_check
        _
      $region10: #{siglip_vision_transformer.11} parent=5 // pred_check_branch
        %242 = sbr.rel (%p239) target = $region12
      $region11: #{siglip_vision_transformer.11} parent=5 // pred_region
        %s243 = ssub.s32 %s13, 1
        // Predicated region
        $region13: #{siglip_vision_transformer.11} parent=11 // pred_check
          %p244 = pneg %p81
        $region14: #{siglip_vision_transformer.11} parent=11 // pred_check_branch
          %246 = sbr.rel (%p244) target = $region16
        $region15: #{siglip_vision_transformer.11} parent=11 // pred_region
          _
        $region16: #{siglip_vision_transformer.11} parent=11 // pred_fallthru
          _
        // Predicated region
        $region17: #{siglip_vision_transformer.11} parent=11 // pred_check
          %p247 = pneg %p102
        $region18: #{siglip_vision_transformer.11} parent=11 // pred_check_branch
          %249 = sbr.rel (%p247) target = $region20
        $region19: #{siglip_vision_transformer.11} parent=11 // pred_region
          _
        $region20: #{siglip_vision_transformer.11} parent=11 // pred_fallthru
          _
        // Predicated region
        $region21: #{siglip_vision_transformer.11} parent=11 // pred_check
          %p250 = pneg %p201
        $region22: #{siglip_vision_transformer.11} parent=11 // pred_check_branch
          %252 = sbr.rel (%p250) target = $region24
        $region23: #{siglip_vision_transformer.11} parent=11 // pred_region
          _
        $region24: #{siglip_vision_transformer.11} parent=11 // pred_fallthru
          _
      $region12: #{siglip_vision_transformer.11} parent=5 // pred_fallthru
        _
      %p253 = scmp.lt.s32.totalorder %s13, 12
      // Predicated region
      $region25: #{siglip_vision_transformer.11} parent=5 // pred_check
        %p254 = pneg %p253
      $region26: #{siglip_vision_transformer.11} parent=5 // pred_check_branch
        %256 = sbr.rel (%p254) target = $region28
      $region27: #{siglip_vision_transformer.11} parent=5 // pred_region
        // Predicated region
        $region29: #{siglip_vision_transformer.11} parent=27 // pred_check
          %p257 = pneg %p54
        $region30: #{siglip_vision_transformer.11} parent=27 // pred_check_branch
          %259 = sbr.rel (%p257) target = $region32
        $region31: #{siglip_vision_transformer.11} parent=27 // pred_region
          %s260 = smul.u32 4, %s21
          %p261 = scmp.lt.s32.totalorder %s20, 1
          %s262 = scalar_select %p261, %s20, 1
          %p263 = scmp.lt.s32.totalorder %s260, 11
          %s264 = scalar_select %p263, %s260, 11
          %s265 = smul.addr %s262, 12
          %s266 = sadd.s32 %s264, %s265
          %s267 = smul.addr %s266, 8
          %s268 = scalar_lea.vmem %s0, %s267
          %s269 = smul.u32 4, %s21
        $region32: #{siglip_vision_transformer.11} parent=27 // pred_fallthru
          _
        // Predicated region
        $region33: #{siglip_vision_transformer.11} parent=27 // pred_check
          %p270 = pneg %p122
        $region34: #{siglip_vision_transformer.11} parent=27 // pred_check_branch
          %272 = sbr.rel (%p270) target = $region36
        $region35: #{siglip_vision_transformer.11} parent=27 // pred_region
          %s273 = sand.u32 %s112, 1
          %s274 = sand.u32 %s112, 1
          %s275 = smul.addr %s274, 64
          %s276 = scalar_lea.vmem [#allocation4], %s275
          %s277 = smul.addr %s22, 4
          %s278 = scalar_lea.vmem %s3, %s277
          // Predicated region
          $region37: #{siglip_vision_transformer.11} parent=35 // pred_check
            _
          $region38: #{siglip_vision_transformer.11} parent=35 // pred_check_branch
            %280 = sbr.rel (0) target = $region40
          $region39: #{siglip_vision_transformer.11} parent=35 // pred_region
            // Predicated region
            $region41: #{siglip_vision_transformer.11} parent=39 // pred_check
              _
            $region42: #{siglip_vision_transformer.11} parent=39 // pred_check_branch
              %282 = sbr.rel target = $region44
            $region43: #{siglip_vision_transformer.11} parent=39 // pred_region
              // Predicated region
              $region56: #{siglip_vision_transformer.11} parent=43 // pred_check
                _
              $region57: #{siglip_vision_transformer.11} parent=43 // pred_check_branch
                %328 = sbr.rel (0) target = $region59
              $region58: #{siglip_vision_transformer.11} parent=43 // pred_region
                loop: start=0, step=1, limit=1
                $region60: #{siglip_vision_transformer.11} parent=58 // loop_pre_header
                  _
                $region61: #{siglip_vision_transformer.11} parent=58 // loop_header
                  %s330 = sphi 0, %s334
                  %p331 = scmp.ge.s32.totalorder %s330, 1
                  %s335 = sphi %s278, %s278
                  %s336 = sphi %s276, %s276
                $region62: #{siglip_vision_transformer.11} parent=58 // loop_header_branch
                  %333 = sbr.rel (%p331) target = $region66
                $region63: #{siglip_vision_transformer.11} parent=58 // loop_body
                  _
                $region64: #{siglip_vision_transformer.11} parent=58 // loop_footer
                  %s334 = sadd.s32 1, %s330
                $region65: #{siglip_vision_transformer.11} parent=58 // loop_footer_branch
                  %329 = sbr.rel target = $region61
                $region66: #{siglip_vision_transformer.11} parent=58 // loop_exit
                  _
                %s338 = ssub.s32 16, 1
                loop: start=0, step=1, limit=1
                $region67: #{siglip_vision_transformer.11} parent=58 // loop_pre_header
                  _
                $region68: #{siglip_vision_transformer.11} parent=58 // loop_header
                  %s340 = sphi 0, %s344
                  %p341 = scmp.ge.s32.totalorder %s340, 1
                  %s345 = sphi %s278, %s278
                  %s346 = sphi %s276, %s276
                $region69: #{siglip_vision_transformer.11} parent=58 // loop_header_branch
                  %343 = sbr.rel (%p341) target = $region73
                $region70: #{siglip_vision_transformer.11} parent=58 // loop_body
                  %v347 = vld [vmem:[%s345] sm:%s338]
                  %348 = vst [vmem:[%s346] sm:%s338] %v347
                  %v349 = vld [vmem:[%s345 + $0x8] sm:%s338]
                  %350 = vst [vmem:[%s346 + $0x4] sm:%s338] %v349
                  %v351 = vld [vmem:[%s345 + $0x10] sm:%s338]
                  %352 = vst [vmem:[%s346 + $0x8] sm:%s338] %v351
                  %v353 = vld [vmem:[%s345 + $0x18] sm:%s338]
                  %354 = vst [vmem:[%s346 + $0xc] sm:%s338] %v353
                  %v355 = vld [vmem:[%s345 + $0x20] sm:%s338]
                  %356 = vst [vmem:[%s346 + $0x10] sm:%s338] %v355
                  %v357 = vld [vmem:[%s345 + $0x28] sm:%s338]
                  %358 = vst [vmem:[%s346 + $0x14] sm:%s338] %v357
                  %v359 = vld [vmem:[%s345 + $0x30] sm:%s338]
                  %360 = vst [vmem:[%s346 + $0x18] sm:%s338] %v359
                  %v361 = vld [vmem:[%s345 + $0x38] sm:%s338]
                  %362 = vst [vmem:[%s346 + $0x1c] sm:%s338] %v361
                  %v363 = vld [vmem:[%s345 + $0x40] sm:%s338]
                  %364 = vst [vmem:[%s346 + $0x20] sm:%s338] %v363
                  %v365 = vld [vmem:[%s345 + $0x48] sm:%s338]
                  %366 = vst [vmem:[%s346 + $0x24] sm:%s338] %v365
                  %v367 = vld [vmem:[%s345 + $0x50] sm:%s338]
                  %368 = vst [vmem:[%s346 + $0x28] sm:%s338] %v367
                  %v369 = vld [vmem:[%s345 + $0x58] sm:%s338]
                  %370 = vst [vmem:[%s346 + $0x2c] sm:%s338] %v369
                  %v371 = vld [vmem:[%s345 + $0x60] sm:%s338]
                  %372 = vst [vmem:[%s346 + $0x30] sm:%s338] %v371
                  %v373 = vld [vmem:[%s345 + $0x68] sm:%s338]
                  %374 = vst [vmem:[%s346 + $0x34] sm:%s338] %v373
                  %v375 = vld [vmem:[%s345 + $0x70] sm:%s338]
                  %376 = vst [vmem:[%s346 + $0x38] sm:%s338] %v375
                  %v377 = vld [vmem:[%s345 + $0x78] sm:%s338]
                  %378 = vst [vmem:[%s346 + $0x3c] sm:%s338] %v377
                $region71: #{siglip_vision_transformer.11} parent=58 // loop_footer
                  %s344 = sadd.s32 1, %s340
                $region72: #{siglip_vision_transformer.11} parent=58 // loop_footer_branch
                  %339 = sbr.rel target = $region68
                $region73: #{siglip_vision_transformer.11} parent=58 // loop_exit
                  _
              $region59: #{siglip_vision_transformer.11} parent=43 // pred_fallthru
                _
            $region44: #{siglip_vision_transformer.11} parent=39 // pred_fallthru
              _
            // Predicated region
            $region45: #{siglip_vision_transformer.11} parent=39 // pred_check
              _
            $region46: #{siglip_vision_transformer.11} parent=39 // pred_check_branch
              %284 = sbr.rel (0) target = $region48
            $region47: #{siglip_vision_transformer.11} parent=39 // pred_region
              %s286 = ssub.s32 16, 1
              loop: start=0, step=1, limit=1
              $region49: #{siglip_vision_transformer.11} parent=47 // loop_pre_header
                _
              $region50: #{siglip_vision_transformer.11} parent=47 // loop_header
                %s288 = sphi 0, %s292
                %p289 = scmp.ge.s32.totalorder %s288, 1
                %s293 = sphi %s278, %s278
                %s294 = sphi %s276, %s276
              $region51: #{siglip_vision_transformer.11} parent=47 // loop_header_branch
                %291 = sbr.rel (%p289) target = $region55
              $region52: #{siglip_vision_transformer.11} parent=47 // loop_body
                %v295 = vld [vmem:[%s293] sm:%s286]
                %296 = vst [vmem:[%s294] sm:%s286] %v295
                %v297 = vld [vmem:[%s293 + $0x8] sm:%s286]
                %298 = vst [vmem:[%s294 + $0x4] sm:%s286] %v297
                %v299 = vld [vmem:[%s293 + $0x10] sm:%s286]
                %300 = vst [vmem:[%s294 + $0x8] sm:%s286] %v299
                %v301 = vld [vmem:[%s293 + $0x18] sm:%s286]
                %302 = vst [vmem:[%s294 + $0xc] sm:%s286] %v301
                %v303 = vld [vmem:[%s293 + $0x20] sm:%s286]
                %304 = vst [vmem:[%s294 + $0x10] sm:%s286] %v303
                %v305 = vld [vmem:[%s293 + $0x28] sm:%s286]
                %306 = vst [vmem:[%s294 + $0x14] sm:%s286] %v305
                %v307 = vld [vmem:[%s293 + $0x30] sm:%s286]
                %308 = vst [vmem:[%s294 + $0x18] sm:%s286] %v307
                %v309 = vld [vmem:[%s293 + $0x38] sm:%s286]
                %310 = vst [vmem:[%s294 + $0x1c] sm:%s286] %v309
                %v311 = vld [vmem:[%s293 + $0x40] sm:%s286]
                %312 = vst [vmem:[%s294 + $0x20] sm:%s286] %v311
                %v313 = vld [vmem:[%s293 + $0x48] sm:%s286]
                %314 = vst [vmem:[%s294 + $0x24] sm:%s286] %v313
                %v315 = vld [vmem:[%s293 + $0x50] sm:%s286]
                %316 = vst [vmem:[%s294 + $0x28] sm:%s286] %v315
                %v317 = vld [vmem:[%s293 + $0x58] sm:%s286]
                %318 = vst [vmem:[%s294 + $0x2c] sm:%s286] %v317
                %v319 = vld [vmem:[%s293 + $0x60] sm:%s286]
                %320 = vst [vmem:[%s294 + $0x30] sm:%s286] %v319
                %v321 = vld [vmem:[%s293 + $0x68] sm:%s286]
                %322 = vst [vmem:[%s294 + $0x34] sm:%s286] %v321
                %v323 = vld [vmem:[%s293 + $0x70] sm:%s286]
                %324 = vst [vmem:[%s294 + $0x38] sm:%s286] %v323
                %v325 = vld [vmem:[%s293 + $0x78] sm:%s286]
                %326 = vst [vmem:[%s294 + $0x3c] sm:%s286] %v325
              $region53: #{siglip_vision_transformer.11} parent=47 // loop_footer
                %s292 = sadd.s32 1, %s288
              $region54: #{siglip_vision_transformer.11} parent=47 // loop_footer_branch
                %287 = sbr.rel target = $region50
              $region55: #{siglip_vision_transformer.11} parent=47 // loop_exit
                _
            $region48: #{siglip_vision_transformer.11} parent=39 // pred_fallthru
              _
          $region40: #{siglip_vision_transformer.11} parent=35 // pred_fallthru
            _
          %379 = vnop
        $region36: #{siglip_vision_transformer.11} parent=27 // pred_fallthru
          _
        // Predicated region
        $region74: #{siglip_vision_transformer.11} parent=27 // pred_check
          %p380 = pneg %p148
        $region75: #{siglip_vision_transformer.11} parent=27 // pred_check_branch
          %382 = sbr.rel (%p380) target = $region77
        $region76: #{siglip_vision_transformer.11} parent=27 // pred_region
          %p383 = scmp.lt.s32.totalorder %s22, 1
          %s384 = scalar_select %p383, %s22, 1
          %s385 = scalar_lea.vmem %s4, %s384
        $region77: #{siglip_vision_transformer.11} parent=27 // pred_fallthru
          _
        // Predicated region
        $region78: #{siglip_vision_transformer.11} parent=27 // pred_check
          %p386 = pneg %p174
        $region79: #{siglip_vision_transformer.11} parent=27 // pred_check_branch
          %388 = sbr.rel (%p386) target = $region81
        $region80: #{siglip_vision_transformer.11} parent=27 // pred_region
          %s389 = smul.u32 16, %s22
          %p390 = scmp.lt.s32.totalorder %s389, 31
          %s391 = scalar_select %p390, %s389, 31
          %s392 = smul.addr %s391, 4
          %s393 = scalar_lea.vmem %s5, %s392
          %s394 = smul.u32 16, %s22
        $region81: #{siglip_vision_transformer.11} parent=27 // pred_fallthru
          _
      $region28: #{siglip_vision_transformer.11} parent=5 // pred_fallthru
        _
      %p395 = scmp.le.s32.totalorder 1, %s13
      %p396 = scmp.lt.s32.totalorder %s13, 13
      %p397 = pnand %p395, %p396
      %p398 = pneg %p397
      // Predicated region
      $region82: #{siglip_vision_transformer.11} parent=5 // pred_check
        _
      $region83: #{siglip_vision_transformer.11} parent=5 // pred_check_branch
        %400 = sbr.rel (%p397) target = $region85
      $region84: #{siglip_vision_transformer.11} parent=5 // pred_region
        %s401 = ssub.s32 %s13, 1
        %s402 = sand.u32 %s115, 1
        %s403 = sand.u32 %s115, 1
        %s404 = smul.addr %s403, 64
        %s405 = scalar_lea.vmem [#allocation4], %s404
        // Predicated region
        $region86: #{siglip_vision_transformer.11} parent=84 // pred_check
          %p406 = pneg %p128
        $region87: #{siglip_vision_transformer.11} parent=84 // pred_check_branch
          %408 = sbr.rel (%p406) target = $region89
        $region88: #{siglip_vision_transformer.11} parent=84 // pred_region
          _
        $region89: #{siglip_vision_transformer.11} parent=84 // pred_fallthru
          _
        %s409 = smul.u32 4, %s24
        %p410 = scmp.lt.s32.totalorder %s23, 1
        %s411 = scalar_select %p410, %s23, 1
        %p412 = scmp.lt.s32.totalorder %s409, 11
        %s413 = scalar_select %p412, %s409, 11
        %s414 = smul.addr %s411, 12
        %s415 = sadd.s32 %s413, %s414
        %s416 = smul.addr %s415, 8
        %s417 = scalar_lea.vmem %s0, %s416
        %p418 = pneg %p60
        %p419 = pneg %p57
        %p420 = pneg %p81
        %p421 = pneg %p78
        %p422 = pneg %p102
        %p423 = pneg %p99
        %s424 = sand.u32 %s115, 1
        %s425 = sand.u32 %s115, 1
        %s426 = smul.addr %s425, 64
        %s427 = scalar_lea.vmem [#allocation4], %s426
        %p428 = pneg %p128
        %p429 = pneg %p125
        %p430 = scmp.lt.s32.totalorder %s25, 1
        %s431 = scalar_select %p430, %s25, 1
        %s432 = scalar_lea.vmem %s4, %s431
        %p433 = pneg %p154
        %p434 = pneg %p151
        %s435 = smul.u32 16, %s25
        %p436 = scmp.lt.s32.totalorder %s435, 31
        %s437 = scalar_select %p436, %s435, 31
        %s438 = smul.addr %s437, 4
        %s439 = scalar_lea.vmem %s5, %s438
        %p440 = pneg %p180
        %p441 = pneg %p177
        %p442 = pneg %p201
        %p443 = pneg %p198
        %p444 = pneg %p229
        %p445 = pneg %p226
        %s446 = smul.u32 4, %s24
        %p447 = scmp.lt.s32.totalorder %s23, 1
        %s448 = scalar_select %p447, %s23, 1
        %p449 = scmp.lt.s32.totalorder %s446, 11
        %s450 = scalar_select %p449, %s446, 11
        %s451 = smul.addr %s448, 12
        %s452 = sadd.s32 %s450, %s451
        %s453 = smul.addr %s452, 8
        %s454 = scalar_lea.vmem %s7, %s453
        %s455 = smul.u32 4, %s24
        %p456 = scmp.lt.s32.totalorder %s23, 1
        %s457 = scalar_select %p456, %s23, 1
        %p458 = scmp.lt.s32.totalorder %s455, 11
        %s459 = scalar_select %p458, %s455, 11
        %s460 = smul.addr %s457, 12
        %s461 = sadd.s32 %s459, %s460
        %s462 = smul.addr %s461, 8
        %s463 = scalar_lea.vmem %s0, %s462
        %s464 = smul.u32 4, %s24
        %p465 = scmp.lt.s32.totalorder %s25, 1
        %s466 = scalar_select %p465, %s25, 1
        %s467 = scalar_lea.vmem %s4, %s466
        %s468 = smul.u32 16, %s25
        %p469 = scmp.lt.s32.totalorder %s468, 31
        %s470 = scalar_select %p469, %s468, 31
        %s471 = smul.addr %s470, 4
        %s472 = scalar_lea.vmem %s5, %s471
        %s473 = smul.u32 16, %s25
        %s474 = smul.u32 4, %s24
        %p475 = scmp.lt.s32.totalorder %s23, 1
        %s476 = scalar_select %p475, %s23, 1
        %p477 = scmp.lt.s32.totalorder %s474, 11
        %s478 = scalar_select %p477, %s474, 11
        %s479 = smul.addr %s476, 12
        %s480 = sadd.s32 %s478, %s479
        %s481 = smul.addr %s480, 8
        %s482 = scalar_lea.vmem %s7, %s481
        %s483 = smul.u32 4, %s24
        %p484 = scmp.eq.s32.totalorder %s25, 0
        // Predicated region
        $region90: #{siglip_vision_transformer.11} parent=84 // pred_check
          %p485 = pneg %p484
        $region91: #{siglip_vision_transformer.11} parent=84 // pred_check_branch
          %487 = sbr.rel (%p485) target = $region93
        $region92: #{siglip_vision_transformer.11} parent=84 // pred_region
          %v488 = vld [vmem:[%s463] sm:$0xff]
          %v489 = vld [vmem:[%s463 + $0x8] sm:$0xff]
          %v490 = vld [vmem:[%s463 + $0x10] sm:$0xff]
          %v491 = vld [vmem:[%s463 + $0x18] sm:$0xff]
          %v492 = vld [vmem:[%s1] sm:$0x1]
          %v493 = vld [vmem:[%s2] sm:$0x1]
          %494 = vadd.xlane.f32.xlu0 %v488
          %v495 = vpop.xlane.xlu0 %494
          %496 = vadd.xlane.f32.xlu0 %v489
          %v497 = vpop.xlane.xlu0 %496
          %498 = vadd.xlane.f32.xlu0 %v490
          %v499 = vpop.xlane.xlu0 %498
          %500 = vadd.xlane.f32.xlu0 %v491
          %v501 = vpop.xlane.xlu0 %500
          %v502 = vrcp.pop 128.0
          %v503 = vmul.f32 128.0, %v502
          %v504 = vsub.f32 1.0, %v503
          %v505 = vmul.f32 %v502, %v504
          %v506 = vadd.f32 %v502, %v505
          %vm507 = vweird.f32 %v502
          %v508 = vsel %vm507, %v502, %v506
          %v509 = vmul.f32 %v495, %v508
          %v510 = vmul.f32 %v497, %v508
          %v511 = vmul.f32 %v499, %v508
          %v512 = vmul.f32 %v501, %v508
          %v513 = vsub.f32 %v488, %v509
          %v514 = vsub.f32 %v489, %v510
          %v515 = vsub.f32 %v490, %v511
          %v516 = vsub.f32 %v491, %v512
          %v517 = vmul.f32 %v513, %v513
          %v518 = vmul.f32 %v514, %v514
          %v519 = vmul.f32 %v515, %v515
          %v520 = vmul.f32 %v516, %v516
          %521 = vadd.xlane.f32.xlu0 %v517
          %v522 = vpop.xlane.xlu0 %521
          %523 = vadd.xlane.f32.xlu0 %v518
          %v524 = vpop.xlane.xlu0 %523
          %525 = vadd.xlane.f32.xlu0 %v519
          %v526 = vpop.xlane.xlu0 %525
          %527 = vadd.xlane.f32.xlu0 %v520
          %v528 = vpop.xlane.xlu0 %527
          %v529 = vmul.f32 %v522, %v508
          %v530 = vmul.f32 %v524, %v508
          %v531 = vmul.f32 %v526, %v508
          %v532 = vmul.f32 %v528, %v508
          %v533 = vadd.f32 %v529, 1e-06
          %v534 = vadd.f32 %v530, 1e-06
          %v535 = vadd.f32 %v531, 1e-06
          %v536 = vadd.f32 %v532, 1e-06
          %v537 = vrsqrt.pop %v533
          %v538 = vmul.f32 %v537, %v533
          %v539 = vmul.f32 %v538, %v537
          %v540 = vmul.f32 0.5, %v539
          %v541 = vsub.f32 1.5, %v540
          %v542 = vmul.f32 %v537, %v541
          %vm543 = vweird.f32 %v533
          %vm544 = vweird.f32 %v537
          %vm545 = vmor %vm543, %vm544
          %v546 = vsel %vm545, %v537, %v542
          %v547 = vrsqrt.pop %v534
          %v548 = vmul.f32 %v547, %v534
          %v549 = vmul.f32 %v548, %v547
          %v550 = vmul.f32 0.5, %v549
          %v551 = vsub.f32 1.5, %v550
          %v552 = vmul.f32 %v547, %v551
          %vm553 = vweird.f32 %v534
          %vm554 = vweird.f32 %v547
          %vm555 = vmor %vm553, %vm554
          %v556 = vsel %vm555, %v547, %v552
          %v557 = vrsqrt.pop %v535
          %v558 = vmul.f32 %v557, %v535
          %v559 = vmul.f32 %v558, %v557
          %v560 = vmul.f32 0.5, %v559
          %v561 = vsub.f32 1.5, %v560
          %v562 = vmul.f32 %v557, %v561
          %vm563 = vweird.f32 %v535
          %vm564 = vweird.f32 %v557
          %vm565 = vmor %vm563, %vm564
          %v566 = vsel %vm565, %v557, %v562
          %v567 = vrsqrt.pop %v536
          %v568 = vmul.f32 %v567, %v536
          %v569 = vmul.f32 %v568, %v567
          %v570 = vmul.f32 0.5, %v569
          %v571 = vsub.f32 1.5, %v570
          %v572 = vmul.f32 %v567, %v571
          %vm573 = vweird.f32 %v536
          %vm574 = vweird.f32 %v567
          %vm575 = vmor %vm573, %vm574
          %v576 = vsel %vm575, %v567, %v572
          %v577 = vmul.f32 %v513, %v546
          %v578 = vmul.f32 %v514, %v556
          %v579 = vmul.f32 %v515, %v566
          %v580 = vmul.f32 %v516, %v576
          %v582 = vperm.slane %v492, 0
          %v584 = vmul.f32 %v577, %v582
          %v585 = vmul.f32 %v578, %v582
          %v586 = vmul.f32 %v579, %v582
          %v587 = vmul.f32 %v580, %v582
          %v589 = vperm.slane %v493, 0
          %v591 = vadd.f32 %v584, %v589
          %v592 = vadd.f32 %v585, %v589
          %v593 = vadd.f32 %v586, %v589
          %v594 = vadd.f32 %v587, %v589
          %v595 = vpack.c.bf16 %v591, %v591
          %v596 = vpack.c.bf16 %v592, %v592
          %v597 = vpack.c.bf16 %v593, %v593
          %v598 = vpack.c.bf16 %v594, %v594
          %599 = vst [vmem:[#allocation3] sm:$0xf] %v595
          %600 = vst [vmem:[#allocation3 + $0x4] sm:$0xf] %v596
          %601 = vst [vmem:[#allocation3 + $0x8] sm:$0xf] %v597
          %602 = vst [vmem:[#allocation3 + $0xc] sm:$0xf] %v598
          %v603 = vld [vmem:[%s6] sm:$0x1]
          %v605 = vperm.slane %v603, 0
          %v607 = vadd.f32 %v488, %v605
          %v608 = vadd.f32 %v489, %v605
          %v609 = vadd.f32 %v490, %v605
          %v610 = vadd.f32 %v491, %v605
          %611 = vst [vmem:[#allocation2] sm:$0xff] %v607
          %612 = vst [vmem:[#allocation2 + $0x8] sm:$0xff] %v608
          %613 = vst [vmem:[#allocation2 + $0x10] sm:$0xff] %v609
          %614 = vst [vmem:[#allocation2 + $0x18] sm:$0xff] %v610
        $region93: #{siglip_vision_transformer.11} parent=84 // pred_fallthru
          _
        %v615 = vld [vmem:[#allocation3] sm:$0xf]
        %v616 = vld [vmem:[#allocation3 + $0x4] sm:$0xf]
        %v617 = vld [vmem:[#allocation3 + $0x8] sm:$0xf]
        %v618 = vld [vmem:[#allocation3 + $0xc] sm:$0xf]
        %v619 = vld [vmem:[%s405] sm:$0xf]
        %v620 = vld [vmem:[%s405 + $0x4] sm:$0xf]
        %v621 = vld [vmem:[%s405 + $0x8] sm:$0xf]
        %v622 = vld [vmem:[%s405 + $0xc] sm:$0xf]
        %v623 = vld [vmem:[%s405 + $0x10] sm:$0xf]
        %v624 = vld [vmem:[%s405 + $0x14] sm:$0xf]
        %v625 = vld [vmem:[%s405 + $0x18] sm:$0xf]
        %v626 = vld [vmem:[%s405 + $0x1c] sm:$0xf]
        %v627 = vld [vmem:[%s405 + $0x20] sm:$0xf]
        %v628 = vld [vmem:[%s405 + $0x24] sm:$0xf]
        %v629 = vld [vmem:[%s405 + $0x28] sm:$0xf]
        %v630 = vld [vmem:[%s405 + $0x2c] sm:$0xf]
        %v631 = vld [vmem:[%s405 + $0x30] sm:$0xf]
        %v632 = vld [vmem:[%s405 + $0x34] sm:$0xf]
        %v633 = vld [vmem:[%s405 + $0x38] sm:$0xf]
        %v634 = vld [vmem:[%s405 + $0x3c] sm:$0xf]
        %v635 = vld [vmem:[%s467] sm:$0x1]
        %v637 = vperm.slane %v635, 0
        %v643 = vunpack.c.l.b16 %v615
        %v644 = vunpack.c.l.b16 %v616
        %v645 = vunpack.c.l.b16 %v617
        %v646 = vunpack.c.l.b16 %v618
        %v647 = vpack.c.b16 %v644, %v643
        %v648 = vpack.c.b16 %v646, %v645
        %v667 = vunpack.c.l.b16 %v619
        %v668 = vunpack.c.l.b16 %v620
        %v669 = vunpack.c.l.b16 %v621
        %v670 = vunpack.c.l.b16 %v622
        %v671 = vunpack.c.l.b16 %v623
        %v672 = vunpack.c.l.b16 %v624
        %v673 = vunpack.c.l.b16 %v625
        %v674 = vunpack.c.l.b16 %v626
        %v675 = vunpack.c.l.b16 %v627
        %v676 = vunpack.c.l.b16 %v628
        %v677 = vunpack.c.l.b16 %v629
        %v678 = vunpack.c.l.b16 %v630
        %v679 = vunpack.c.l.b16 %v631
        %v680 = vunpack.c.l.b16 %v632
        %v681 = vunpack.c.l.b16 %v633
        %v682 = vunpack.c.l.b16 %v634
        %v683 = vpack.c.b16 %v668, %v667
        %v684 = vpack.c.b16 %v670, %v669
        %v685 = vpack.c.b16 %v672, %v671
        %v686 = vpack.c.b16 %v674, %v673
        %v687 = vpack.c.b16 %v676, %v675
        %v688 = vpack.c.b16 %v678, %v677
        %v689 = vpack.c.b16 %v680, %v679
        %v690 = vpack.c.b16 %v682, %v681
        %699 = vmatpush.bf16.msra.mxu0 %v690
        %700 = vmatpush.bf16.msra.mxu0 %v689
        %701 = vmatpush.bf16.msra.mxu0 %v688
        %702 = vmatpush.bf16.msra.mxu0 %v687
        %703 = vmatpush.bf16.msra.mxu0 %v686
        %704 = vmatpush.bf16.msra.mxu0 %v685
        %705 = vmatpush.bf16.msra.mxu0 %v684
        %706 = vmatpush.bf16.msra.mxu0 %v683
        %707 = vmatmul.bf16.gmra.mxu0 %v647
        %v708 = vpop.f32.mrf.mxu0
        %v709 = vadd.f32 %v637, %v708
        %v710 = vpop.f32.mrf.mxu0
        %v711 = vadd.f32 %v637, %v710
        %712 = vmatmul.bf16.gmra.mxu0 %v648
        %v713 = vpop.f32.mrf.mxu0
        %v714 = vadd.f32 %v637, %v713
        %v715 = vpop.f32.mrf.mxu0
        %v716 = vadd.f32 %v637, %v715
        %717 = vdwg.mxu0
        %v718 = vpack.c.bf16 %v709, %v709
        %v719 = vpack.c.bf16 %v711, %v711
        %v720 = vpack.c.bf16 %v714, %v714
        %v721 = vpack.c.bf16 %v716, %v716
        %v722 = vunpack.c.l.bf16 %v718
        %v723 = vunpack.c.l.bf16 %v719
        %v724 = vunpack.c.l.bf16 %v720
        %v725 = vunpack.c.l.bf16 %v721
        %v726 = vmul.f32 %v722, 0.5
        %v727 = vmul.f32 %v723, 0.5
        %v728 = vmul.f32 %v724, 0.5
        %v729 = vmul.f32 %v725, 0.5
        %v730 = vpack.c.bf16 %v726, %v726
        %v731 = vpack.c.bf16 %v727, %v727
        %v732 = vpack.c.bf16 %v728, %v728
        %v733 = vpack.c.bf16 %v729, %v729
        %v734 = vmul.f32 %v722, 0.044677734
        %v735 = vmul.f32 %v723, 0.044677734
        %v736 = vmul.f32 %v724, 0.044677734
        %v737 = vmul.f32 %v725, 0.044677734
        %v738 = vpack.c.bf16 %v734, %v734
        %v739 = vpack.c.bf16 %v735, %v735
        %v740 = vpack.c.bf16 %v736, %v736
        %v741 = vpack.c.bf16 %v737, %v737
        %v742 = vunpack.c.l.bf16 %v738
        %v743 = vunpack.c.l.bf16 %v739
        %v744 = vunpack.c.l.bf16 %v740
        %v745 = vunpack.c.l.bf16 %v741
        %v746 = vmul.f32 %v742, %v722
        %v747 = vmul.f32 %v743, %v723
        %v748 = vmul.f32 %v744, %v724
        %v749 = vmul.f32 %v745, %v725
        %v750 = vpack.c.bf16 %v746, %v746
        %v751 = vpack.c.bf16 %v747, %v747
        %v752 = vpack.c.bf16 %v748, %v748
        %v753 = vpack.c.bf16 %v749, %v749
        %v754 = vunpack.c.l.bf16 %v750
        %v755 = vunpack.c.l.bf16 %v751
        %v756 = vunpack.c.l.bf16 %v752
        %v757 = vunpack.c.l.bf16 %v753
        %v758 = vmul.f32 %v754, %v722
        %v759 = vmul.f32 %v755, %v723
        %v760 = vmul.f32 %v756, %v724
        %v761 = vmul.f32 %v757, %v725
        %v762 = vpack.c.bf16 %v758, %v758
        %v763 = vpack.c.bf16 %v759, %v759
        %v764 = vpack.c.bf16 %v760, %v760
        %v765 = vpack.c.bf16 %v761, %v761
        %v766 = vunpack.c.l.bf16 %v762
        %v767 = vunpack.c.l.bf16 %v763
        %v768 = vunpack.c.l.bf16 %v764
        %v769 = vunpack.c.l.bf16 %v765
        %v770 = vadd.f32 %v722, %v766
        %v771 = vadd.f32 %v723, %v767
        %v772 = vadd.f32 %v724, %v768
        %v773 = vadd.f32 %v725, %v769
        %v774 = vpack.c.bf16 %v770, %v770
        %v775 = vpack.c.bf16 %v771, %v771
        %v776 = vpack.c.bf16 %v772, %v772
        %v777 = vpack.c.bf16 %v773, %v773
        %v778 = vunpack.c.l.bf16 %v774
        %v779 = vunpack.c.l.bf16 %v775
        %v780 = vunpack.c.l.bf16 %v776
        %v781 = vunpack.c.l.bf16 %v777
        %v782 = vmul.f32 %v778, 0.796875
        %v783 = vmul.f32 %v779, 0.796875
        %v784 = vmul.f32 %v780, 0.796875
        %v785 = vmul.f32 %v781, 0.796875
        %v786 = vpack.c.bf16 %v782, %v782
        %v787 = vpack.c.bf16 %v783, %v783
        %v788 = vpack.c.bf16 %v784, %v784
        %v789 = vpack.c.bf16 %v785, %v785
        %v790 = vunpack.c.l.bf16 %v786
        %v791 = vunpack.c.l.bf16 %v787
        %v792 = vunpack.c.l.bf16 %v788
        %v793 = vunpack.c.l.bf16 %v789
        %v794 = vtanh.pop %v790
        %v795 = vtanh.pop %v791
        %v796 = vtanh.pop %v792
        %v797 = vtanh.pop %v793
        %v798 = vpack.c.bf16 %v794, %v794
        %v799 = vpack.c.bf16 %v795, %v795
        %v800 = vpack.c.bf16 %v796, %v796
        %v801 = vpack.c.bf16 %v797, %v797
        %v802 = vunpack.c.l.bf16 %v798
        %v803 = vunpack.c.l.bf16 %v799
        %v804 = vunpack.c.l.bf16 %v800
        %v805 = vunpack.c.l.bf16 %v801
        %v806 = vadd.f32 %v802, 1.0
        %v807 = vadd.f32 %v803, 1.0
        %v808 = vadd.f32 %v804, 1.0
        %v809 = vadd.f32 %v805, 1.0
        %v810 = vpack.c.bf16 %v806, %v806
        %v811 = vpack.c.bf16 %v807, %v807
        %v812 = vpack.c.bf16 %v808, %v808
        %v813 = vpack.c.bf16 %v809, %v809
        %v814 = vunpack.c.l.bf16 %v730
        %v815 = vunpack.c.l.bf16 %v731
        %v816 = vunpack.c.l.bf16 %v732
        %v817 = vunpack.c.l.bf16 %v733
        %v818 = vunpack.c.l.bf16 %v810
        %v819 = vunpack.c.l.bf16 %v811
        %v820 = vunpack.c.l.bf16 %v812
        %v821 = vunpack.c.l.bf16 %v813
        %v822 = vmul.f32 %v814, %v818
        %v823 = vmul.f32 %v815, %v819
        %v824 = vmul.f32 %v816, %v820
        %v825 = vmul.f32 %v817, %v821
        %v826 = vpack.c.bf16 %v823, %v822
        %v827 = vpack.c.bf16 %v825, %v824
        %v828 = vld [vmem:[#allocation2] sm:$0xff]
        %v829 = vld [vmem:[#allocation2 + $0x8] sm:$0xff]
        %v830 = vld [vmem:[#allocation2 + $0x10] sm:$0xff]
        %v831 = vld [vmem:[#allocation2 + $0x18] sm:$0xff]
        %v832 = vld [vmem:[%s472] sm:$0xf]
        %v833 = vld [vmem:[%s472 + $0x4] sm:$0xf]
        %v834 = vld [vmem:[%s472 + $0x8] sm:$0xf]
        %v835 = vld [vmem:[%s472 + $0xc] sm:$0xf]
        %v836 = vld [vmem:[%s472 + $0x10] sm:$0xf]
        %v837 = vld [vmem:[%s472 + $0x14] sm:$0xf]
        %v838 = vld [vmem:[%s472 + $0x18] sm:$0xf]
        %v839 = vld [vmem:[%s472 + $0x1c] sm:$0xf]
        %v840 = vld [vmem:[%s472 + $0x20] sm:$0xf]
        %v841 = vld [vmem:[%s472 + $0x24] sm:$0xf]
        %v842 = vld [vmem:[%s472 + $0x28] sm:$0xf]
        %v843 = vld [vmem:[%s472 + $0x2c] sm:$0xf]
        %v844 = vld [vmem:[%s472 + $0x30] sm:$0xf]
        %v845 = vld [vmem:[%s472 + $0x34] sm:$0xf]
        %v846 = vld [vmem:[%s472 + $0x38] sm:$0xf]
        %v847 = vld [vmem:[%s472 + $0x3c] sm:$0xf]
        %v864 = vunpack.c.l.b16 %v832
        %v865 = vunpack.c.l.b16 %v833
        %v866 = vunpack.c.l.b16 %v834
        %v867 = vunpack.c.l.b16 %v835
        %v868 = vunpack.c.l.b16 %v836
        %v869 = vunpack.c.l.b16 %v837
        %v870 = vunpack.c.l.b16 %v838
        %v871 = vunpack.c.l.b16 %v839
        %v872 = vunpack.c.l.b16 %v840
        %v873 = vunpack.c.l.b16 %v841
        %v874 = vunpack.c.l.b16 %v842
        %v875 = vunpack.c.l.b16 %v843
        %v876 = vunpack.c.l.b16 %v844
        %v877 = vunpack.c.l.b16 %v845
        %v878 = vunpack.c.l.b16 %v846
        %v879 = vunpack.c.l.b16 %v847
        %v880 = vpack.c.b16 %v865, %v864
        %v881 = vpack.c.b16 %v867, %v866
        %v882 = vpack.c.b16 %v869, %v868
        %v883 = vpack.c.b16 %v871, %v870
        %v884 = vpack.c.b16 %v873, %v872
        %v885 = vpack.c.b16 %v875, %v874
        %v886 = vpack.c.b16 %v877, %v876
        %v887 = vpack.c.b16 %v879, %v878
        %896 = vmatpush.bf16.msra.mxu0 %v887
        %897 = vmatpush.bf16.msra.mxu0 %v886
        %898 = vmatpush.bf16.msra.mxu0 %v885
        %899 = vmatpush.bf16.msra.mxu0 %v884
        %900 = vmatpush.bf16.msra.mxu0 %v883
        %901 = vmatpush.bf16.msra.mxu0 %v882
        %902 = vmatpush.bf16.msra.mxu0 %v881
        %903 = vmatpush.bf16.msra.mxu0 %v880
        %904 = vmatmul.bf16.gmra.mxu0 %v826
        %v905 = vpop.f32.mrf.mxu0
        %v906 = vadd.f32 0.0, %v905
        %v907 = vpop.f32.mrf.mxu0
        %v908 = vadd.f32 0.0, %v907
        %909 = vmatmul.bf16.gmra.mxu0 %v827
        %v910 = vpop.f32.mrf.mxu0
        %v911 = vadd.f32 0.0, %v910
        %v912 = vpop.f32.mrf.mxu0
        %v913 = vadd.f32 0.0, %v912
        %914 = vdwg.mxu0
        %v915 = vadd.f32 %v828, %v906
        %v916 = vadd.f32 %v829, %v908
        %v917 = vadd.f32 %v830, %v911
        %v918 = vadd.f32 %v831, %v913
        %919 = vst [vmem:[#allocation2] sm:$0xff] %v915
        %920 = vst [vmem:[#allocation2 + $0x8] sm:$0xff] %v916
        %921 = vst [vmem:[#allocation2 + $0x10] sm:$0xff] %v917
        %922 = vst [vmem:[#allocation2 + $0x18] sm:$0xff] %v918
        %p923 = scmp.eq.s32.totalorder %s25, 1
        // Predicated region
        $region94: #{siglip_vision_transformer.11} parent=84 // pred_check
          %p924 = pneg %p923
        $region95: #{siglip_vision_transformer.11} parent=84 // pred_check_branch
          %926 = sbr.rel (%p924) target = $region97
        $region96: #{siglip_vision_transformer.11} parent=84 // pred_region
          %v927 = vld [vmem:[#allocation2] sm:$0xff]
          %v928 = vld [vmem:[#allocation2 + $0x8] sm:$0xff]
          %v929 = vld [vmem:[#allocation2 + $0x10] sm:$0xff]
          %v930 = vld [vmem:[#allocation2 + $0x18] sm:$0xff]
          %931 = vst [vmem:[%s482] sm:$0xff] %v927
          %932 = vst [vmem:[%s482 + $0x8] sm:$0xff] %v928
          %933 = vst [vmem:[%s482 + $0x10] sm:$0xff] %v929
          %934 = vst [vmem:[%s482 + $0x18] sm:$0xff] %v930
        $region97: #{siglip_vision_transformer.11} parent=84 // pred_fallthru
          _
        %s935 = smul.u32 4, %s24
        %p936 = scmp.lt.s32.totalorder %s23, 1
        %s937 = scalar_select %p936, %s23, 1
        %p938 = scmp.lt.s32.totalorder %s935, 11
        %s939 = scalar_select %p938, %s935, 11
        %s940 = smul.addr %s937, 12
        %s941 = sadd.s32 %s939, %s940
        %s942 = smul.addr %s941, 8
        %s943 = scalar_lea.vmem %s7, %s942
        // Predicated region
        $region98: #{siglip_vision_transformer.11} parent=84 // pred_check
          %p944 = pneg %p226
        $region99: #{siglip_vision_transformer.11} parent=84 // pred_check_branch
          %946 = sbr.rel (%p944) target = $region101
        $region100: #{siglip_vision_transformer.11} parent=84 // pred_region
          %s947 = smul.u32 4, %s24
        $region101: #{siglip_vision_transformer.11} parent=84 // pred_fallthru
          _
      $region85: #{siglip_vision_transformer.11} parent=5 // pred_fallthru
        _
      %p948 = scmp.le.s32.totalorder 2, %s13
      // Predicated region
      $region102: #{siglip_vision_transformer.11} parent=5 // pred_check
        %p949 = pneg %p948
      $region103: #{siglip_vision_transformer.11} parent=5 // pred_check_branch
        %951 = sbr.rel (%p949) target = $region105
      $region104: #{siglip_vision_transformer.11} parent=5 // pred_region
        %s952 = ssub.s32 %s13, 2
        // Predicated region
        $region106: #{siglip_vision_transformer.11} parent=104 // pred_check
          %p953 = pneg %p232
        $region107: #{siglip_vision_transformer.11} parent=104 // pred_check_branch
          %955 = sbr.rel (%p953) target = $region109
        $region108: #{siglip_vision_transformer.11} parent=104 // pred_region
          %s956 = smul.u32 4, %s27
          %p957 = scmp.lt.s32.totalorder %s26, 1
          %s958 = scalar_select %p957, %s26, 1
          %p959 = scmp.lt.s32.totalorder %s956, 11
          %s960 = scalar_select %p959, %s956, 11
          %s961 = smul.addr %s958, 12
          %s962 = sadd.s32 %s960, %s961
          %s963 = smul.addr %s962, 8
          %s964 = scalar_lea.vmem %s7, %s963
        $region109: #{siglip_vision_transformer.11} parent=104 // pred_fallthru
          _
      $region105: #{siglip_vision_transformer.11} parent=5 // pred_fallthru
        _
    $region6: #{siglip_vision_transformer.11} parent=1 // loop_footer
      %s17 = sadd.s32 1, %s13
    $region7: #{siglip_vision_transformer.11} parent=1 // loop_footer_branch
      %12 = sbr.rel target = $region3
    $region8: #{siglip_vision_transformer.11} parent=1 // loop_exit
      _

</llo_original>
